<compile_context>
chip_gen: v6e
topology: v6e:2x2x1
jax: 0.10.0
libtpu: 0.0.40
codegen_flags: <defaults>
</compile_context>

<pallas_src>
import math
import jax
import jax.numpy as jnp
from jax.experimental import pallas as pl
from jax.experimental.pallas import tpu as pltpu

# ---- scaled-down ViT config (same structure as vit_base, smaller dims) ----
B = 2                         # batch
IMG = 32                      # image side (1 channel, NCHW)
P = 16                        # patch size (Conv2d 16x16 stride 16)
NP = (IMG // P) ** 2          # 4 patches
T = NP + 1                    # +cls token = 5 tokens
D = 256                       # embed dim   (vit_base: 768)
H = 2                         # attn heads  (vit_base: 12)
DH = D // H                   # head dim = 128 (lane aligned)
MLP = 4 * D                   # mlp hidden  (ratio 4, like vit_base)
DEPTH = 2                     # blocks      (vit_base: 12)
NUM_CLASSES = 10
NC_PAD = 128                  # lane-dense head output, sliced in the wrapper
EPS = 1e-6                    # timm ViT LayerNorm eps
BT = B * T                    # batch folded into the token axis for matmuls


# ------------------------------ kernel helpers ------------------------------
def _layernorm(x, w, b):
    mu = jnp.mean(x, axis=-1, keepdims=True)
    var = jnp.mean(jnp.square(x - mu), axis=-1, keepdims=True)
    return (x - mu) * jax.lax.rsqrt(var + EPS) * w + b


def _gelu(x):
    # TODO(synk): timm uses exact (erf) GELU; tanh approximation used here for
    # guaranteed Mosaic lowering (EUP tanh). Max abs diff ~1e-3.
    c = math.sqrt(2.0 / math.pi)
    return 0.5 * x * (1.0 + jnp.tanh(c * (x + 0.044715 * x * x * x)))


# ------------------------------ fused ViT kernel ----------------------------
def _vit_kernel(patches_ref, pw_ref, pb_ref, cls_ref, pos_ref,
                ln1w_ref, ln1b_ref, wqkv_ref, bqkv_ref, wo_ref, bo_ref,
                ln2w_ref, ln2b_ref, w1_ref, b1_ref, w2_ref, b2_ref,
                nw_ref, nb_ref, hw_ref, hb_ref,
                o_ref, x_sc):
    l = pl.program_id(0)

    # --- layer 0: patch-embed matmul + cls/pos add, build resident (BT, D) ---
    @pl.when(l == 0)
    def _init():
        tok = (jnp.dot(patches_ref[...].astype(jnp.bfloat16), pw_ref[...],
                       preferred_element_type=jnp.float32) + pb_ref[...])
        cls_row = cls_ref[...] + pos_ref[0:1, :]               # (1, D)
        for b in range(B):
            x_sc[b * T:b * T + 1, :] = cls_row
            x_sc[b * T + 1:(b + 1) * T, :] = (
                tok[b * NP:(b + 1) * NP, :] + pos_ref[1:T, :])

    # --- per-layer weights (depth axis selected by the BlockSpec index_map) --
    ln1w = ln1w_ref[0]
    ln1b = ln1b_ref[0]
    wqkv = wqkv_ref[0]
    bqkv = bqkv_ref[0]
    wo = wo_ref[0]
    bo = bo_ref[0]
    ln2w = ln2w_ref[0]
    ln2b = ln2b_ref[0]
    w1 = w1_ref[0]
    b1 = b1_ref[0]
    w2 = w2_ref[0]
    b2 = b2_ref[0]

    scale = 1.0 / math.sqrt(DH)

    # --- attention branch: big matmuls on the full (BT, D) slab -------------
    x = x_sc[...]                                              # (BT, D) f32
    xn = _layernorm(x, ln1w, ln1b)
    qkv = (jnp.dot(xn.astype(jnp.bfloat16), wqkv,
                   preferred_element_type=jnp.float32) + bqkv)  # (BT, 3D) f32

    for b in range(B):          # attention strictly per-image (no cross-batch)
        lo, hi = b * T, (b + 1) * T
        acc = jnp.zeros((T, D), jnp.float32)
        for h in range(H):                                     # heads unrolled
            q = qkv[lo:hi, h * DH:(h + 1) * DH] * scale
            k = qkv[lo:hi, D + h * DH:D + (h + 1) * DH]
            v = qkv[lo:hi, 2 * D + h * DH:2 * D + (h + 1) * DH]
            s = jax.lax.dot_general(
                q.astype(jnp.bfloat16), k.astype(jnp.bfloat16),
                (((1,), (1,)), ((), ())),
                preferred_element_type=jnp.float32)            # (T, T)
            s = s - jnp.max(s, axis=-1, keepdims=True)
            e = jnp.exp(s)
            p = e * pl.reciprocal(jnp.sum(e, axis=-1, keepdims=True),
                                  approx=True)
            hv = jnp.dot(p.astype(jnp.bfloat16), v.astype(jnp.bfloat16),
                         preferred_element_type=jnp.float32)   # (T, DH)
            # project this head straight through its wo row-slice (no concat)
            acc = acc + jnp.dot(hv.astype(jnp.bfloat16),
                                wo[h * DH:(h + 1) * DH, :],
                                preferred_element_type=jnp.float32)
        x_sc[lo:hi, :] = x[lo:hi, :] + acc + bo                # residual

    # --- MLP branch: matmuls on the full (BT, D) slab ------------------------
    x2 = x_sc[...]
    xn2 = _layernorm(x2, ln2w, ln2b)
    h1 = _gelu(jnp.dot(xn2.astype(jnp.bfloat16), w1,
                       preferred_element_type=jnp.float32) + b1)  # (BT, MLP)
    x_sc[...] = x2 + jnp.dot(h1.astype(jnp.bfloat16), w2,
                             preferred_element_type=jnp.float32) + b2

    # --- final norm + head ('token' pooling), only at the last layer ---------
    @pl.when(l == DEPTH - 1)
    def _head():
        for b in range(B):
            c = x_sc[b * T:b * T + 1, :]                       # cls row (1, D)
            cn = _layernorm(c, nw_ref[...], nb_ref[...])
            o_ref[b:b + 1, :] = (
                jnp.dot(cn.astype(jnp.bfloat16), hw_ref[...],
                        preferred_element_type=jnp.float32)
                + hb_ref[...]).astype(o_ref.dtype)


def _rep(shape):
    # grid-invariant input (weights shared across layers / patch data)
    return pl.BlockSpec(shape, lambda l, _n=len(shape): (0,) * _n)


def _layer(shape):
    # per-layer weight stacked on a leading depth axis
    return pl.BlockSpec((1,) + shape, lambda l, _n=len(shape): (l,) + (0,) * _n)


def vit_pallas(patches, params):
    return pl.pallas_call(
        _vit_kernel,
        out_shape=jax.ShapeDtypeStruct((B, NC_PAD), jnp.float32),
        grid=(DEPTH,),
        in_specs=[
            _rep((B * NP, P * P)),        # patches
            _rep((P * P, D)),             # patch_w (bf16)
            _rep((1, D)),                 # patch_b
            _rep((1, D)),                 # cls
            _rep((T, D)),                 # pos
            _layer((1, D)),               # ln1_w
            _layer((1, D)),               # ln1_b
            _layer((D, 3 * D)),           # wqkv (bf16)
            _layer((1, 3 * D)),           # bqkv
            _layer((D, D)),               # wo (bf16)
            _layer((1, D)),               # bo
            _layer((1, D)),               # ln2_w
            _layer((1, D)),               # ln2_b
            _layer((D, MLP)),             # w1 (bf16)
            _layer((1, MLP)),             # b1
            _layer((MLP, D)),             # w2 (bf16)
            _layer((1, D)),               # b2
            _rep((1, D)),                 # norm_w
            _rep((1, D)),                 # norm_b
            _rep((D, NC_PAD)),            # head_w (bf16, zero-padded)
            _rep((1, NC_PAD)),            # head_b (zero-padded)
        ],
        out_specs=pl.BlockSpec((B, NC_PAD), lambda l: (0, 0)),
        scratch_shapes=[pltpu.VMEM((BT, D), jnp.float32)],
        compiler_params=pltpu.CompilerParams(
            dimension_semantics=("arbitrary",),     # depth carries activation
            vmem_limit_bytes=32 * 1024 * 1024),
    )(patches,
      params["patch_w"], params["patch_b"], params["cls"], params["pos"],
      params["ln1_w"], params["ln1_b"], params["wqkv"], params["bqkv"],
      params["wo"], params["bo"], params["ln2_w"], params["ln2_b"],
      params["w1"], params["b1"], params["w2"], params["b2"],
      params["norm_w"], params["norm_b"], params["head_w"], params["head_b"])


# ------------------------------ params & forward ----------------------------
def init_params(key):
    keys = iter(jax.random.split(key, 32))

    def nrm(shape, std=0.02):
        return (std * jax.random.normal(next(keys), shape)).astype(jnp.float32)

    def stack_bf16(shape):
        return jnp.stack([nrm(shape) for _ in range(DEPTH)],
                         axis=0).astype(jnp.bfloat16)

    head_w = jnp.pad(nrm((D, NUM_CLASSES)),
                     ((0, 0), (0, NC_PAD - NUM_CLASSES))).astype(jnp.bfloat16)

    return {
        # Conv2d(1, D, 16, 16, stride 16) == matmul of the flattened patch.
        "patch_w": nrm((P * P, D)).astype(jnp.bfloat16),
        "patch_b": nrm((1, D)),
        "cls": nrm((1, D)),
        "pos": nrm((T, D)),
        "ln1_w": jnp.ones((DEPTH, 1, D), jnp.float32),
        "ln1_b": jnp.zeros((DEPTH, 1, D), jnp.float32),
        "wqkv": stack_bf16((D, 3 * D)),
        "bqkv": jnp.zeros((DEPTH, 1, 3 * D), jnp.float32),
        "wo": stack_bf16((D, D)),
        "bo": jnp.zeros((DEPTH, 1, D), jnp.float32),
        "ln2_w": jnp.ones((DEPTH, 1, D), jnp.float32),
        "ln2_b": jnp.zeros((DEPTH, 1, D), jnp.float32),
        "w1": stack_bf16((D, MLP)),
        "b1": jnp.zeros((DEPTH, 1, MLP), jnp.float32),
        "w2": stack_bf16((MLP, D)),
        "b2": jnp.zeros((DEPTH, 1, D), jnp.float32),
        "norm_w": jnp.ones((1, D), jnp.float32),
        "norm_b": jnp.zeros((1, D), jnp.float32),
        "head_w": head_w,
        "head_b": jnp.zeros((1, NC_PAD), jnp.float32),
    }


def vit_forward(x, params):
    # x: (B, 1, IMG, IMG) NCHW.  16x16/stride-16 conv == per-patch flatten
    # (kh, kw row-major) + matmul; the matmul itself runs inside the kernel.
    bsz = x.shape[0]
    g = IMG // P
    patches = (x[:, 0]
               .reshape(bsz, g, P, g, P)
               .transpose(0, 1, 3, 2, 4)
               .reshape(bsz * NP, P * P))
    logits_padded = vit_pallas(patches, params)
    return logits_padded[:, :NUM_CLASSES]


if __name__ == "__main__":
    key = jax.random.PRNGKey(0)
    kx, kp = jax.random.split(key)
    x = jax.random.normal(kx, (B, 1, IMG, IMG), jnp.float32)
    params = init_params(kp)

    logits = jax.jit(vit_forward)(x, params)
    jax.block_until_ready(logits)
    assert logits.shape == (B, NUM_CLASSES) and logits.dtype == jnp.float32
    assert bool(jnp.all(jnp.isfinite(logits)))
    print("KERNEL_OK")
</pallas_src>

<mosaic_0001>
module attributes {stable_mosaic.version = 11 : i64} {
  func.func @_vit_kernel(%arg0: i32, %arg1: memref<8x256xf32, #tpu.memory_space<vmem>>, %arg2: memref<256x256xbf16, #tpu.memory_space<vmem>>, %arg3: memref<1x256xf32, #tpu.memory_space<vmem>>, %arg4: memref<1x256xf32, #tpu.memory_space<vmem>>, %arg5: memref<5x256xf32, #tpu.memory_space<vmem>>, %arg6: memref<1x1x256xf32, #tpu.memory_space<vmem>>, %arg7: memref<1x1x256xf32, #tpu.memory_space<vmem>>, %arg8: memref<1x256x768xbf16, #tpu.memory_space<vmem>>, %arg9: memref<1x1x768xf32, #tpu.memory_space<vmem>>, %arg10: memref<1x256x256xbf16, #tpu.memory_space<vmem>>, %arg11: memref<1x1x256xf32, #tpu.memory_space<vmem>>, %arg12: memref<1x1x256xf32, #tpu.memory_space<vmem>>, %arg13: memref<1x1x256xf32, #tpu.memory_space<vmem>>, %arg14: memref<1x256x1024xbf16, #tpu.memory_space<vmem>>, %arg15: memref<1x1x1024xf32, #tpu.memory_space<vmem>>, %arg16: memref<1x1024x256xbf16, #tpu.memory_space<vmem>>, %arg17: memref<1x1x256xf32, #tpu.memory_space<vmem>>, %arg18: memref<1x256xf32, #tpu.memory_space<vmem>>, %arg19: memref<1x256xf32, #tpu.memory_space<vmem>>, %arg20: memref<256x128xbf16, #tpu.memory_space<vmem>>, %arg21: memref<1x128xf32, #tpu.memory_space<vmem>>, %arg22: memref<2x128xf32, #tpu.memory_space<vmem>>, %arg23: memref<10x256xf32, #tpu.memory_space<vmem>>) attributes {dimension_semantics = [#tpu.dimension_semantics<arbitrary>], iteration_bounds = array<i64: 2>, scalar_prefetch = 0 : i64, scratch_operands = 1 : i64, tpu.core_type = #tpu.core_type<tc>, window_params = [{pipeline_mode = #tpu.pipeline_mode<synchronous>, transform_indices = @transform_0, window_bounds = array<i64: 8, 256>}, {pipeline_mode = #tpu.pipeline_mode<synchronous>, transform_indices = @transform_1, window_bounds = array<i64: 256, 256>}, {pipeline_mode = #tpu.pipeline_mode<synchronous>, transform_indices = @transform_2, window_bounds = array<i64: 1, 256>}, {pipeline_mode = #tpu.pipeline_mode<synchronous>, transform_indices = @transform_3, window_bounds = array<i64: 1, 256>}, {pipeline_mode = #tpu.pipeline_mode<synchronous>, transform_indices = @transform_4, window_bounds = array<i64: 5, 256>}, {transform_indices = @transform_5, window_bounds = array<i64: 1, 1, 256>}, {transform_indices = @transform_6, window_bounds = array<i64: 1, 1, 256>}, {transform_indices = @transform_7, window_bounds = array<i64: 1, 256, 768>}, {transform_indices = @transform_8, window_bounds = array<i64: 1, 1, 768>}, {transform_indices = @transform_9, window_bounds = array<i64: 1, 256, 256>}, {transform_indices = @transform_10, window_bounds = array<i64: 1, 1, 256>}, {transform_indices = @transform_11, window_bounds = array<i64: 1, 1, 256>}, {transform_indices = @transform_12, window_bounds = array<i64: 1, 1, 256>}, {transform_indices = @transform_13, window_bounds = array<i64: 1, 256, 1024>}, {transform_indices = @transform_14, window_bounds = array<i64: 1, 1, 1024>}, {transform_indices = @transform_15, window_bounds = array<i64: 1, 1024, 256>}, {transform_indices = @transform_16, window_bounds = array<i64: 1, 1, 256>}, {pipeline_mode = #tpu.pipeline_mode<synchronous>, transform_indices = @transform_17, window_bounds = array<i64: 1, 256>}, {pipeline_mode = #tpu.pipeline_mode<synchronous>, transform_indices = @transform_18, window_bounds = array<i64: 1, 256>}, {pipeline_mode = #tpu.pipeline_mode<synchronous>, transform_indices = @transform_19, window_bounds = array<i64: 256, 128>}, {pipeline_mode = #tpu.pipeline_mode<synchronous>, transform_indices = @transform_20, window_bounds = array<i64: 1, 128>}, {pipeline_mode = #tpu.pipeline_mode<synchronous>, transform_indices = @transform_21, window_bounds = array<i64: 2, 128>}]} {
    %c0_i32 = arith.constant 0 : i32
    %0 = arith.cmpi eq, %arg0, %c0_i32 : i32
    %1 = arith.extui %0 : i1 to i32
    %c0_i32_0 = arith.constant 0 : i32
    %2 = arith.cmpi ne, %1, %c0_i32_0 : i32
    scf.if %2 {
      %c0_88 = arith.constant 0 : index
      %c0_89 = arith.constant 0 : index
      %215 = vector.load %arg1[%c0_88, %c0_89] : memref<8x256xf32, #tpu.memory_space<vmem>>, vector<8x256xf32>
      %216 = arith.truncf %215 : vector<8x256xf32> to vector<8x256xbf16>
      %c0_90 = arith.constant 0 : index
      %c0_91 = arith.constant 0 : index
      %217 = vector.load %arg2[%c0_90, %c0_91] : memref<256x256xbf16, #tpu.memory_space<vmem>>, vector<256x256xbf16>
      %cst_92 = arith.constant dense<0.000000e+00> : vector<8x256xf32>
      %218 = tpu.matmul %216, %217, %cst_92 {dimension_numbers = #tpu.dot_dimension_numbers<[1], [0], [0], [1], [0, 0, 1, 1], [], []>} : vector<8x256xbf16>, vector<256x256xbf16>, vector<8x256xf32> -> vector<8x256xf32>
      %c0_93 = arith.constant 0 : index
      %c0_94 = arith.constant 0 : index
      %219 = vector.load %arg3[%c0_93, %c0_94] : memref<1x256xf32, #tpu.memory_space<vmem>>, vector<1x256xf32>
      %220 = vector.broadcast %219 : vector<1x256xf32> to vector<8x256xf32>
      %221 = arith.addf %218, %220 : vector<8x256xf32>
      %c0_95 = arith.constant 0 : index
      %c0_96 = arith.constant 0 : index
      %222 = vector.load %arg4[%c0_95, %c0_96] : memref<1x256xf32, #tpu.memory_space<vmem>>, vector<1x256xf32>
      %c0_97 = arith.constant 0 : index
      %c0_98 = arith.constant 0 : index
      %223 = vector.load %arg5[%c0_97, %c0_98] : memref<5x256xf32, #tpu.memory_space<vmem>>, vector<1x256xf32>
      %224 = arith.addf %222, %223 : vector<1x256xf32>
      %c0_99 = arith.constant 0 : index
      %c0_100 = arith.constant 0 : index
      %225 = vector.load %arg23[%c0_99, %c0_100] : memref<10x256xf32, #tpu.memory_space<vmem>>, vector<1x256xf32>
      tpu.vector_store %arg23[%c0_99, %c0_100], %224 {strides = array<i32>} : memref<10x256xf32, #tpu.memory_space<vmem>>, vector<1x256xf32>,
      %226 = vector.extract_strided_slice %221 {offsets = [0, 0], sizes = [4, 256], strides = [1, 1]} : vector<8x256xf32> to vector<4x256xf32>
      %c1 = arith.constant 1 : index
      %c0_101 = arith.constant 0 : index
      %227 = vector.load %arg5[%c1, %c0_101] : memref<5x256xf32, #tpu.memory_space<vmem>>, vector<4x256xf32>
      %228 = arith.addf %226, %227 : vector<4x256xf32>
      %c1_102 = arith.constant 1 : index
      %c0_103 = arith.constant 0 : index
      %229 = vector.load %arg23[%c1_102, %c0_103] : memref<10x256xf32, #tpu.memory_space<vmem>>, vector<4x256xf32>
      tpu.vector_store %arg23[%c1_102, %c0_103], %228 {strides = array<i32>} : memref<10x256xf32, #tpu.memory_space<vmem>>, vector<4x256xf32>,
      %c5_104 = arith.constant 5 : index
      %c0_105 = arith.constant 0 : index
      %230 = vector.load %arg23[%c5_104, %c0_105] : memref<10x256xf32, #tpu.memory_space<vmem>>, vector<1x256xf32>
      tpu.vector_store %arg23[%c5_104, %c0_105], %224 {strides = array<i32>} : memref<10x256xf32, #tpu.memory_space<vmem>>, vector<1x256xf32>,
      %231 = vector.extract_strided_slice %221 {offsets = [4, 0], sizes = [4, 256], strides = [1, 1]} : vector<8x256xf32> to vector<4x256xf32>
      %c1_106 = arith.constant 1 : index
      %c0_107 = arith.constant 0 : index
      %232 = vector.load %arg5[%c1_106, %c0_107] : memref<5x256xf32, #tpu.memory_space<vmem>>, vector<4x256xf32>
      %233 = arith.addf %231, %232 : vector<4x256xf32>
      %c6 = arith.constant 6 : index
      %c0_108 = arith.constant 0 : index
      %234 = vector.load %arg23[%c6, %c0_108] : memref<10x256xf32, #tpu.memory_space<vmem>>, vector<4x256xf32>
      tpu.vector_store %arg23[%c6, %c0_108], %233 {strides = array<i32>} : memref<10x256xf32, #tpu.memory_space<vmem>>, vector<4x256xf32>,
    } else {
    }
    %c0 = arith.constant 0 : index
    %c0_1 = arith.constant 0 : index
    %c0_2 = arith.constant 0 : index
    %3 = vector.load %arg6[%c0, %c0_1, %c0_2] : memref<1x1x256xf32, #tpu.memory_space<vmem>>, vector<1x1x256xf32>
    %4 = vector.shape_cast %3 : vector<1x1x256xf32> to vector<1x256xf32>
    %c0_3 = arith.constant 0 : index
    %c0_4 = arith.constant 0 : index
    %c0_5 = arith.constant 0 : index
    %5 = vector.load %arg7[%c0_3, %c0_4, %c0_5] : memref<1x1x256xf32, #tpu.memory_space<vmem>>, vector<1x1x256xf32>
    %6 = vector.shape_cast %5 : vector<1x1x256xf32> to vector<1x256xf32>
    %c0_6 = arith.constant 0 : index
    %c0_7 = arith.constant 0 : index
    %c0_8 = arith.constant 0 : index
    %7 = vector.load %arg8[%c0_6, %c0_7, %c0_8] : memref<1x256x768xbf16, #tpu.memory_space<vmem>>, vector<1x256x768xbf16>
    %8 = vector.shape_cast %7 : vector<1x256x768xbf16> to vector<256x768xbf16>
    %c0_9 = arith.constant 0 : index
    %c0_10 = arith.constant 0 : index
    %c0_11 = arith.constant 0 : index
    %9 = vector.load %arg9[%c0_9, %c0_10, %c0_11] : memref<1x1x768xf32, #tpu.memory_space<vmem>>, vector<1x1x768xf32>
    %10 = vector.shape_cast %9 : vector<1x1x768xf32> to vector<1x768xf32>
    %c0_12 = arith.constant 0 : index
    %c0_13 = arith.constant 0 : index
    %c0_14 = arith.constant 0 : index
    %11 = vector.load %arg10[%c0_12, %c0_13, %c0_14] : memref<1x256x256xbf16, #tpu.memory_space<vmem>>, vector<1x256x256xbf16>
    %12 = vector.shape_cast %11 : vector<1x256x256xbf16> to vector<256x256xbf16>
    %c0_15 = arith.constant 0 : index
    %c0_16 = arith.constant 0 : index
    %c0_17 = arith.constant 0 : index
    %13 = vector.load %arg11[%c0_15, %c0_16, %c0_17] : memref<1x1x256xf32, #tpu.memory_space<vmem>>, vector<1x1x256xf32>
    %14 = vector.shape_cast %13 : vector<1x1x256xf32> to vector<1x256xf32>
    %c0_18 = arith.constant 0 : index
    %c0_19 = arith.constant 0 : index
    %c0_20 = arith.constant 0 : index
    %15 = vector.load %arg12[%c0_18, %c0_19, %c0_20] : memref<1x1x256xf32, #tpu.memory_space<vmem>>, vector<1x1x256xf32>
    %16 = vector.shape_cast %15 : vector<1x1x256xf32> to vector<1x256xf32>
    %c0_21 = arith.constant 0 : index
    %c0_22 = arith.constant 0 : index
    %c0_23 = arith.constant 0 : index
    %17 = vector.load %arg13[%c0_21, %c0_22, %c0_23] : memref<1x1x256xf32, #tpu.memory_space<vmem>>, vector<1x1x256xf32>
    %18 = vector.shape_cast %17 : vector<1x1x256xf32> to vector<1x256xf32>
    %c0_24 = arith.constant 0 : index
    %c0_25 = arith.constant 0 : index
    %c0_26 = arith.constant 0 : index
    %19 = vector.load %arg14[%c0_24, %c0_25, %c0_26] : memref<1x256x1024xbf16, #tpu.memory_space<vmem>>, vector<1x256x1024xbf16>
    %20 = vector.shape_cast %19 : vector<1x256x1024xbf16> to vector<256x1024xbf16>
    %c0_27 = arith.constant 0 : index
    %c0_28 = arith.constant 0 : index
    %c0_29 = arith.constant 0 : index
    %21 = vector.load %arg15[%c0_27, %c0_28, %c0_29] : memref<1x1x1024xf32, #tpu.memory_space<vmem>>, vector<1x1x1024xf32>
    %22 = vector.shape_cast %21 : vector<1x1x1024xf32> to vector<1x1024xf32>
    %c0_30 = arith.constant 0 : index
    %c0_31 = arith.constant 0 : index
    %c0_32 = arith.constant 0 : index
    %23 = vector.load %arg16[%c0_30, %c0_31, %c0_32] : memref<1x1024x256xbf16, #tpu.memory_space<vmem>>, vector<1x1024x256xbf16>
    %24 = vector.shape_cast %23 : vector<1x1024x256xbf16> to vector<1024x256xbf16>
    %c0_33 = arith.constant 0 : index
    %c0_34 = arith.constant 0 : index
    %c0_35 = arith.constant 0 : index
    %25 = vector.load %arg17[%c0_33, %c0_34, %c0_35] : memref<1x1x256xf32, #tpu.memory_space<vmem>>, vector<1x1x256xf32>
    %26 = vector.shape_cast %25 : vector<1x1x256xf32> to vector<1x256xf32>
    %c0_36 = arith.constant 0 : index
    %c0_37 = arith.constant 0 : index
    %27 = vector.load %arg23[%c0_36, %c0_37] : memref<10x256xf32, #tpu.memory_space<vmem>>, vector<10x256xf32>
    %cst = arith.constant dense<0.000000e+00> : vector<10xf32>
    %28 = vector.multi_reduction <add>, %27, %cst [1] : vector<10x256xf32> to vector<10xf32>
    %29 = vector.shape_cast %28 : vector<10xf32> to vector<10x1xf32>
    %cst_38 = arith.constant 2.560000e+02 : f32
    %30 = vector.broadcast %cst_38 : f32 to vector<10x1xf32>
    %31 = arith.divf %29, %30 : vector<10x1xf32>
    %32 = vector.broadcast %31 : vector<10x1xf32> to vector<10x256xf32>
    %33 = arith.subf %27, %32 : vector<10x256xf32>
    %34 = arith.mulf %33, %33 : vector<10x256xf32>
    %cst_39 = arith.constant dense<0.000000e+00> : vector<10xf32>
    %35 = vector.multi_reduction <add>, %34, %cst_39 [1] : vector<10x256xf32> to vector<10xf32>
    %36 = vector.shape_cast %35 : vector<10xf32> to vector<10x1xf32>
    %cst_40 = arith.constant 2.560000e+02 : f32
    %37 = vector.broadcast %cst_40 : f32 to vector<10x1xf32>
    %38 = arith.divf %36, %37 : vector<10x1xf32>
    %39 = vector.broadcast %31 : vector<10x1xf32> to vector<10x256xf32>
    %40 = arith.subf %27, %39 : vector<10x256xf32>
    %cst_41 = arith.constant 9.99999997E-7 : f32
    %41 = vector.broadcast %cst_41 : f32 to vector<10x1xf32>
    %42 = arith.addf %38, %41 : vector<10x1xf32>
    %43 = math.rsqrt %42 : vector<10x1xf32>
    %44 = vector.broadcast %43 : vector<10x1xf32> to vector<10x256xf32>
    %45 = arith.mulf %40, %44 : vector<10x256xf32>
    %46 = vector.broadcast %4 : vector<1x256xf32> to vector<10x256xf32>
    %47 = arith.mulf %45, %46 : vector<10x256xf32>
    %48 = vector.broadcast %6 : vector<1x256xf32> to vector<10x256xf32>
    %49 = arith.addf %47, %48 : vector<10x256xf32>
    %50 = arith.truncf %49 : vector<10x256xf32> to vector<10x256xbf16>
    %cst_42 = arith.constant dense<0.000000e+00> : vector<10x768xf32>
    %51 = tpu.matmul %50, %8, %cst_42 {dimension_numbers = #tpu.dot_dimension_numbers<[1], [0], [0], [1], [0, 0, 1, 1], [], []>} : vector<10x256xbf16>, vector<256x768xbf16>, vector<10x768xf32> -> vector<10x768xf32>
    %52 = vector.broadcast %10 : vector<1x768xf32> to vector<10x768xf32>
    %53 = arith.addf %51, %52 : vector<10x768xf32>
    %cst_43 = arith.constant 0.000000e+00 : f32
    %54 = vector.broadcast %cst_43 : f32 to vector<5x256xf32>
    %55 = vector.extract_strided_slice %53 {offsets = [0, 0], sizes = [5, 128], strides = [1, 1]} : vector<10x768xf32> to vector<5x128xf32>
    %cst_44 = arith.constant 0.0883883461 : f32
    %56 = vector.broadcast %cst_44 : f32 to vector<5x128xf32>
    %57 = arith.mulf %55, %56 : vector<5x128xf32>
    %58 = vector.extract_strided_slice %53 {offsets = [0, 256], sizes = [5, 128], strides = [1, 1]} : vector<10x768xf32> to vector<5x128xf32>
    %59 = vector.extract_strided_slice %53 {offsets = [0, 512], sizes = [5, 128], strides = [1, 1]} : vector<10x768xf32> to vector<5x128xf32>
    %60 = arith.truncf %57 : vector<5x128xf32> to vector<5x128xbf16>
    %61 = arith.truncf %58 : vector<5x128xf32> to vector<5x128xbf16>
    %cst_45 = arith.constant dense<0.000000e+00> : vector<5x5xf32>
    %62 = tpu.matmul %60, %61, %cst_45 {dimension_numbers = #tpu.dot_dimension_numbers<[1], [1], [0], [0], [0, 0, 1, 0], [], []>} : vector<5x128xbf16>, vector<5x128xbf16>, vector<5x5xf32> -> vector<5x5xf32>
    %cst_46 = arith.constant dense<0xFF800000> : vector<5xf32>
    %63 = vector.multi_reduction <maximumf>, %62, %cst_46 [1] : vector<5x5xf32> to vector<5xf32>
    %64 = vector.shape_cast %63 : vector<5xf32> to vector<5x1xf32>
    %65 = vector.broadcast %64 : vector<5x1xf32> to vector<5x5xf32>
    %66 = arith.subf %62, %65 : vector<5x5xf32>
    %67 = math.exp %66 : vector<5x5xf32>
    %cst_47 = arith.constant dense<0.000000e+00> : vector<5xf32>
    %68 = vector.multi_reduction <add>, %67, %cst_47 [1] : vector<5x5xf32> to vector<5xf32>
    %69 = vector.shape_cast %68 : vector<5xf32> to vector<5x1xf32>
    %70 = tpu.reciprocal %69 {approx = true} : vector<5x1xf32> -> vector<5x1xf32>
    %71 = vector.broadcast %70 : vector<5x1xf32> to vector<5x5xf32>
    %72 = arith.mulf %67, %71 : vector<5x5xf32>
    %73 = arith.truncf %72 : vector<5x5xf32> to vector<5x5xbf16>
    %74 = arith.truncf %59 : vector<5x128xf32> to vector<5x128xbf16>
    %cst_48 = arith.constant dense<0.000000e+00> : vector<5x128xf32>
    %75 = tpu.matmul %73, %74, %cst_48 {dimension_numbers = #tpu.dot_dimension_numbers<[1], [0], [0], [1], [0, 0, 1, 1], [], []>} : vector<5x5xbf16>, vector<5x128xbf16>, vector<5x128xf32> -> vector<5x128xf32>
    %76 = arith.truncf %75 : vector<5x128xf32> to vector<5x128xbf16>
    %77 = vector.extract_strided_slice %12 {offsets = [0, 0], sizes = [128, 256], strides = [1, 1]} : vector<256x256xbf16> to vector<128x256xbf16>
    %cst_49 = arith.constant dense<0.000000e+00> : vector<5x256xf32>
    %78 = tpu.matmul %76, %77, %cst_49 {dimension_numbers = #tpu.dot_dimension_numbers<[1], [0], [0], [1], [0, 0, 1, 1], [], []>} : vector<5x128xbf16>, vector<128x256xbf16>, vector<5x256xf32> -> vector<5x256xf32>
    %79 = arith.addf %54, %78 : vector<5x256xf32>
    %80 = vector.extract_strided_slice %53 {offsets = [0, 128], sizes = [5, 128], strides = [1, 1]} : vector<10x768xf32> to vector<5x128xf32>
    %cst_50 = arith.constant 0.0883883461 : f32
    %81 = vector.broadcast %cst_50 : f32 to vector<5x128xf32>
    %82 = arith.mulf %80, %81 : vector<5x128xf32>
    %83 = vector.extract_strided_slice %53 {offsets = [0, 384], sizes = [5, 128], strides = [1, 1]} : vector<10x768xf32> to vector<5x128xf32>
    %84 = vector.extract_strided_slice %53 {offsets = [0, 640], sizes = [5, 128], strides = [1, 1]} : vector<10x768xf32> to vector<5x128xf32>
    %85 = arith.truncf %82 : vector<5x128xf32> to vector<5x128xbf16>
    %86 = arith.truncf %83 : vector<5x128xf32> to vector<5x128xbf16>
    %cst_51 = arith.constant dense<0.000000e+00> : vector<5x5xf32>
    %87 = tpu.matmul %85, %86, %cst_51 {dimension_numbers = #tpu.dot_dimension_numbers<[1], [1], [0], [0], [0, 0, 1, 0], [], []>} : vector<5x128xbf16>, vector<5x128xbf16>, vector<5x5xf32> -> vector<5x5xf32>
    %cst_52 = arith.constant dense<0xFF800000> : vector<5xf32>
    %88 = vector.multi_reduction <maximumf>, %87, %cst_52 [1] : vector<5x5xf32> to vector<5xf32>
    %89 = vector.shape_cast %88 : vector<5xf32> to vector<5x1xf32>
    %90 = vector.broadcast %89 : vector<5x1xf32> to vector<5x5xf32>
    %91 = arith.subf %87, %90 : vector<5x5xf32>
    %92 = math.exp %91 : vector<5x5xf32>
    %cst_53 = arith.constant dense<0.000000e+00> : vector<5xf32>
    %93 = vector.multi_reduction <add>, %92, %cst_53 [1] : vector<5x5xf32> to vector<5xf32>
    %94 = vector.shape_cast %93 : vector<5xf32> to vector<5x1xf32>
    %95 = tpu.reciprocal %94 {approx = true} : vector<5x1xf32> -> vector<5x1xf32>
    %96 = vector.broadcast %95 : vector<5x1xf32> to vector<5x5xf32>
    %97 = arith.mulf %92, %96 : vector<5x5xf32>
    %98 = arith.truncf %97 : vector<5x5xf32> to vector<5x5xbf16>
    %99 = arith.truncf %84 : vector<5x128xf32> to vector<5x128xbf16>
    %cst_54 = arith.constant dense<0.000000e+00> : vector<5x128xf32>
    %100 = tpu.matmul %98, %99, %cst_54 {dimension_numbers = #tpu.dot_dimension_numbers<[1], [0], [0], [1], [0, 0, 1, 1], [], []>} : vector<5x5xbf16>, vector<5x128xbf16>, vector<5x128xf32> -> vector<5x128xf32>
    %101 = arith.truncf %100 : vector<5x128xf32> to vector<5x128xbf16>
    %102 = vector.extract_strided_slice %12 {offsets = [128, 0], sizes = [128, 256], strides = [1, 1]} : vector<256x256xbf16> to vector<128x256xbf16>
    %cst_55 = arith.constant dense<0.000000e+00> : vector<5x256xf32>
    %103 = tpu.matmul %101, %102, %cst_55 {dimension_numbers = #tpu.dot_dimension_numbers<[1], [0], [0], [1], [0, 0, 1, 1], [], []>} : vector<5x128xbf16>, vector<128x256xbf16>, vector<5x256xf32> -> vector<5x256xf32>
    %104 = arith.addf %79, %103 : vector<5x256xf32>
    %105 = vector.extract_strided_slice %27 {offsets = [0, 0], sizes = [5, 256], strides = [1, 1]} : vector<10x256xf32> to vector<5x256xf32>
    %106 = arith.addf %105, %104 : vector<5x256xf32>
    %107 = vector.broadcast %14 : vector<1x256xf32> to vector<5x256xf32>
    %108 = arith.addf %106, %107 : vector<5x256xf32>
    %c0_56 = arith.constant 0 : index
    %c0_57 = arith.constant 0 : index
    %109 = vector.load %arg23[%c0_56, %c0_57] : memref<10x256xf32, #tpu.memory_space<vmem>>, vector<5x256xf32>
    tpu.vector_store %arg23[%c0_56, %c0_57], %108 {strides = array<i32>} : memref<10x256xf32, #tpu.memory_space<vmem>>, vector<5x256xf32>,
    %cst_58 = arith.constant 0.000000e+00 : f32
    %110 = vector.broadcast %cst_58 : f32 to vector<5x256xf32>
    %111 = vector.extract_strided_slice %53 {offsets = [5, 0], sizes = [5, 128], strides = [1, 1]} : vector<10x768xf32> to vector<5x128xf32>
    %cst_59 = arith.constant 0.0883883461 : f32
    %112 = vector.broadcast %cst_59 : f32 to vector<5x128xf32>
    %113 = arith.mulf %111, %112 : vector<5x128xf32>
    %114 = vector.extract_strided_slice %53 {offsets = [5, 256], sizes = [5, 128], strides = [1, 1]} : vector<10x768xf32> to vector<5x128xf32>
    %115 = vector.extract_strided_slice %53 {offsets = [5, 512], sizes = [5, 128], strides = [1, 1]} : vector<10x768xf32> to vector<5x128xf32>
    %116 = arith.truncf %113 : vector<5x128xf32> to vector<5x128xbf16>
    %117 = arith.truncf %114 : vector<5x128xf32> to vector<5x128xbf16>
    %cst_60 = arith.constant dense<0.000000e+00> : vector<5x5xf32>
    %118 = tpu.matmul %116, %117, %cst_60 {dimension_numbers = #tpu.dot_dimension_numbers<[1], [1], [0], [0], [0, 0, 1, 0], [], []>} : vector<5x128xbf16>, vector<5x128xbf16>, vector<5x5xf32> -> vector<5x5xf32>
    %cst_61 = arith.constant dense<0xFF800000> : vector<5xf32>
    %119 = vector.multi_reduction <maximumf>, %118, %cst_61 [1] : vector<5x5xf32> to vector<5xf32>
    %120 = vector.shape_cast %119 : vector<5xf32> to vector<5x1xf32>
    %121 = vector.broadcast %120 : vector<5x1xf32> to vector<5x5xf32>
    %122 = arith.subf %118, %121 : vector<5x5xf32>
    %123 = math.exp %122 : vector<5x5xf32>
    %cst_62 = arith.constant dense<0.000000e+00> : vector<5xf32>
    %124 = vector.multi_reduction <add>, %123, %cst_62 [1] : vector<5x5xf32> to vector<5xf32>
    %125 = vector.shape_cast %124 : vector<5xf32> to vector<5x1xf32>
    %126 = tpu.reciprocal %125 {approx = true} : vector<5x1xf32> -> vector<5x1xf32>
    %127 = vector.broadcast %126 : vector<5x1xf32> to vector<5x5xf32>
    %128 = arith.mulf %123, %127 : vector<5x5xf32>
    %129 = arith.truncf %128 : vector<5x5xf32> to vector<5x5xbf16>
    %130 = arith.truncf %115 : vector<5x128xf32> to vector<5x128xbf16>
    %cst_63 = arith.constant dense<0.000000e+00> : vector<5x128xf32>
    %131 = tpu.matmul %129, %130, %cst_63 {dimension_numbers = #tpu.dot_dimension_numbers<[1], [0], [0], [1], [0, 0, 1, 1], [], []>} : vector<5x5xbf16>, vector<5x128xbf16>, vector<5x128xf32> -> vector<5x128xf32>
    %132 = arith.truncf %131 : vector<5x128xf32> to vector<5x128xbf16>
    %133 = vector.extract_strided_slice %12 {offsets = [0, 0], sizes = [128, 256], strides = [1, 1]} : vector<256x256xbf16> to vector<128x256xbf16>
    %cst_64 = arith.constant dense<0.000000e+00> : vector<5x256xf32>
    %134 = tpu.matmul %132, %133, %cst_64 {dimension_numbers = #tpu.dot_dimension_numbers<[1], [0], [0], [1], [0, 0, 1, 1], [], []>} : vector<5x128xbf16>, vector<128x256xbf16>, vector<5x256xf32> -> vector<5x256xf32>
    %135 = arith.addf %110, %134 : vector<5x256xf32>
    %136 = vector.extract_strided_slice %53 {offsets = [5, 128], sizes = [5, 128], strides = [1, 1]} : vector<10x768xf32> to vector<5x128xf32>
    %cst_65 = arith.constant 0.0883883461 : f32
    %137 = vector.broadcast %cst_65 : f32 to vector<5x128xf32>
    %138 = arith.mulf %136, %137 : vector<5x128xf32>
    %139 = vector.extract_strided_slice %53 {offsets = [5, 384], sizes = [5, 128], strides = [1, 1]} : vector<10x768xf32> to vector<5x128xf32>
    %140 = vector.extract_strided_slice %53 {offsets = [5, 640], sizes = [5, 128], strides = [1, 1]} : vector<10x768xf32> to vector<5x128xf32>
    %141 = arith.truncf %138 : vector<5x128xf32> to vector<5x128xbf16>
    %142 = arith.truncf %139 : vector<5x128xf32> to vector<5x128xbf16>
    %cst_66 = arith.constant dense<0.000000e+00> : vector<5x5xf32>
    %143 = tpu.matmul %141, %142, %cst_66 {dimension_numbers = #tpu.dot_dimension_numbers<[1], [1], [0], [0], [0, 0, 1, 0], [], []>} : vector<5x128xbf16>, vector<5x128xbf16>, vector<5x5xf32> -> vector<5x5xf32>
    %cst_67 = arith.constant dense<0xFF800000> : vector<5xf32>
    %144 = vector.multi_reduction <maximumf>, %143, %cst_67 [1] : vector<5x5xf32> to vector<5xf32>
    %145 = vector.shape_cast %144 : vector<5xf32> to vector<5x1xf32>
    %146 = vector.broadcast %145 : vector<5x1xf32> to vector<5x5xf32>
    %147 = arith.subf %143, %146 : vector<5x5xf32>
    %148 = math.exp %147 : vector<5x5xf32>
    %cst_68 = arith.constant dense<0.000000e+00> : vector<5xf32>
    %149 = vector.multi_reduction <add>, %148, %cst_68 [1] : vector<5x5xf32> to vector<5xf32>
    %150 = vector.shape_cast %149 : vector<5xf32> to vector<5x1xf32>
    %151 = tpu.reciprocal %150 {approx = true} : vector<5x1xf32> -> vector<5x1xf32>
    %152 = vector.broadcast %151 : vector<5x1xf32> to vector<5x5xf32>
    %153 = arith.mulf %148, %152 : vector<5x5xf32>
    %154 = arith.truncf %153 : vector<5x5xf32> to vector<5x5xbf16>
    %155 = arith.truncf %140 : vector<5x128xf32> to vector<5x128xbf16>
    %cst_69 = arith.constant dense<0.000000e+00> : vector<5x128xf32>
    %156 = tpu.matmul %154, %155, %cst_69 {dimension_numbers = #tpu.dot_dimension_numbers<[1], [0], [0], [1], [0, 0, 1, 1], [], []>} : vector<5x5xbf16>, vector<5x128xbf16>, vector<5x128xf32> -> vector<5x128xf32>
    %157 = arith.truncf %156 : vector<5x128xf32> to vector<5x128xbf16>
    %158 = vector.extract_strided_slice %12 {offsets = [128, 0], sizes = [128, 256], strides = [1, 1]} : vector<256x256xbf16> to vector<128x256xbf16>
    %cst_70 = arith.constant dense<0.000000e+00> : vector<5x256xf32>
    %159 = tpu.matmul %157, %158, %cst_70 {dimension_numbers = #tpu.dot_dimension_numbers<[1], [0], [0], [1], [0, 0, 1, 1], [], []>} : vector<5x128xbf16>, vector<128x256xbf16>, vector<5x256xf32> -> vector<5x256xf32>
    %160 = arith.addf %135, %159 : vector<5x256xf32>
    %161 = vector.extract_strided_slice %27 {offsets = [5, 0], sizes = [5, 256], strides = [1, 1]} : vector<10x256xf32> to vector<5x256xf32>
    %162 = arith.addf %161, %160 : vector<5x256xf32>
    %163 = vector.broadcast %14 : vector<1x256xf32> to vector<5x256xf32>
    %164 = arith.addf %162, %163 : vector<5x256xf32>
    %c5 = arith.constant 5 : index
    %c0_71 = arith.constant 0 : index
    %165 = vector.load %arg23[%c5, %c0_71] : memref<10x256xf32, #tpu.memory_space<vmem>>, vector<5x256xf32>
    tpu.vector_store %arg23[%c5, %c0_71], %164 {strides = array<i32>} : memref<10x256xf32, #tpu.memory_space<vmem>>, vector<5x256xf32>,
    %c0_72 = arith.constant 0 : index
    %c0_73 = arith.constant 0 : index
    %166 = vector.load %arg23[%c0_72, %c0_73] : memref<10x256xf32, #tpu.memory_space<vmem>>, vector<10x256xf32>
    %cst_74 = arith.constant dense<0.000000e+00> : vector<10xf32>
    %167 = vector.multi_reduction <add>, %166, %cst_74 [1] : vector<10x256xf32> to vector<10xf32>
    %168 = vector.shape_cast %167 : vector<10xf32> to vector<10x1xf32>
    %cst_75 = arith.constant 2.560000e+02 : f32
    %169 = vector.broadcast %cst_75 : f32 to vector<10x1xf32>
    %170 = arith.divf %168, %169 : vector<10x1xf32>
    %171 = vector.broadcast %170 : vector<10x1xf32> to vector<10x256xf32>
    %172 = arith.subf %166, %171 : vector<10x256xf32>
    %173 = arith.mulf %172, %172 : vector<10x256xf32>
    %cst_76 = arith.constant dense<0.000000e+00> : vector<10xf32>
    %174 = vector.multi_reduction <add>, %173, %cst_76 [1] : vector<10x256xf32> to vector<10xf32>
    %175 = vector.shape_cast %174 : vector<10xf32> to vector<10x1xf32>
    %cst_77 = arith.constant 2.560000e+02 : f32
    %176 = vector.broadcast %cst_77 : f32 to vector<10x1xf32>
    %177 = arith.divf %175, %176 : vector<10x1xf32>
    %178 = vector.broadcast %170 : vector<10x1xf32> to vector<10x256xf32>
    %179 = arith.subf %166, %178 : vector<10x256xf32>
    %cst_78 = arith.constant 9.99999997E-7 : f32
    %180 = vector.broadcast %cst_78 : f32 to vector<10x1xf32>
    %181 = arith.addf %177, %180 : vector<10x1xf32>
    %182 = math.rsqrt %181 : vector<10x1xf32>
    %183 = vector.broadcast %182 : vector<10x1xf32> to vector<10x256xf32>
    %184 = arith.mulf %179, %183 : vector<10x256xf32>
    %185 = vector.broadcast %16 : vector<1x256xf32> to vector<10x256xf32>
    %186 = arith.mulf %184, %185 : vector<10x256xf32>
    %187 = vector.broadcast %18 : vector<1x256xf32> to vector<10x256xf32>
    %188 = arith.addf %186, %187 : vector<10x256xf32>
    %189 = arith.truncf %188 : vector<10x256xf32> to vector<10x256xbf16>
    %cst_79 = arith.constant dense<0.000000e+00> : vector<10x1024xf32>
    %190 = tpu.matmul %189, %20, %cst_79 {dimension_numbers = #tpu.dot_dimension_numbers<[1], [0], [0], [1], [0, 0, 1, 1], [], []>} : vector<10x256xbf16>, vector<256x1024xbf16>, vector<10x1024xf32> -> vector<10x1024xf32>
    %191 = vector.broadcast %22 : vector<1x1024xf32> to vector<10x1024xf32>
    %192 = arith.addf %190, %191 : vector<10x1024xf32>
    %cst_80 = arith.constant 5.000000e-01 : f32
    %193 = vector.broadcast %cst_80 : f32 to vector<10x1024xf32>
    %194 = arith.mulf %193, %192 : vector<10x1024xf32>
    %cst_81 = arith.constant 4.471500e-02 : f32
    %195 = vector.broadcast %cst_81 : f32 to vector<10x1024xf32>
    %196 = arith.mulf %195, %192 : vector<10x1024xf32>
    %197 = arith.mulf %196, %192 : vector<10x1024xf32>
    %198 = arith.mulf %197, %192 : vector<10x1024xf32>
    %199 = arith.addf %192, %198 : vector<10x1024xf32>
    %cst_82 = arith.constant 0.797884583 : f32
    %200 = vector.broadcast %cst_82 : f32 to vector<10x1024xf32>
    %201 = arith.mulf %200, %199 : vector<10x1024xf32>
    %202 = math.tanh %201 : vector<10x1024xf32>
    %cst_83 = arith.constant 1.000000e+00 : f32
    %203 = vector.broadcast %cst_83 : f32 to vector<10x1024xf32>
    %204 = arith.addf %203, %202 : vector<10x1024xf32>
    %205 = arith.mulf %194, %204 : vector<10x1024xf32>
    %206 = arith.truncf %205 : vector<10x1024xf32> to vector<10x1024xbf16>
    %cst_84 = arith.constant dense<0.000000e+00> : vector<10x256xf32>
    %207 = tpu.matmul %206, %24, %cst_84 {dimension_numbers = #tpu.dot_dimension_numbers<[1], [0], [0], [1], [0, 0, 1, 1], [], []>} : vector<10x1024xbf16>, vector<1024x256xbf16>, vector<10x256xf32> -> vector<10x256xf32>
    %208 = arith.addf %166, %207 : vector<10x256xf32>
    %209 = vector.broadcast %26 : vector<1x256xf32> to vector<10x256xf32>
    %210 = arith.addf %208, %209 : vector<10x256xf32>
    %c0_85 = arith.constant 0 : index
    %c0_86 = arith.constant 0 : index
    %211 = vector.load %arg23[%c0_85, %c0_86] : memref<10x256xf32, #tpu.memory_space<vmem>>, vector<10x256xf32>
    tpu.vector_store %arg23[%c0_85, %c0_86], %210 {strides = array<i32>} : memref<10x256xf32, #tpu.memory_space<vmem>>, vector<10x256xf32>,
    %c1_i32 = arith.constant 1 : i32
    %212 = arith.cmpi eq, %arg0, %c1_i32 : i32
    %213 = arith.extui %212 : i1 to i32
    %c0_i32_87 = arith.constant 0 : i32
    %214 = arith.cmpi ne, %213, %c0_i32_87 : i32
    scf.if %214 {
      %c0_88 = arith.constant 0 : index
      %c0_89 = arith.constant 0 : index
      %215 = vector.load %arg23[%c0_88, %c0_89] : memref<10x256xf32, #tpu.memory_space<vmem>>, vector<1x256xf32>
      %c0_90 = arith.constant 0 : index
      %c0_91 = arith.constant 0 : index
      %216 = vector.load %arg18[%c0_90, %c0_91] : memref<1x256xf32, #tpu.memory_space<vmem>>, vector<1x256xf32>
      %c0_92 = arith.constant 0 : index
      %c0_93 = arith.constant 0 : index
      %217 = vector.load %arg19[%c0_92, %c0_93] : memref<1x256xf32, #tpu.memory_space<vmem>>, vector<1x256xf32>
      %cst_94 = arith.constant dense<0.000000e+00> : vector<1xf32>
      %218 = vector.multi_reduction <add>, %215, %cst_94 [1] : vector<1x256xf32> to vector<1xf32>
      %219 = vector.shape_cast %218 : vector<1xf32> to vector<1x1xf32>
      %cst_95 = arith.constant 2.560000e+02 : f32
      %220 = vector.broadcast %cst_95 : f32 to vector<1x1xf32>
      %221 = arith.divf %219, %220 : vector<1x1xf32>
      %222 = vector.broadcast %221 : vector<1x1xf32> to vector<1x256xf32>
      %223 = arith.subf %215, %222 : vector<1x256xf32>
      %224 = arith.mulf %223, %223 : vector<1x256xf32>
      %cst_96 = arith.constant dense<0.000000e+00> : vector<1xf32>
      %225 = vector.multi_reduction <add>, %224, %cst_96 [1] : vector<1x256xf32> to vector<1xf32>
      %226 = vector.shape_cast %225 : vector<1xf32> to vector<1x1xf32>
      %cst_97 = arith.constant 2.560000e+02 : f32
      %227 = vector.broadcast %cst_97 : f32 to vector<1x1xf32>
      %228 = arith.divf %226, %227 : vector<1x1xf32>
      %229 = vector.broadcast %221 : vector<1x1xf32> to vector<1x256xf32>
      %230 = arith.subf %215, %229 : vector<1x256xf32>
      %cst_98 = arith.constant 9.99999997E-7 : f32
      %231 = vector.broadcast %cst_98 : f32 to vector<1x1xf32>
      %232 = arith.addf %228, %231 : vector<1x1xf32>
      %233 = math.rsqrt %232 : vector<1x1xf32>
      %234 = vector.broadcast %233 : vector<1x1xf32> to vector<1x256xf32>
      %235 = arith.mulf %230, %234 : vector<1x256xf32>
      %236 = arith.mulf %235, %216 : vector<1x256xf32>
      %237 = arith.addf %236, %217 : vector<1x256xf32>
      %238 = arith.truncf %237 : vector<1x256xf32> to vector<1x256xbf16>
      %c0_99 = arith.constant 0 : index
      %c0_100 = arith.constant 0 : index
      %239 = vector.load %arg20[%c0_99, %c0_100] : memref<256x128xbf16, #tpu.memory_space<vmem>>, vector<256x128xbf16>
      %cst_101 = arith.constant dense<0.000000e+00> : vector<1x128xf32>
      %240 = tpu.matmul %238, %239, %cst_101 {dimension_numbers = #tpu.dot_dimension_numbers<[1], [0], [0], [1], [0, 0, 1, 1], [], []>} : vector<1x256xbf16>, vector<256x128xbf16>, vector<1x128xf32> -> vector<1x128xf32>
      %c0_102 = arith.constant 0 : index
      %c0_103 = arith.constant 0 : index
      %241 = vector.load %arg21[%c0_102, %c0_103] : memref<1x128xf32, #tpu.memory_space<vmem>>, vector<1x128xf32>
      %242 = arith.addf %240, %241 : vector<1x128xf32>
      %c0_104 = arith.constant 0 : index
      %c0_105 = arith.constant 0 : index
      %243 = vector.load %arg22[%c0_104, %c0_105] : memref<2x128xf32, #tpu.memory_space<vmem>>, vector<1x128xf32>
      tpu.vector_store %arg22[%c0_104, %c0_105], %242 {strides = array<i32>} : memref<2x128xf32, #tpu.memory_space<vmem>>, vector<1x128xf32>,
      %c5_106 = arith.constant 5 : index
      %c0_107 = arith.constant 0 : index
      %244 = vector.load %arg23[%c5_106, %c0_107] : memref<10x256xf32, #tpu.memory_space<vmem>>, vector<1x256xf32>
      %c0_108 = arith.constant 0 : index
      %c0_109 = arith.constant 0 : index
      %245 = vector.load %arg18[%c0_108, %c0_109] : memref<1x256xf32, #tpu.memory_space<vmem>>, vector<1x256xf32>
      %c0_110 = arith.constant 0 : index
      %c0_111 = arith.constant 0 : index
      %246 = vector.load %arg19[%c0_110, %c0_111] : memref<1x256xf32, #tpu.memory_space<vmem>>, vector<1x256xf32>
      %cst_112 = arith.constant dense<0.000000e+00> : vector<1xf32>
      %247 = vector.multi_reduction <add>, %244, %cst_112 [1] : vector<1x256xf32> to vector<1xf32>
      %248 = vector.shape_cast %247 : vector<1xf32> to vector<1x1xf32>
      %cst_113 = arith.constant 2.560000e+02 : f32
      %249 = vector.broadcast %cst_113 : f32 to vector<1x1xf32>
      %250 = arith.divf %248, %249 : vector<1x1xf32>
      %251 = vector.broadcast %250 : vector<1x1xf32> to vector<1x256xf32>
      %252 = arith.subf %244, %251 : vector<1x256xf32>
      %253 = arith.mulf %252, %252 : vector<1x256xf32>
      %cst_114 = arith.constant dense<0.000000e+00> : vector<1xf32>
      %254 = vector.multi_reduction <add>, %253, %cst_114 [1] : vector<1x256xf32> to vector<1xf32>
      %255 = vector.shape_cast %254 : vector<1xf32> to vector<1x1xf32>
      %cst_115 = arith.constant 2.560000e+02 : f32
      %256 = vector.broadcast %cst_115 : f32 to vector<1x1xf32>
      %257 = arith.divf %255, %256 : vector<1x1xf32>
      %258 = vector.broadcast %250 : vector<1x1xf32> to vector<1x256xf32>
      %259 = arith.subf %244, %258 : vector<1x256xf32>
      %cst_116 = arith.constant 9.99999997E-7 : f32
      %260 = vector.broadcast %cst_116 : f32 to vector<1x1xf32>
      %261 = arith.addf %257, %260 : vector<1x1xf32>
      %262 = math.rsqrt %261 : vector<1x1xf32>
      %263 = vector.broadcast %262 : vector<1x1xf32> to vector<1x256xf32>
      %264 = arith.mulf %259, %263 : vector<1x256xf32>
      %265 = arith.mulf %264, %245 : vector<1x256xf32>
      %266 = arith.addf %265, %246 : vector<1x256xf32>
      %267 = arith.truncf %266 : vector<1x256xf32> to vector<1x256xbf16>
      %c0_117 = arith.constant 0 : index
      %c0_118 = arith.constant 0 : index
      %268 = vector.load %arg20[%c0_117, %c0_118] : memref<256x128xbf16, #tpu.memory_space<vmem>>, vector<256x128xbf16>
      %cst_119 = arith.constant dense<0.000000e+00> : vector<1x128xf32>
      %269 = tpu.matmul %267, %268, %cst_119 {dimension_numbers = #tpu.dot_dimension_numbers<[1], [0], [0], [1], [0, 0, 1, 1], [], []>} : vector<1x256xbf16>, vector<256x128xbf16>, vector<1x128xf32> -> vector<1x128xf32>
      %c0_120 = arith.constant 0 : index
      %c0_121 = arith.constant 0 : index
      %270 = vector.load %arg21[%c0_120, %c0_121] : memref<1x128xf32, #tpu.memory_space<vmem>>, vector<1x128xf32>
      %271 = arith.addf %269, %270 : vector<1x128xf32>
      %c1 = arith.constant 1 : index
      %c0_122 = arith.constant 0 : index
      %272 = vector.load %arg22[%c1, %c0_122] : memref<2x128xf32, #tpu.memory_space<vmem>>, vector<1x128xf32>
      tpu.vector_store %arg22[%c1, %c0_122], %271 {strides = array<i32>} : memref<2x128xf32, #tpu.memory_space<vmem>>, vector<1x128xf32>,
    } else {
    }
    return
  }
  func.func @transform_0(%arg0: i32) -> (i32, i32) {
    %c0_i32 = arith.constant 0 : i32
    %c0_i32_0 = arith.constant 0 : i32
    %c0_i32_1 = arith.constant 0 : i32
    return %c0_i32, %c0_i32_0 : i32, i32
  }
  func.func @transform_1(%arg0: i32) -> (i32, i32) {
    %c0_i32 = arith.constant 0 : i32
    %c0_i32_0 = arith.constant 0 : i32
    %c0_i32_1 = arith.constant 0 : i32
    return %c0_i32, %c0_i32_0 : i32, i32
  }
  func.func @transform_2(%arg0: i32) -> (i32, i32) {
    %c0_i32 = arith.constant 0 : i32
    %c0_i32_0 = arith.constant 0 : i32
    %c0_i32_1 = arith.constant 0 : i32
    return %c0_i32, %c0_i32_0 : i32, i32
  }
  func.func @transform_3(%arg0: i32) -> (i32, i32) {
    %c0_i32 = arith.constant 0 : i32
    %c0_i32_0 = arith.constant 0 : i32
    %c0_i32_1 = arith.constant 0 : i32
    return %c0_i32, %c0_i32_0 : i32, i32
  }
  func.func @transform_4(%arg0: i32) -> (i32, i32) {
    %c0_i32 = arith.constant 0 : i32
    %c0_i32_0 = arith.constant 0 : i32
    %c0_i32_1 = arith.constant 0 : i32
    return %c0_i32, %c0_i32_0 : i32, i32
  }
  func.func @transform_5(%arg0: i32) -> (i32, i32, i32) {
    %c0_i32 = arith.constant 0 : i32
    %c0_i32_0 = arith.constant 0 : i32
    %c0_i32_1 = arith.constant 0 : i32
    return %arg0, %c0_i32, %c0_i32_0 : i32, i32, i32
  }
  func.func @transform_6(%arg0: i32) -> (i32, i32, i32) {
    %c0_i32 = arith.constant 0 : i32
    %c0_i32_0 = arith.constant 0 : i32
    %c0_i32_1 = arith.constant 0 : i32
    return %arg0, %c0_i32, %c0_i32_0 : i32, i32, i32
  }
  func.func @transform_7(%arg0: i32) -> (i32, i32, i32) {
    %c0_i32 = arith.constant 0 : i32
    %c0_i32_0 = arith.constant 0 : i32
    %c0_i32_1 = arith.constant 0 : i32
    return %arg0, %c0_i32, %c0_i32_0 : i32, i32, i32
  }
  func.func @transform_8(%arg0: i32) -> (i32, i32, i32) {
    %c0_i32 = arith.constant 0 : i32
    %c0_i32_0 = arith.constant 0 : i32
    %c0_i32_1 = arith.constant 0 : i32
    return %arg0, %c0_i32, %c0_i32_0 : i32, i32, i32
  }
  func.func @transform_9(%arg0: i32) -> (i32, i32, i32) {
    %c0_i32 = arith.constant 0 : i32
    %c0_i32_0 = arith.constant 0 : i32
    %c0_i32_1 = arith.constant 0 : i32
    return %arg0, %c0_i32, %c0_i32_0 : i32, i32, i32
  }
  func.func @transform_10(%arg0: i32) -> (i32, i32, i32) {
    %c0_i32 = arith.constant 0 : i32
    %c0_i32_0 = arith.constant 0 : i32
    %c0_i32_1 = arith.constant 0 : i32
    return %arg0, %c0_i32, %c0_i32_0 : i32, i32, i32
  }
  func.func @transform_11(%arg0: i32) -> (i32, i32, i32) {
    %c0_i32 = arith.constant 0 : i32
    %c0_i32_0 = arith.constant 0 : i32
    %c0_i32_1 = arith.constant 0 : i32
    return %arg0, %c0_i32, %c0_i32_0 : i32, i32, i32
  }
  func.func @transform_12(%arg0: i32) -> (i32, i32, i32) {
    %c0_i32 = arith.constant 0 : i32
    %c0_i32_0 = arith.constant 0 : i32
    %c0_i32_1 = arith.constant 0 : i32
    return %arg0, %c0_i32, %c0_i32_0 : i32, i32, i32
  }
  func.func @transform_13(%arg0: i32) -> (i32, i32, i32) {
    %c0_i32 = arith.constant 0 : i32
    %c0_i32_0 = arith.constant 0 : i32
    %c0_i32_1 = arith.constant 0 : i32
    return %arg0, %c0_i32, %c0_i32_0 : i32, i32, i32
  }
  func.func @transform_14(%arg0: i32) -> (i32, i32, i32) {
    %c0_i32 = arith.constant 0 : i32
    %c0_i32_0 = arith.constant 0 : i32
    %c0_i32_1 = arith.constant 0 : i32
    return %arg0, %c0_i32, %c0_i32_0 : i32, i32, i32
  }
  func.func @transform_15(%arg0: i32) -> (i32, i32, i32) {
    %c0_i32 = arith.constant 0 : i32
    %c0_i32_0 = arith.constant 0 : i32
    %c0_i32_1 = arith.constant 0 : i32
    return %arg0, %c0_i32, %c0_i32_0 : i32, i32, i32
  }
  func.func @transform_16(%arg0: i32) -> (i32, i32, i32) {
    %c0_i32 = arith.constant 0 : i32
    %c0_i32_0 = arith.constant 0 : i32
    %c0_i32_1 = arith.constant 0 : i32
    return %arg0, %c0_i32, %c0_i32_0 : i32, i32, i32
  }
  func.func @transform_17(%arg0: i32) -> (i32, i32) {
    %c0_i32 = arith.constant 0 : i32
    %c0_i32_0 = arith.constant 0 : i32
    %c0_i32_1 = arith.constant 0 : i32
    return %c0_i32, %c0_i32_0 : i32, i32
  }
  func.func @transform_18(%arg0: i32) -> (i32, i32) {
    %c0_i32 = arith.constant 0 : i32
    %c0_i32_0 = arith.constant 0 : i32
    %c0_i32_1 = arith.constant 0 : i32
    return %c0_i32, %c0_i32_0 : i32, i32
  }
  func.func @transform_19(%arg0: i32) -> (i32, i32) {
    %c0_i32 = arith.constant 0 : i32
    %c0_i32_0 = arith.constant 0 : i32
    %c0_i32_1 = arith.constant 0 : i32
    return %c0_i32, %c0_i32_0 : i32, i32
  }
  func.func @transform_20(%arg0: i32) -> (i32, i32) {
    %c0_i32 = arith.constant 0 : i32
    %c0_i32_0 = arith.constant 0 : i32
    %c0_i32_1 = arith.constant 0 : i32
    return %c0_i32, %c0_i32_0 : i32, i32
  }
  func.func @transform_21(%arg0: i32) -> (i32, i32) {
    %c0_i32 = arith.constant 0 : i32
    %c0_i32_0 = arith.constant 0 : i32
    %c0_i32_1 = arith.constant 0 : i32
    return %c0_i32, %c0_i32_0 : i32, i32
  }
}

</mosaic_0001>

<llo_original>
// kernel: squeeze.1
$region0: #{squeeze.1}
  %s0 = inlined_call_operand.hbm [shape: f32[2,1,32,32], index: 0, kind: input, shape index: {}]
  %s1 = inlined_call_operand.vmem [shape: f32[2,2,16,2,16], index: 1, kind: output, shape index: {}]
  $region1: #{squeeze.1} parent=0
    #allocation0 [shape = 'u8[32768]{0}', space=vmem, size = 0x8000, scoped, tag = 'operand span for operand 0']
    #allocation1 [shape = 's32[1]{0}', space=sflag, size = 0x4, scoped, tag = 'scoped memory for squeeze.1']
    #allocation2 [shape = 'u8[262144]{0}', space=vmem, size = 0x40000, scoped, tag = 'scoped mem for output reshape']
    %2 = vsyncpa [#allocation1], 0
    %s4 = ssub.s32 1024, 1024
    %5 = vsyncadd [#allocation1], %s4
    %s7 = sshll.u32 [#allocation0], 4
    %s8 = int_to_ptr.vmem [resolvable:$true] %s7
    %10 = dma.hbm_to_vmem [thread:$0]  %s0, 1024, %s8, [#allocation1]
    %11 = dma.done [#allocation1], 1024
    %v12 = vld [vmem:[#allocation0] sm:$0xff]
    %vm13 = vcmask 130048
    %14 = vst.msk [vmem:[#allocation2] ss:$8 sm:$0xf] %vm13, %v12
    %15 = vst.msk [vmem:[#allocation2] ss:$8 sm:$0xf0] %vm13, %v12
    %s16 = scalar_lea.vmem [#allocation0], 8
    %v17 = vld [vmem:[%s16] sm:$0xff]
    %vm18 = vcmask 130048
    %s19 = scalar_lea.vmem [#allocation2], 64
    %20 = vst.msk [vmem:[%s19] ss:$8 sm:$0xf] %vm18, %v17
    %s21 = scalar_lea.vmem [#allocation2], 64
    %22 = vst.msk [vmem:[%s21] ss:$8 sm:$0xf0] %vm18, %v17
    %s23 = scalar_lea.vmem [#allocation0], 16
    %v24 = vld [vmem:[%s23] sm:$0xff]
    %vm25 = vcmask 130048
    %s26 = scalar_lea.vmem [#allocation2], 128
    %27 = vst.msk [vmem:[%s26] ss:$8 sm:$0xf] %vm25, %v24
    %s28 = scalar_lea.vmem [#allocation2], 128
    %29 = vst.msk [vmem:[%s28] ss:$8 sm:$0xf0] %vm25, %v24
    %s30 = scalar_lea.vmem [#allocation0], 24
    %v31 = vld [vmem:[%s30] sm:$0xff]
    %vm32 = vcmask 130048
    %s33 = scalar_lea.vmem [#allocation2], 192
    %34 = vst.msk [vmem:[%s33] ss:$8 sm:$0xf] %vm32, %v31
    %s35 = scalar_lea.vmem [#allocation2], 192
    %36 = vst.msk [vmem:[%s35] ss:$8 sm:$0xf0] %vm32, %v31
    %s37 = scalar_lea.vmem [#allocation0], 32
    %v38 = vld [vmem:[%s37] sm:$0xff]
    %vm39 = vcmask 130048
    %s40 = scalar_lea.vmem [#allocation2], 256
    %41 = vst.msk [vmem:[%s40] ss:$8 sm:$0xf] %vm39, %v38
    %s42 = scalar_lea.vmem [#allocation2], 256
    %43 = vst.msk [vmem:[%s42] ss:$8 sm:$0xf0] %vm39, %v38
    %s44 = scalar_lea.vmem [#allocation0], 40
    %v45 = vld [vmem:[%s44] sm:$0xff]
    %vm46 = vcmask 130048
    %s47 = scalar_lea.vmem [#allocation2], 320
    %48 = vst.msk [vmem:[%s47] ss:$8 sm:$0xf] %vm46, %v45
    %s49 = scalar_lea.vmem [#allocation2], 320
    %50 = vst.msk [vmem:[%s49] ss:$8 sm:$0xf0] %vm46, %v45
    %s51 = scalar_lea.vmem [#allocation0], 48
    %v52 = vld [vmem:[%s51] sm:$0xff]
    %vm53 = vcmask 130048
    %s54 = scalar_lea.vmem [#allocation2], 384
    %55 = vst.msk [vmem:[%s54] ss:$8 sm:$0xf] %vm53, %v52
    %s56 = scalar_lea.vmem [#allocation2], 384
    %57 = vst.msk [vmem:[%s56] ss:$8 sm:$0xf0] %vm53, %v52
    %s58 = scalar_lea.vmem [#allocation0], 56
    %v59 = vld [vmem:[%s58] sm:$0xff]
    %vm60 = vcmask 130048
    %s61 = scalar_lea.vmem [#allocation2], 448
    %62 = vst.msk [vmem:[%s61] ss:$8 sm:$0xf] %vm60, %v59
    %s63 = scalar_lea.vmem [#allocation2], 448
    %64 = vst.msk [vmem:[%s63] ss:$8 sm:$0xf0] %vm60, %v59
    %v65 = vld [vmem:[#allocation0] sm:$0xff]
    %66 = vrot.lane.b32.xlu0 %v65, 112
    %v67 = vpop.permute.xlu0 %66
    %vm68 = vcmask 130048
    %s69 = scalar_lea.vmem [#allocation2], 1
    %70 = vst.msk [vmem:[%s69] ss:$8 sm:$0xf] %vm68, %v67
    %s71 = scalar_lea.vmem [#allocation2], 1
    %72 = vst.msk [vmem:[%s71] ss:$8 sm:$0xf0] %vm68, %v67
    %s73 = scalar_lea.vmem [#allocation0], 8
    %v74 = vld [vmem:[%s73] sm:$0xff]
    %75 = vrot.lane.b32.xlu0 %v74, 112
    %v76 = vpop.permute.xlu0 %75
    %vm77 = vcmask 130048
    %s78 = scalar_lea.vmem [#allocation2], 65
    %79 = vst.msk [vmem:[%s78] ss:$8 sm:$0xf] %vm77, %v76
    %s80 = scalar_lea.vmem [#allocation2], 65
    %81 = vst.msk [vmem:[%s80] ss:$8 sm:$0xf0] %vm77, %v76
    %s82 = scalar_lea.vmem [#allocation0], 16
    %v83 = vld [vmem:[%s82] sm:$0xff]
    %84 = vrot.lane.b32.xlu0 %v83, 112
    %v85 = vpop.permute.xlu0 %84
    %vm86 = vcmask 130048
    %s87 = scalar_lea.vmem [#allocation2], 129
    %88 = vst.msk [vmem:[%s87] ss:$8 sm:$0xf] %vm86, %v85
    %s89 = scalar_lea.vmem [#allocation2], 129
    %90 = vst.msk [vmem:[%s89] ss:$8 sm:$0xf0] %vm86, %v85
    %s91 = scalar_lea.vmem [#allocation0], 24
    %v92 = vld [vmem:[%s91] sm:$0xff]
    %93 = vrot.lane.b32.xlu0 %v92, 112
    %v94 = vpop.permute.xlu0 %93
    %vm95 = vcmask 130048
    %s96 = scalar_lea.vmem [#allocation2], 193
    %97 = vst.msk [vmem:[%s96] ss:$8 sm:$0xf] %vm95, %v94
    %s98 = scalar_lea.vmem [#allocation2], 193
    %99 = vst.msk [vmem:[%s98] ss:$8 sm:$0xf0] %vm95, %v94
    %s100 = scalar_lea.vmem [#allocation0], 32
    %v101 = vld [vmem:[%s100] sm:$0xff]
    %102 = vrot.lane.b32.xlu0 %v101, 112
    %v103 = vpop.permute.xlu0 %102
    %vm104 = vcmask 130048
    %s105 = scalar_lea.vmem [#allocation2], 257
    %106 = vst.msk [vmem:[%s105] ss:$8 sm:$0xf] %vm104, %v103
    %s107 = scalar_lea.vmem [#allocation2], 257
    %108 = vst.msk [vmem:[%s107] ss:$8 sm:$0xf0] %vm104, %v103
    %s109 = scalar_lea.vmem [#allocation0], 40
    %v110 = vld [vmem:[%s109] sm:$0xff]
    %111 = vrot.lane.b32.xlu0 %v110, 112
    %v112 = vpop.permute.xlu0 %111
    %vm113 = vcmask 130048
    %s114 = scalar_lea.vmem [#allocation2], 321
    %115 = vst.msk [vmem:[%s114] ss:$8 sm:$0xf] %vm113, %v112
    %s116 = scalar_lea.vmem [#allocation2], 321
    %117 = vst.msk [vmem:[%s116] ss:$8 sm:$0xf0] %vm113, %v112
    %s118 = scalar_lea.vmem [#allocation0], 48
    %v119 = vld [vmem:[%s118] sm:$0xff]
    %120 = vrot.lane.b32.xlu0 %v119, 112
    %v121 = vpop.permute.xlu0 %120
    %vm122 = vcmask 130048
    %s123 = scalar_lea.vmem [#allocation2], 385
    %124 = vst.msk [vmem:[%s123] ss:$8 sm:$0xf] %vm122, %v121
    %s125 = scalar_lea.vmem [#allocation2], 385
    %126 = vst.msk [vmem:[%s125] ss:$8 sm:$0xf0] %vm122, %v121
    %s127 = scalar_lea.vmem [#allocation0], 56
    %v128 = vld [vmem:[%s127] sm:$0xff]
    %129 = vrot.lane.b32.xlu0 %v128, 112
    %v130 = vpop.permute.xlu0 %129
    %vm131 = vcmask 130048
    %s132 = scalar_lea.vmem [#allocation2], 449
    %133 = vst.msk [vmem:[%s132] ss:$8 sm:$0xf] %vm131, %v130
    %s134 = scalar_lea.vmem [#allocation2], 449
    %135 = vst.msk [vmem:[%s134] ss:$8 sm:$0xf0] %vm131, %v130
    %s137 = sshll.u32 1, 2
    %s138 = ssub.s32 %s137, 1
    %v140 = vld [vmem:[#allocation2] sm:%s138]
    %s141 = sshll.u32 1, 2
    %s142 = ssub.s32 %s141, 1
    %143 = vst [vmem:[%s1] sm:%s142] %v140
    %s144 = scalar_lea.vmem [#allocation2], 8
    %v145 = vld [vmem:[%s144] sm:%s138]
    %s146 = sshll.u32 1, 2
    %s147 = ssub.s32 %s146, 1
    %s148 = scalar_lea.vmem %s1, 2
    %149 = vst [vmem:[%s148] sm:%s147] %v145
    %s150 = scalar_lea.vmem [#allocation2], 16
    %v151 = vld [vmem:[%s150] sm:%s138]
    %s152 = sshll.u32 1, 2
    %s153 = ssub.s32 %s152, 1
    %s154 = smul.addr 2, 2
    %s155 = scalar_lea.vmem %s1, %s154
    %156 = vst [vmem:[%s155] sm:%s153] %v151
    %s157 = scalar_lea.vmem [#allocation2], 24
    %v158 = vld [vmem:[%s157] sm:%s138]
    %s159 = sshll.u32 1, 2
    %s160 = ssub.s32 %s159, 1
    %s161 = smul.addr 2, 3
    %s162 = scalar_lea.vmem %s1, %s161
    %163 = vst [vmem:[%s162] sm:%s160] %v158
    %s164 = scalar_lea.vmem [#allocation2], 32
    %v165 = vld [vmem:[%s164] sm:%s138]
    %s166 = sshll.u32 1, 2
    %s167 = ssub.s32 %s166, 1
    %s168 = smul.addr 2, 4
    %s169 = scalar_lea.vmem %s1, %s168
    %170 = vst [vmem:[%s169] sm:%s167] %v165
    %s171 = scalar_lea.vmem [#allocation2], 40
    %v172 = vld [vmem:[%s171] sm:%s138]
    %s173 = sshll.u32 1, 2
    %s174 = ssub.s32 %s173, 1
    %s175 = smul.addr 2, 5
    %s176 = scalar_lea.vmem %s1, %s175
    %177 = vst [vmem:[%s176] sm:%s174] %v172
    %s178 = scalar_lea.vmem [#allocation2], 48
    %v179 = vld [vmem:[%s178] sm:%s138]
    %s180 = sshll.u32 1, 2
    %s181 = ssub.s32 %s180, 1
    %s182 = smul.addr 2, 6
    %s183 = scalar_lea.vmem %s1, %s182
    %184 = vst [vmem:[%s183] sm:%s181] %v179
    %s185 = scalar_lea.vmem [#allocation2], 56
    %v186 = vld [vmem:[%s185] sm:%s138]
    %s187 = sshll.u32 1, 2
    %s188 = ssub.s32 %s187, 1
    %s189 = smul.addr 2, 7
    %s190 = scalar_lea.vmem %s1, %s189
    %191 = vst [vmem:[%s190] sm:%s188] %v186
    %s192 = scalar_lea.vmem [#allocation2], 64
    %v193 = vld [vmem:[%s192] sm:%s138]
    %s194 = sshll.u32 1, 2
    %s195 = ssub.s32 %s194, 1
    %s196 = smul.addr 2, 8
    %s197 = scalar_lea.vmem %s1, %s196
    %198 = vst [vmem:[%s197] sm:%s195] %v193
    %s199 = scalar_lea.vmem [#allocation2], 72
    %v200 = vld [vmem:[%s199] sm:%s138]
    %s201 = sshll.u32 1, 2
    %s202 = ssub.s32 %s201, 1
    %s203 = smul.addr 2, 9
    %s204 = scalar_lea.vmem %s1, %s203
    %205 = vst [vmem:[%s204] sm:%s202] %v200
    %s206 = scalar_lea.vmem [#allocation2], 80
    %v207 = vld [vmem:[%s206] sm:%s138]
    %s208 = sshll.u32 1, 2
    %s209 = ssub.s32 %s208, 1
    %s210 = smul.addr 2, 10
    %s211 = scalar_lea.vmem %s1, %s210
    %212 = vst [vmem:[%s211] sm:%s209] %v207
    %s213 = scalar_lea.vmem [#allocation2], 88
    %v214 = vld [vmem:[%s213] sm:%s138]
    %s215 = sshll.u32 1, 2
    %s216 = ssub.s32 %s215, 1
    %s217 = smul.addr 2, 11
    %s218 = scalar_lea.vmem %s1, %s217
    %219 = vst [vmem:[%s218] sm:%s216] %v214
    %s220 = scalar_lea.vmem [#allocation2], 96
    %v221 = vld [vmem:[%s220] sm:%s138]
    %s222 = sshll.u32 1, 2
    %s223 = ssub.s32 %s222, 1
    %s224 = smul.addr 2, 12
    %s225 = scalar_lea.vmem %s1, %s224
    %226 = vst [vmem:[%s225] sm:%s223] %v221
    %s227 = scalar_lea.vmem [#allocation2], 104
    %v228 = vld [vmem:[%s227] sm:%s138]
    %s229 = sshll.u32 1, 2
    %s230 = ssub.s32 %s229, 1
    %s231 = smul.addr 2, 13
    %s232 = scalar_lea.vmem %s1, %s231
    %233 = vst [vmem:[%s232] sm:%s230] %v228
    %s234 = scalar_lea.vmem [#allocation2], 112
    %v235 = vld [vmem:[%s234] sm:%s138]
    %s236 = sshll.u32 1, 2
    %s237 = ssub.s32 %s236, 1
    %s238 = smul.addr 2, 14
    %s239 = scalar_lea.vmem %s1, %s238
    %240 = vst [vmem:[%s239] sm:%s237] %v235
    %s241 = scalar_lea.vmem [#allocation2], 120
    %v242 = vld [vmem:[%s241] sm:%s138]
    %s243 = sshll.u32 1, 2
    %s244 = ssub.s32 %s243, 1
    %s245 = smul.addr 2, 15
    %s246 = scalar_lea.vmem %s1, %s245
    %247 = vst [vmem:[%s246] sm:%s244] %v242
    %s248 = scalar_lea.vmem [#allocation2], 128
    %v249 = vld [vmem:[%s248] sm:%s138]
    %s250 = sshll.u32 1, 2
    %s251 = ssub.s32 %s250, 1
    %s252 = smul.addr 2, 16
    %s253 = scalar_lea.vmem %s1, %s252
    %254 = vst [vmem:[%s253] sm:%s251] %v249
    %s255 = scalar_lea.vmem [#allocation2], 136
    %v256 = vld [vmem:[%s255] sm:%s138]
    %s257 = sshll.u32 1, 2
    %s258 = ssub.s32 %s257, 1
    %s259 = smul.addr 2, 17
    %s260 = scalar_lea.vmem %s1, %s259
    %261 = vst [vmem:[%s260] sm:%s258] %v256
    %s262 = scalar_lea.vmem [#allocation2], 144
    %v263 = vld [vmem:[%s262] sm:%s138]
    %s264 = sshll.u32 1, 2
    %s265 = ssub.s32 %s264, 1
    %s266 = smul.addr 2, 18
    %s267 = scalar_lea.vmem %s1, %s266
    %268 = vst [vmem:[%s267] sm:%s265] %v263
    %s269 = scalar_lea.vmem [#allocation2], 152
    %v270 = vld [vmem:[%s269] sm:%s138]
    %s271 = sshll.u32 1, 2
    %s272 = ssub.s32 %s271, 1
    %s273 = smul.addr 2, 19
    %s274 = scalar_lea.vmem %s1, %s273
    %275 = vst [vmem:[%s274] sm:%s272] %v270
    %s276 = scalar_lea.vmem [#allocation2], 160
    %v277 = vld [vmem:[%s276] sm:%s138]
    %s278 = sshll.u32 1, 2
    %s279 = ssub.s32 %s278, 1
    %s280 = smul.addr 2, 20
    %s281 = scalar_lea.vmem %s1, %s280
    %282 = vst [vmem:[%s281] sm:%s279] %v277
    %s283 = scalar_lea.vmem [#allocation2], 168
    %v284 = vld [vmem:[%s283] sm:%s138]
    %s285 = sshll.u32 1, 2
    %s286 = ssub.s32 %s285, 1
    %s287 = smul.addr 2, 21
    %s288 = scalar_lea.vmem %s1, %s287
    %289 = vst [vmem:[%s288] sm:%s286] %v284
    %s290 = scalar_lea.vmem [#allocation2], 176
    %v291 = vld [vmem:[%s290] sm:%s138]
    %s292 = sshll.u32 1, 2
    %s293 = ssub.s32 %s292, 1
    %s294 = smul.addr 2, 22
    %s295 = scalar_lea.vmem %s1, %s294
    %296 = vst [vmem:[%s295] sm:%s293] %v291
    %s297 = scalar_lea.vmem [#allocation2], 184
    %v298 = vld [vmem:[%s297] sm:%s138]
    %s299 = sshll.u32 1, 2
    %s300 = ssub.s32 %s299, 1
    %s301 = smul.addr 2, 23
    %s302 = scalar_lea.vmem %s1, %s301
    %303 = vst [vmem:[%s302] sm:%s300] %v298
    %s304 = scalar_lea.vmem [#allocation2], 192
    %v305 = vld [vmem:[%s304] sm:%s138]
    %s306 = sshll.u32 1, 2
    %s307 = ssub.s32 %s306, 1
    %s308 = smul.addr 2, 24
    %s309 = scalar_lea.vmem %s1, %s308
    %310 = vst [vmem:[%s309] sm:%s307] %v305
    %s311 = scalar_lea.vmem [#allocation2], 200
    %v312 = vld [vmem:[%s311] sm:%s138]
    %s313 = sshll.u32 1, 2
    %s314 = ssub.s32 %s313, 1
    %s315 = smul.addr 2, 25
    %s316 = scalar_lea.vmem %s1, %s315
    %317 = vst [vmem:[%s316] sm:%s314] %v312
    %s318 = scalar_lea.vmem [#allocation2], 208
    %v319 = vld [vmem:[%s318] sm:%s138]
    %s320 = sshll.u32 1, 2
    %s321 = ssub.s32 %s320, 1
    %s322 = smul.addr 2, 26
    %s323 = scalar_lea.vmem %s1, %s322
    %324 = vst [vmem:[%s323] sm:%s321] %v319
    %s325 = scalar_lea.vmem [#allocation2], 216
    %v326 = vld [vmem:[%s325] sm:%s138]
    %s327 = sshll.u32 1, 2
    %s328 = ssub.s32 %s327, 1
    %s329 = smul.addr 2, 27
    %s330 = scalar_lea.vmem %s1, %s329
    %331 = vst [vmem:[%s330] sm:%s328] %v326
    %s332 = scalar_lea.vmem [#allocation2], 224
    %v333 = vld [vmem:[%s332] sm:%s138]
    %s334 = sshll.u32 1, 2
    %s335 = ssub.s32 %s334, 1
    %s336 = smul.addr 2, 28
    %s337 = scalar_lea.vmem %s1, %s336
    %338 = vst [vmem:[%s337] sm:%s335] %v333
    %s339 = scalar_lea.vmem [#allocation2], 232
    %v340 = vld [vmem:[%s339] sm:%s138]
    %s341 = sshll.u32 1, 2
    %s342 = ssub.s32 %s341, 1
    %s343 = smul.addr 2, 29
    %s344 = scalar_lea.vmem %s1, %s343
    %345 = vst [vmem:[%s344] sm:%s342] %v340
    %s346 = scalar_lea.vmem [#allocation2], 240
    %v347 = vld [vmem:[%s346] sm:%s138]
    %s348 = sshll.u32 1, 2
    %s349 = ssub.s32 %s348, 1
    %s350 = smul.addr 2, 30
    %s351 = scalar_lea.vmem %s1, %s350
    %352 = vst [vmem:[%s351] sm:%s349] %v347
    %s353 = scalar_lea.vmem [#allocation2], 248
    %v354 = vld [vmem:[%s353] sm:%s138]
    %s355 = sshll.u32 1, 2
    %s356 = ssub.s32 %s355, 1
    %s357 = smul.addr 2, 31
    %s358 = scalar_lea.vmem %s1, %s357
    %359 = vst [vmem:[%s358] sm:%s356] %v354
    %s360 = scalar_lea.vmem [#allocation2], 256
    %v361 = vld [vmem:[%s360] sm:%s138]
    %s362 = sshll.u32 1, 2
    %s363 = ssub.s32 %s362, 1
    %s364 = smul.addr 2, 32
    %s365 = scalar_lea.vmem %s1, %s364
    %366 = vst [vmem:[%s365] sm:%s363] %v361
    %s367 = scalar_lea.vmem [#allocation2], 264
    %v368 = vld [vmem:[%s367] sm:%s138]
    %s369 = sshll.u32 1, 2
    %s370 = ssub.s32 %s369, 1
    %s371 = smul.addr 2, 33
    %s372 = scalar_lea.vmem %s1, %s371
    %373 = vst [vmem:[%s372] sm:%s370] %v368
    %s374 = scalar_lea.vmem [#allocation2], 272
    %v375 = vld [vmem:[%s374] sm:%s138]
    %s376 = sshll.u32 1, 2
    %s377 = ssub.s32 %s376, 1
    %s378 = smul.addr 2, 34
    %s379 = scalar_lea.vmem %s1, %s378
    %380 = vst [vmem:[%s379] sm:%s377] %v375
    %s381 = scalar_lea.vmem [#allocation2], 280
    %v382 = vld [vmem:[%s381] sm:%s138]
    %s383 = sshll.u32 1, 2
    %s384 = ssub.s32 %s383, 1
    %s385 = smul.addr 2, 35
    %s386 = scalar_lea.vmem %s1, %s385
    %387 = vst [vmem:[%s386] sm:%s384] %v382
    %s388 = scalar_lea.vmem [#allocation2], 288
    %v389 = vld [vmem:[%s388] sm:%s138]
    %s390 = sshll.u32 1, 2
    %s391 = ssub.s32 %s390, 1
    %s392 = smul.addr 2, 36
    %s393 = scalar_lea.vmem %s1, %s392
    %394 = vst [vmem:[%s393] sm:%s391] %v389
    %s395 = scalar_lea.vmem [#allocation2], 296
    %v396 = vld [vmem:[%s395] sm:%s138]
    %s397 = sshll.u32 1, 2
    %s398 = ssub.s32 %s397, 1
    %s399 = smul.addr 2, 37
    %s400 = scalar_lea.vmem %s1, %s399
    %401 = vst [vmem:[%s400] sm:%s398] %v396
    %s402 = scalar_lea.vmem [#allocation2], 304
    %v403 = vld [vmem:[%s402] sm:%s138]
    %s404 = sshll.u32 1, 2
    %s405 = ssub.s32 %s404, 1
    %s406 = smul.addr 2, 38
    %s407 = scalar_lea.vmem %s1, %s406
    %408 = vst [vmem:[%s407] sm:%s405] %v403
    %s409 = scalar_lea.vmem [#allocation2], 312
    %v410 = vld [vmem:[%s409] sm:%s138]
    %s411 = sshll.u32 1, 2
    %s412 = ssub.s32 %s411, 1
    %s413 = smul.addr 2, 39
    %s414 = scalar_lea.vmem %s1, %s413
    %415 = vst [vmem:[%s414] sm:%s412] %v410
    %s416 = scalar_lea.vmem [#allocation2], 320
    %v417 = vld [vmem:[%s416] sm:%s138]
    %s418 = sshll.u32 1, 2
    %s419 = ssub.s32 %s418, 1
    %s420 = smul.addr 2, 40
    %s421 = scalar_lea.vmem %s1, %s420
    %422 = vst [vmem:[%s421] sm:%s419] %v417
    %s423 = scalar_lea.vmem [#allocation2], 328
    %v424 = vld [vmem:[%s423] sm:%s138]
    %s425 = sshll.u32 1, 2
    %s426 = ssub.s32 %s425, 1
    %s427 = smul.addr 2, 41
    %s428 = scalar_lea.vmem %s1, %s427
    %429 = vst [vmem:[%s428] sm:%s426] %v424
    %s430 = scalar_lea.vmem [#allocation2], 336
    %v431 = vld [vmem:[%s430] sm:%s138]
    %s432 = sshll.u32 1, 2
    %s433 = ssub.s32 %s432, 1
    %s434 = smul.addr 2, 42
    %s435 = scalar_lea.vmem %s1, %s434
    %436 = vst [vmem:[%s435] sm:%s433] %v431
    %s437 = scalar_lea.vmem [#allocation2], 344
    %v438 = vld [vmem:[%s437] sm:%s138]
    %s439 = sshll.u32 1, 2
    %s440 = ssub.s32 %s439, 1
    %s441 = smul.addr 2, 43
    %s442 = scalar_lea.vmem %s1, %s441
    %443 = vst [vmem:[%s442] sm:%s440] %v438
    %s444 = scalar_lea.vmem [#allocation2], 352
    %v445 = vld [vmem:[%s444] sm:%s138]
    %s446 = sshll.u32 1, 2
    %s447 = ssub.s32 %s446, 1
    %s448 = smul.addr 2, 44
    %s449 = scalar_lea.vmem %s1, %s448
    %450 = vst [vmem:[%s449] sm:%s447] %v445
    %s451 = scalar_lea.vmem [#allocation2], 360
    %v452 = vld [vmem:[%s451] sm:%s138]
    %s453 = sshll.u32 1, 2
    %s454 = ssub.s32 %s453, 1
    %s455 = smul.addr 2, 45
    %s456 = scalar_lea.vmem %s1, %s455
    %457 = vst [vmem:[%s456] sm:%s454] %v452
    %s458 = scalar_lea.vmem [#allocation2], 368
    %v459 = vld [vmem:[%s458] sm:%s138]
    %s460 = sshll.u32 1, 2
    %s461 = ssub.s32 %s460, 1
    %s462 = smul.addr 2, 46
    %s463 = scalar_lea.vmem %s1, %s462
    %464 = vst [vmem:[%s463] sm:%s461] %v459
    %s465 = scalar_lea.vmem [#allocation2], 376
    %v466 = vld [vmem:[%s465] sm:%s138]
    %s467 = sshll.u32 1, 2
    %s468 = ssub.s32 %s467, 1
    %s469 = smul.addr 2, 47
    %s470 = scalar_lea.vmem %s1, %s469
    %471 = vst [vmem:[%s470] sm:%s468] %v466
    %s472 = scalar_lea.vmem [#allocation2], 384
    %v473 = vld [vmem:[%s472] sm:%s138]
    %s474 = sshll.u32 1, 2
    %s475 = ssub.s32 %s474, 1
    %s476 = smul.addr 2, 48
    %s477 = scalar_lea.vmem %s1, %s476
    %478 = vst [vmem:[%s477] sm:%s475] %v473
    %s479 = scalar_lea.vmem [#allocation2], 392
    %v480 = vld [vmem:[%s479] sm:%s138]
    %s481 = sshll.u32 1, 2
    %s482 = ssub.s32 %s481, 1
    %s483 = smul.addr 2, 49
    %s484 = scalar_lea.vmem %s1, %s483
    %485 = vst [vmem:[%s484] sm:%s482] %v480
    %s486 = scalar_lea.vmem [#allocation2], 400
    %v487 = vld [vmem:[%s486] sm:%s138]
    %s488 = sshll.u32 1, 2
    %s489 = ssub.s32 %s488, 1
    %s490 = smul.addr 2, 50
    %s491 = scalar_lea.vmem %s1, %s490
    %492 = vst [vmem:[%s491] sm:%s489] %v487
    %s493 = scalar_lea.vmem [#allocation2], 408
    %v494 = vld [vmem:[%s493] sm:%s138]
    %s495 = sshll.u32 1, 2
    %s496 = ssub.s32 %s495, 1
    %s497 = smul.addr 2, 51
    %s498 = scalar_lea.vmem %s1, %s497
    %499 = vst [vmem:[%s498] sm:%s496] %v494
    %s500 = scalar_lea.vmem [#allocation2], 416
    %v501 = vld [vmem:[%s500] sm:%s138]
    %s502 = sshll.u32 1, 2
    %s503 = ssub.s32 %s502, 1
    %s504 = smul.addr 2, 52
    %s505 = scalar_lea.vmem %s1, %s504
    %506 = vst [vmem:[%s505] sm:%s503] %v501
    %s507 = scalar_lea.vmem [#allocation2], 424
    %v508 = vld [vmem:[%s507] sm:%s138]
    %s509 = sshll.u32 1, 2
    %s510 = ssub.s32 %s509, 1
    %s511 = smul.addr 2, 53
    %s512 = scalar_lea.vmem %s1, %s511
    %513 = vst [vmem:[%s512] sm:%s510] %v508
    %s514 = scalar_lea.vmem [#allocation2], 432
    %v515 = vld [vmem:[%s514] sm:%s138]
    %s516 = sshll.u32 1, 2
    %s517 = ssub.s32 %s516, 1
    %s518 = smul.addr 2, 54
    %s519 = scalar_lea.vmem %s1, %s518
    %520 = vst [vmem:[%s519] sm:%s517] %v515
    %s521 = scalar_lea.vmem [#allocation2], 440
    %v522 = vld [vmem:[%s521] sm:%s138]
    %s523 = sshll.u32 1, 2
    %s524 = ssub.s32 %s523, 1
    %s525 = smul.addr 2, 55
    %s526 = scalar_lea.vmem %s1, %s525
    %527 = vst [vmem:[%s526] sm:%s524] %v522
    %s528 = scalar_lea.vmem [#allocation2], 448
    %v529 = vld [vmem:[%s528] sm:%s138]
    %s530 = sshll.u32 1, 2
    %s531 = ssub.s32 %s530, 1
    %s532 = smul.addr 2, 56
    %s533 = scalar_lea.vmem %s1, %s532
    %534 = vst [vmem:[%s533] sm:%s531] %v529
    %s535 = scalar_lea.vmem [#allocation2], 456
    %v536 = vld [vmem:[%s535] sm:%s138]
    %s537 = sshll.u32 1, 2
    %s538 = ssub.s32 %s537, 1
    %s539 = smul.addr 2, 57
    %s540 = scalar_lea.vmem %s1, %s539
    %541 = vst [vmem:[%s540] sm:%s538] %v536
    %s542 = scalar_lea.vmem [#allocation2], 464
    %v543 = vld [vmem:[%s542] sm:%s138]
    %s544 = sshll.u32 1, 2
    %s545 = ssub.s32 %s544, 1
    %s546 = smul.addr 2, 58
    %s547 = scalar_lea.vmem %s1, %s546
    %548 = vst [vmem:[%s547] sm:%s545] %v543
    %s549 = scalar_lea.vmem [#allocation2], 472
    %v550 = vld [vmem:[%s549] sm:%s138]
    %s551 = sshll.u32 1, 2
    %s552 = ssub.s32 %s551, 1
    %s553 = smul.addr 2, 59
    %s554 = scalar_lea.vmem %s1, %s553
    %555 = vst [vmem:[%s554] sm:%s552] %v550
    %s556 = scalar_lea.vmem [#allocation2], 480
    %v557 = vld [vmem:[%s556] sm:%s138]
    %s558 = sshll.u32 1, 2
    %s559 = ssub.s32 %s558, 1
    %s560 = smul.addr 2, 60
    %s561 = scalar_lea.vmem %s1, %s560
    %562 = vst [vmem:[%s561] sm:%s559] %v557
    %s563 = scalar_lea.vmem [#allocation2], 488
    %v564 = vld [vmem:[%s563] sm:%s138]
    %s565 = sshll.u32 1, 2
    %s566 = ssub.s32 %s565, 1
    %s567 = smul.addr 2, 61
    %s568 = scalar_lea.vmem %s1, %s567
    %569 = vst [vmem:[%s568] sm:%s566] %v564
    %s570 = scalar_lea.vmem [#allocation2], 496
    %v571 = vld [vmem:[%s570] sm:%s138]
    %s572 = sshll.u32 1, 2
    %s573 = ssub.s32 %s572, 1
    %s574 = smul.addr 2, 62
    %s575 = scalar_lea.vmem %s1, %s574
    %576 = vst [vmem:[%s575] sm:%s573] %v571
    %s577 = scalar_lea.vmem [#allocation2], 504
    %v578 = vld [vmem:[%s577] sm:%s138]
    %s579 = sshll.u32 1, 2
    %s580 = ssub.s32 %s579, 1
    %s581 = smul.addr 2, 63
    %s582 = scalar_lea.vmem %s1, %s581
    %583 = vst [vmem:[%s582] sm:%s580] %v578
    %584 = vsyncpa [#allocation1], 1

// kernel: vit_forward.1
$region0: #{vit_forward.1}
  #allocation0 [shape = 'u32[]', space=smem, size = 0x4, offset = 0x4, fixed_abs, tag = 'smem constant byte address 0x4 - core index']
  #allocation1 [shape = 'u32[144,128]{1,0:T(1,128)}', space=vmem, size = 0x12000, scoped, tag = 'internal scratch']
  #allocation2 [shape = 'f32[10,256]{1,0:T(8,128)}', space=vmem, size = 0x4000, scoped, tag = 'scratch operand']
  %s0 = inlined_call_operand.vmem [shape: f32[8,256], index: 0, kind: input, shape index: {}]
  %s1 = inlined_call_operand.hbm [shape: bf16[256,256], index: 1, kind: input, shape index: {}]
  %s2 = inlined_call_operand.vmem [shape: f32[1,256], index: 2, kind: input, shape index: {}]
  %s3 = inlined_call_operand.vmem [shape: f32[1,256], index: 3, kind: input, shape index: {}]
  %s4 = inlined_call_operand.vmem [shape: f32[5,256], index: 4, kind: input, shape index: {}]
  %s5 = inlined_call_operand.vmem [shape: f32[2,1,256], index: 5, kind: input, shape index: {}]
  %s6 = inlined_call_operand.vmem [shape: f32[2,1,256], index: 6, kind: input, shape index: {}]
  %s7 = inlined_call_operand.hbm [shape: bf16[2,256,768], index: 7, kind: input, shape index: {}]
  %s8 = inlined_call_operand.vmem [shape: f32[2,1,768], index: 8, kind: input, shape index: {}]
  %s9 = inlined_call_operand.vmem [shape: bf16[2,256,256], index: 9, kind: input, shape index: {}]
  %s10 = inlined_call_operand.vmem [shape: f32[2,1,256], index: 10, kind: input, shape index: {}]
  %s11 = inlined_call_operand.vmem [shape: f32[2,1,256], index: 11, kind: input, shape index: {}]
  %s12 = inlined_call_operand.vmem [shape: f32[2,1,256], index: 12, kind: input, shape index: {}]
  %s13 = inlined_call_operand.hbm [shape: bf16[2,256,1024], index: 13, kind: input, shape index: {}]
  %s14 = inlined_call_operand.vmem [shape: f32[2,1,1024], index: 14, kind: input, shape index: {}]
  %s15 = inlined_call_operand.hbm [shape: bf16[2,1024,256], index: 15, kind: input, shape index: {}]
  %s16 = inlined_call_operand.vmem [shape: f32[2,1,256], index: 16, kind: input, shape index: {}]
  %s17 = inlined_call_operand.vmem [shape: f32[1,256], index: 17, kind: input, shape index: {}]
  %s18 = inlined_call_operand.vmem [shape: f32[1,256], index: 18, kind: input, shape index: {}]
  %s19 = inlined_call_operand.hbm [shape: bf16[256,128], index: 19, kind: input, shape index: {}]
  %s20 = inlined_call_operand.vmem [shape: f32[1,128], index: 20, kind: input, shape index: {}]
  %s21 = inlined_call_operand.hbm [shape: f32[2,128], index: 21, kind: output, shape index: {}]
  %s22 = sld [smem:[#allocation0]]
  $region145: #{vit_forward.1} parent=0
    _
  %s24 = ssub.s32 1, %s22
  %s25 = scalar_select 0, %s24, %s22
  $region1: #{vit_forward.1} parent=0
    #allocation3 [shape = 'u8[131072]{0}', space=vmem, size = 0x20000, scoped, tag = 'input window, operand 1, single buffered']
    #allocation4 [shape = 's32[2]{0}', space=sflag, size = 0x8, scoped, tag = 'scoped memory for vit_forward.1']
    #allocation5 [shape = 's32[2]{0}', space=sflag, size = 0x8, scoped, tag = 'scoped memory for vit_forward.1']
    #allocation6 [shape = 'u8[786432]{0}', space=vmem, size = 0xc0000, scoped, tag = 'input window, operand 7']
    #allocation7 [shape = 's32[2]{0}', space=sflag, size = 0x8, scoped, tag = 'scoped memory for vit_forward.1']
    #allocation8 [shape = 'u8[1048576]{0}', space=vmem, size = 0x100000, scoped, tag = 'input window, operand 13']
    #allocation9 [shape = 'u8[1048576]{0}', space=vmem, size = 0x100000, scoped, tag = 'input window, operand 15']
    #allocation10 [shape = 's32[2]{0}', space=sflag, size = 0x8, scoped, tag = 'scoped memory for vit_forward.1']
    #allocation11 [shape = 'u8[65536]{0}', space=vmem, size = 0x10000, scoped, tag = 'input window, operand 19, single buffered']
    #allocation12 [shape = 'u8[1024]{0}', space=vmem, size = 0x400, scoped, tag = 'output window, operand 0, single buffered']
    %26 = vsyncpa [#allocation4], 0
    %27 = vsyncpa [#allocation7], 0
    %s28 = scalar_lea.sflag [#allocation7], 1
    %29 = vsyncpa %s28, 0
    %30 = vsyncpa [#allocation10], 0
    %s31 = scalar_lea.sflag [#allocation10], 1
    %32 = vsyncpa %s31, 0
    %33 = vsyncpa [#allocation5], 0
    loop: start=0, step=1, limit=4
    $region2: #{vit_forward.1} parent=1 // loop_pre_header
      _
    $region3: #{vit_forward.1} parent=1 // loop_header
      %s35 = sphi 0, %s39
      %p36 = scmp.ge.s32.totalorder %s35, 4
      %s43 = sphi 0, %s43
      %s45 = sphi 0, %s43
      %s46 = sphi 0, %s45
      %s60 = sphi 0, %s46
      %s64 = sphi 0, %s64
      %s66 = sphi 0, %s64
      %s67 = sphi 0, %s66
      %s81 = sphi 0, %s67
      %s85 = sphi 0, %s85
      %s87 = sphi 0, %s85
      %s88 = sphi 0, %s87
      %s102 = sphi 0, %s88
      %s106 = sphi 0, %s106
      %s108 = sphi 0, %s106
      %s109 = sphi 0, %s108
      %s123 = sphi 0, %s109
      %s127 = sphi 0, %s127
      %s129 = sphi 0, %s127
      %s130 = sphi 0, %s129
      %s144 = sphi 0, %s130
      %s150 = sphi 0, %s152
      %s153 = sphi 0, %s150
      %s154 = sphi 0, %s153
      %s170 = sphi 0, %s154
      %s176 = sphi 0, %s178
      %s179 = sphi 0, %s176
      %s180 = sphi 0, %s179
      %s196 = sphi 0, %s180
      %s202 = sphi 0, %s204
      %s205 = sphi 0, %s202
      %s206 = sphi 0, %s205
      %s222 = sphi 0, %s206
      %s228 = sphi 0, %s230
      %s231 = sphi 0, %s228
      %s232 = sphi 0, %s231
      %s248 = sphi 0, %s232
      %s254 = sphi 0, %s256
      %s257 = sphi 0, %s254
      %s258 = sphi 0, %s257
      %s274 = sphi 0, %s258
      %s280 = sphi 0, %s282
      %s283 = sphi 0, %s280
      %s284 = sphi 0, %s283
      %s300 = sphi 0, %s284
      %s306 = sphi 0, %s308
      %s309 = sphi 0, %s306
      %s310 = sphi 0, %s309
      %s326 = sphi 0, %s310
      %s332 = sphi 0, %s334
      %s335 = sphi 0, %s332
      %s336 = sphi 0, %s335
      %s352 = sphi 0, %s336
      %s358 = sphi 0, %s360
      %s361 = sphi 0, %s358
      %s362 = sphi 0, %s361
      %s378 = sphi 0, %s362
      %s384 = sphi 0, %s386
      %s387 = sphi 0, %s384
      %s388 = sphi 0, %s387
      %s404 = sphi 0, %s388
      %s410 = sphi 0, %s412
      %s413 = sphi 0, %s410
      %s414 = sphi 0, %s413
      %s430 = sphi 0, %s414
      %s436 = sphi 0, %s438
      %s439 = sphi 0, %s436
      %s440 = sphi 0, %s439
      %s456 = sphi 0, %s440
      %s460 = sphi 0, %s460
      %s462 = sphi 0, %s460
      %s463 = sphi 0, %s462
      %s477 = sphi 0, %s463
      %s481 = sphi 0, %s481
      %s483 = sphi 0, %s481
      %s484 = sphi 0, %s483
      %s498 = sphi 0, %s484
      %s502 = sphi 0, %s502
      %s504 = sphi 0, %s502
      %s505 = sphi 0, %s504
      %s519 = sphi 0, %s505
      %s523 = sphi 0, %s523
      %s525 = sphi 0, %s523
      %s526 = sphi 0, %s525
      %s540 = sphi 0, %s526
      %s544 = sphi 0, %s544
      %s546 = sphi 0, %s544
      %s547 = sphi 0, %s546
      %s561 = sphi 0, %s547
    $region4: #{vit_forward.1} parent=1 // loop_header_branch
      %38 = sbr.rel (%p36) target = $region8
    $region5: #{vit_forward.1} parent=1 // loop_body
      %s40 = ssub.s32 %s35, 1
      %s41 = ssub.s32 %s35, 2
      %s42 = sadd.s32 %s35, 1
      %s44 = sadd.s32 %s43, 1
      %p47 = scmp.eq.s32.totalorder %s35, 1
      %p48 = scmp.ne.s32.totalorder %s43, %s45
      %p49 = scmp.eq.s32.totalorder %s35, 0
      %p50 = por %p48, %p49
      %p51 = scmp.ne.s32.totalorder %s43, %s45
      %p52 = scmp.eq.s32.totalorder %s40, 1
      %p53 = por %p51, %p52
      %p54 = scmp.ne.s32.totalorder %s45, %s46
      %p55 = scmp.eq.s32.totalorder %s40, 0
      %p56 = por %p54, %p55
      %p57 = scmp.ne.s32.totalorder %s45, %s46
      %p58 = scmp.eq.s32.totalorder %s41, 1
      %p59 = por %p57, %p58
      %p61 = scmp.ne.s32.totalorder %s46, %s60
      %p62 = scmp.eq.s32.totalorder %s41, 0
      %p63 = por %p61, %p62
      %s65 = sadd.s32 %s64, 1
      %p68 = scmp.eq.s32.totalorder %s35, 1
      %p69 = scmp.ne.s32.totalorder %s64, %s66
      %p70 = scmp.eq.s32.totalorder %s35, 0
      %p71 = por %p69, %p70
      %p72 = scmp.ne.s32.totalorder %s64, %s66
      %p73 = scmp.eq.s32.totalorder %s40, 1
      %p74 = por %p72, %p73
      %p75 = scmp.ne.s32.totalorder %s66, %s67
      %p76 = scmp.eq.s32.totalorder %s40, 0
      %p77 = por %p75, %p76
      %p78 = scmp.ne.s32.totalorder %s66, %s67
      %p79 = scmp.eq.s32.totalorder %s41, 1
      %p80 = por %p78, %p79
      %p82 = scmp.ne.s32.totalorder %s67, %s81
      %p83 = scmp.eq.s32.totalorder %s41, 0
      %p84 = por %p82, %p83
      %s86 = sadd.s32 %s85, 1
      %p89 = scmp.eq.s32.totalorder %s35, 1
      %p90 = scmp.ne.s32.totalorder %s85, %s87
      %p91 = scmp.eq.s32.totalorder %s35, 0
      %p92 = por %p90, %p91
      %p93 = scmp.ne.s32.totalorder %s85, %s87
      %p94 = scmp.eq.s32.totalorder %s40, 1
      %p95 = por %p93, %p94
      %p96 = scmp.ne.s32.totalorder %s87, %s88
      %p97 = scmp.eq.s32.totalorder %s40, 0
      %p98 = por %p96, %p97
      %p99 = scmp.ne.s32.totalorder %s87, %s88
      %p100 = scmp.eq.s32.totalorder %s41, 1
      %p101 = por %p99, %p100
      %p103 = scmp.ne.s32.totalorder %s88, %s102
      %p104 = scmp.eq.s32.totalorder %s41, 0
      %p105 = por %p103, %p104
      %s107 = sadd.s32 %s106, 1
      %p110 = scmp.eq.s32.totalorder %s35, 1
      %p111 = scmp.ne.s32.totalorder %s106, %s108
      %p112 = scmp.eq.s32.totalorder %s35, 0
      %p113 = por %p111, %p112
      %p114 = scmp.ne.s32.totalorder %s106, %s108
      %p115 = scmp.eq.s32.totalorder %s40, 1
      %p116 = por %p114, %p115
      %p117 = scmp.ne.s32.totalorder %s108, %s109
      %p118 = scmp.eq.s32.totalorder %s40, 0
      %p119 = por %p117, %p118
      %p120 = scmp.ne.s32.totalorder %s108, %s109
      %p121 = scmp.eq.s32.totalorder %s41, 1
      %p122 = por %p120, %p121
      %p124 = scmp.ne.s32.totalorder %s109, %s123
      %p125 = scmp.eq.s32.totalorder %s41, 0
      %p126 = por %p124, %p125
      %s128 = sadd.s32 %s127, 1
      %p131 = scmp.eq.s32.totalorder %s35, 1
      %p132 = scmp.ne.s32.totalorder %s127, %s129
      %p133 = scmp.eq.s32.totalorder %s35, 0
      %p134 = por %p132, %p133
      %p135 = scmp.ne.s32.totalorder %s127, %s129
      %p136 = scmp.eq.s32.totalorder %s40, 1
      %p137 = por %p135, %p136
      %p138 = scmp.ne.s32.totalorder %s129, %s130
      %p139 = scmp.eq.s32.totalorder %s40, 0
      %p140 = por %p138, %p139
      %p141 = scmp.ne.s32.totalorder %s129, %s130
      %p142 = scmp.eq.s32.totalorder %s41, 1
      %p143 = por %p141, %p142
      %p145 = scmp.ne.s32.totalorder %s130, %s144
      %p146 = scmp.eq.s32.totalorder %s41, 0
      %p147 = por %p145, %p146
      %s148 = ssub.s32 %s35, %s42
      %p149 = scmp.eq.s32.totalorder %s148, 0
      %s151 = sadd.s32 %s150, 1
      %s152 = scalar_select %p149, %s150, %s151
      %p155 = pneg %p149
      %p156 = scmp.eq.s32.totalorder %s35, 1
      %p157 = por %p155, %p156
      %p158 = scmp.ne.s32.totalorder %s150, %s153
      %p159 = scmp.eq.s32.totalorder %s35, 0
      %p160 = por %p158, %p159
      %p161 = scmp.ne.s32.totalorder %s150, %s153
      %p162 = scmp.eq.s32.totalorder %s40, 1
      %p163 = por %p161, %p162
      %p164 = scmp.ne.s32.totalorder %s153, %s154
      %p165 = scmp.eq.s32.totalorder %s40, 0
      %p166 = por %p164, %p165
      %p167 = scmp.ne.s32.totalorder %s153, %s154
      %p168 = scmp.eq.s32.totalorder %s41, 1
      %p169 = por %p167, %p168
      %p171 = scmp.ne.s32.totalorder %s154, %s170
      %p172 = scmp.eq.s32.totalorder %s41, 0
      %p173 = por %p171, %p172
      %s174 = ssub.s32 %s35, %s42
      %p175 = scmp.eq.s32.totalorder %s174, 0
      %s177 = sadd.s32 %s176, 1
      %s178 = scalar_select %p175, %s176, %s177
      %p181 = pneg %p175
      %p182 = scmp.eq.s32.totalorder %s35, 1
      %p183 = por %p181, %p182
      %p184 = scmp.ne.s32.totalorder %s176, %s179
      %p185 = scmp.eq.s32.totalorder %s35, 0
      %p186 = por %p184, %p185
      %p187 = scmp.ne.s32.totalorder %s176, %s179
      %p188 = scmp.eq.s32.totalorder %s40, 1
      %p189 = por %p187, %p188
      %p190 = scmp.ne.s32.totalorder %s179, %s180
      %p191 = scmp.eq.s32.totalorder %s40, 0
      %p192 = por %p190, %p191
      %p193 = scmp.ne.s32.totalorder %s179, %s180
      %p194 = scmp.eq.s32.totalorder %s41, 1
      %p195 = por %p193, %p194
      %p197 = scmp.ne.s32.totalorder %s180, %s196
      %p198 = scmp.eq.s32.totalorder %s41, 0
      %p199 = por %p197, %p198
      %s200 = ssub.s32 %s35, %s42
      %p201 = scmp.eq.s32.totalorder %s200, 0
      %s203 = sadd.s32 %s202, 1
      %s204 = scalar_select %p201, %s202, %s203
      %p207 = pneg %p201
      %p208 = scmp.eq.s32.totalorder %s35, 1
      %p209 = por %p207, %p208
      %p210 = scmp.ne.s32.totalorder %s202, %s205
      %p211 = scmp.eq.s32.totalorder %s35, 0
      %p212 = por %p210, %p211
      %p213 = scmp.ne.s32.totalorder %s202, %s205
      %p214 = scmp.eq.s32.totalorder %s40, 1
      %p215 = por %p213, %p214
      %p216 = scmp.ne.s32.totalorder %s205, %s206
      %p217 = scmp.eq.s32.totalorder %s40, 0
      %p218 = por %p216, %p217
      %p219 = scmp.ne.s32.totalorder %s205, %s206
      %p220 = scmp.eq.s32.totalorder %s41, 1
      %p221 = por %p219, %p220
      %p223 = scmp.ne.s32.totalorder %s206, %s222
      %p224 = scmp.eq.s32.totalorder %s41, 0
      %p225 = por %p223, %p224
      %s226 = ssub.s32 %s35, %s42
      %p227 = scmp.eq.s32.totalorder %s226, 0
      %s229 = sadd.s32 %s228, 1
      %s230 = scalar_select %p227, %s228, %s229
      %p233 = pneg %p227
      %p234 = scmp.eq.s32.totalorder %s35, 1
      %p235 = por %p233, %p234
      %p236 = scmp.ne.s32.totalorder %s228, %s231
      %p237 = scmp.eq.s32.totalorder %s35, 0
      %p238 = por %p236, %p237
      %p239 = scmp.ne.s32.totalorder %s228, %s231
      %p240 = scmp.eq.s32.totalorder %s40, 1
      %p241 = por %p239, %p240
      %p242 = scmp.ne.s32.totalorder %s231, %s232
      %p243 = scmp.eq.s32.totalorder %s40, 0
      %p244 = por %p242, %p243
      %p245 = scmp.ne.s32.totalorder %s231, %s232
      %p246 = scmp.eq.s32.totalorder %s41, 1
      %p247 = por %p245, %p246
      %p249 = scmp.ne.s32.totalorder %s232, %s248
      %p250 = scmp.eq.s32.totalorder %s41, 0
      %p251 = por %p249, %p250
      %s252 = ssub.s32 %s35, %s42
      %p253 = scmp.eq.s32.totalorder %s252, 0
      %s255 = sadd.s32 %s254, 1
      %s256 = scalar_select %p253, %s254, %s255
      %p259 = pneg %p253
      %p260 = scmp.eq.s32.totalorder %s35, 1
      %p261 = por %p259, %p260
      %p262 = scmp.ne.s32.totalorder %s254, %s257
      %p263 = scmp.eq.s32.totalorder %s35, 0
      %p264 = por %p262, %p263
      %p265 = scmp.ne.s32.totalorder %s254, %s257
      %p266 = scmp.eq.s32.totalorder %s40, 1
      %p267 = por %p265, %p266
      %p268 = scmp.ne.s32.totalorder %s257, %s258
      %p269 = scmp.eq.s32.totalorder %s40, 0
      %p270 = por %p268, %p269
      %p271 = scmp.ne.s32.totalorder %s257, %s258
      %p272 = scmp.eq.s32.totalorder %s41, 1
      %p273 = por %p271, %p272
      %p275 = scmp.ne.s32.totalorder %s258, %s274
      %p276 = scmp.eq.s32.totalorder %s41, 0
      %p277 = por %p275, %p276
      %s278 = ssub.s32 %s35, %s42
      %p279 = scmp.eq.s32.totalorder %s278, 0
      %s281 = sadd.s32 %s280, 1
      %s282 = scalar_select %p279, %s280, %s281
      %p285 = pneg %p279
      %p286 = scmp.eq.s32.totalorder %s35, 1
      %p287 = por %p285, %p286
      %p288 = scmp.ne.s32.totalorder %s280, %s283
      %p289 = scmp.eq.s32.totalorder %s35, 0
      %p290 = por %p288, %p289
      %p291 = scmp.ne.s32.totalorder %s280, %s283
      %p292 = scmp.eq.s32.totalorder %s40, 1
      %p293 = por %p291, %p292
      %p294 = scmp.ne.s32.totalorder %s283, %s284
      %p295 = scmp.eq.s32.totalorder %s40, 0
      %p296 = por %p294, %p295
      %p297 = scmp.ne.s32.totalorder %s283, %s284
      %p298 = scmp.eq.s32.totalorder %s41, 1
      %p299 = por %p297, %p298
      %p301 = scmp.ne.s32.totalorder %s284, %s300
      %p302 = scmp.eq.s32.totalorder %s41, 0
      %p303 = por %p301, %p302
      %s304 = ssub.s32 %s35, %s42
      %p305 = scmp.eq.s32.totalorder %s304, 0
      %s307 = sadd.s32 %s306, 1
      %s308 = scalar_select %p305, %s306, %s307
      %p311 = pneg %p305
      %p312 = scmp.eq.s32.totalorder %s35, 1
      %p313 = por %p311, %p312
      %p314 = scmp.ne.s32.totalorder %s306, %s309
      %p315 = scmp.eq.s32.totalorder %s35, 0
      %p316 = por %p314, %p315
      %p317 = scmp.ne.s32.totalorder %s306, %s309
      %p318 = scmp.eq.s32.totalorder %s40, 1
      %p319 = por %p317, %p318
      %p320 = scmp.ne.s32.totalorder %s309, %s310
      %p321 = scmp.eq.s32.totalorder %s40, 0
      %p322 = por %p320, %p321
      %p323 = scmp.ne.s32.totalorder %s309, %s310
      %p324 = scmp.eq.s32.totalorder %s41, 1
      %p325 = por %p323, %p324
      %p327 = scmp.ne.s32.totalorder %s310, %s326
      %p328 = scmp.eq.s32.totalorder %s41, 0
      %p329 = por %p327, %p328
      %s330 = ssub.s32 %s35, %s42
      %p331 = scmp.eq.s32.totalorder %s330, 0
      %s333 = sadd.s32 %s332, 1
      %s334 = scalar_select %p331, %s332, %s333
      %p337 = pneg %p331
      %p338 = scmp.eq.s32.totalorder %s35, 1
      %p339 = por %p337, %p338
      %p340 = scmp.ne.s32.totalorder %s332, %s335
      %p341 = scmp.eq.s32.totalorder %s35, 0
      %p342 = por %p340, %p341
      %p343 = scmp.ne.s32.totalorder %s332, %s335
      %p344 = scmp.eq.s32.totalorder %s40, 1
      %p345 = por %p343, %p344
      %p346 = scmp.ne.s32.totalorder %s335, %s336
      %p347 = scmp.eq.s32.totalorder %s40, 0
      %p348 = por %p346, %p347
      %p349 = scmp.ne.s32.totalorder %s335, %s336
      %p350 = scmp.eq.s32.totalorder %s41, 1
      %p351 = por %p349, %p350
      %p353 = scmp.ne.s32.totalorder %s336, %s352
      %p354 = scmp.eq.s32.totalorder %s41, 0
      %p355 = por %p353, %p354
      %s356 = ssub.s32 %s35, %s42
      %p357 = scmp.eq.s32.totalorder %s356, 0
      %s359 = sadd.s32 %s358, 1
      %s360 = scalar_select %p357, %s358, %s359
      %p363 = pneg %p357
      %p364 = scmp.eq.s32.totalorder %s35, 1
      %p365 = por %p363, %p364
      %p366 = scmp.ne.s32.totalorder %s358, %s361
      %p367 = scmp.eq.s32.totalorder %s35, 0
      %p368 = por %p366, %p367
      %p369 = scmp.ne.s32.totalorder %s358, %s361
      %p370 = scmp.eq.s32.totalorder %s40, 1
      %p371 = por %p369, %p370
      %p372 = scmp.ne.s32.totalorder %s361, %s362
      %p373 = scmp.eq.s32.totalorder %s40, 0
      %p374 = por %p372, %p373
      %p375 = scmp.ne.s32.totalorder %s361, %s362
      %p376 = scmp.eq.s32.totalorder %s41, 1
      %p377 = por %p375, %p376
      %p379 = scmp.ne.s32.totalorder %s362, %s378
      %p380 = scmp.eq.s32.totalorder %s41, 0
      %p381 = por %p379, %p380
      %s382 = ssub.s32 %s35, %s42
      %p383 = scmp.eq.s32.totalorder %s382, 0
      %s385 = sadd.s32 %s384, 1
      %s386 = scalar_select %p383, %s384, %s385
      %p389 = pneg %p383
      %p390 = scmp.eq.s32.totalorder %s35, 1
      %p391 = por %p389, %p390
      %p392 = scmp.ne.s32.totalorder %s384, %s387
      %p393 = scmp.eq.s32.totalorder %s35, 0
      %p394 = por %p392, %p393
      %p395 = scmp.ne.s32.totalorder %s384, %s387
      %p396 = scmp.eq.s32.totalorder %s40, 1
      %p397 = por %p395, %p396
      %p398 = scmp.ne.s32.totalorder %s387, %s388
      %p399 = scmp.eq.s32.totalorder %s40, 0
      %p400 = por %p398, %p399
      %p401 = scmp.ne.s32.totalorder %s387, %s388
      %p402 = scmp.eq.s32.totalorder %s41, 1
      %p403 = por %p401, %p402
      %p405 = scmp.ne.s32.totalorder %s388, %s404
      %p406 = scmp.eq.s32.totalorder %s41, 0
      %p407 = por %p405, %p406
      %s408 = ssub.s32 %s35, %s42
      %p409 = scmp.eq.s32.totalorder %s408, 0
      %s411 = sadd.s32 %s410, 1
      %s412 = scalar_select %p409, %s410, %s411
      %p415 = pneg %p409
      %p416 = scmp.eq.s32.totalorder %s35, 1
      %p417 = por %p415, %p416
      %p418 = scmp.ne.s32.totalorder %s410, %s413
      %p419 = scmp.eq.s32.totalorder %s35, 0
      %p420 = por %p418, %p419
      %p421 = scmp.ne.s32.totalorder %s410, %s413
      %p422 = scmp.eq.s32.totalorder %s40, 1
      %p423 = por %p421, %p422
      %p424 = scmp.ne.s32.totalorder %s413, %s414
      %p425 = scmp.eq.s32.totalorder %s40, 0
      %p426 = por %p424, %p425
      %p427 = scmp.ne.s32.totalorder %s413, %s414
      %p428 = scmp.eq.s32.totalorder %s41, 1
      %p429 = por %p427, %p428
      %p431 = scmp.ne.s32.totalorder %s414, %s430
      %p432 = scmp.eq.s32.totalorder %s41, 0
      %p433 = por %p431, %p432
      %s434 = ssub.s32 %s35, %s42
      %p435 = scmp.eq.s32.totalorder %s434, 0
      %s437 = sadd.s32 %s436, 1
      %s438 = scalar_select %p435, %s436, %s437
      %p441 = pneg %p435
      %p442 = scmp.eq.s32.totalorder %s35, 1
      %p443 = por %p441, %p442
      %p444 = scmp.ne.s32.totalorder %s436, %s439
      %p445 = scmp.eq.s32.totalorder %s35, 0
      %p446 = por %p444, %p445
      %p447 = scmp.ne.s32.totalorder %s436, %s439
      %p448 = scmp.eq.s32.totalorder %s40, 1
      %p449 = por %p447, %p448
      %p450 = scmp.ne.s32.totalorder %s439, %s440
      %p451 = scmp.eq.s32.totalorder %s40, 0
      %p452 = por %p450, %p451
      %p453 = scmp.ne.s32.totalorder %s439, %s440
      %p454 = scmp.eq.s32.totalorder %s41, 1
      %p455 = por %p453, %p454
      %p457 = scmp.ne.s32.totalorder %s440, %s456
      %p458 = scmp.eq.s32.totalorder %s41, 0
      %p459 = por %p457, %p458
      %s461 = sadd.s32 %s460, 1
      %p464 = scmp.eq.s32.totalorder %s35, 1
      %p465 = scmp.ne.s32.totalorder %s460, %s462
      %p466 = scmp.eq.s32.totalorder %s35, 0
      %p467 = por %p465, %p466
      %p468 = scmp.ne.s32.totalorder %s460, %s462
      %p469 = scmp.eq.s32.totalorder %s40, 1
      %p470 = por %p468, %p469
      %p471 = scmp.ne.s32.totalorder %s462, %s463
      %p472 = scmp.eq.s32.totalorder %s40, 0
      %p473 = por %p471, %p472
      %p474 = scmp.ne.s32.totalorder %s462, %s463
      %p475 = scmp.eq.s32.totalorder %s41, 1
      %p476 = por %p474, %p475
      %p478 = scmp.ne.s32.totalorder %s463, %s477
      %p479 = scmp.eq.s32.totalorder %s41, 0
      %p480 = por %p478, %p479
      %s482 = sadd.s32 %s481, 1
      %p485 = scmp.eq.s32.totalorder %s35, 1
      %p486 = scmp.ne.s32.totalorder %s481, %s483
      %p487 = scmp.eq.s32.totalorder %s35, 0
      %p488 = por %p486, %p487
      %p489 = scmp.ne.s32.totalorder %s481, %s483
      %p490 = scmp.eq.s32.totalorder %s40, 1
      %p491 = por %p489, %p490
      %p492 = scmp.ne.s32.totalorder %s483, %s484
      %p493 = scmp.eq.s32.totalorder %s40, 0
      %p494 = por %p492, %p493
      %p495 = scmp.ne.s32.totalorder %s483, %s484
      %p496 = scmp.eq.s32.totalorder %s41, 1
      %p497 = por %p495, %p496
      %p499 = scmp.ne.s32.totalorder %s484, %s498
      %p500 = scmp.eq.s32.totalorder %s41, 0
      %p501 = por %p499, %p500
      %s503 = sadd.s32 %s502, 1
      %p506 = scmp.eq.s32.totalorder %s35, 1
      %p507 = scmp.ne.s32.totalorder %s502, %s504
      %p508 = scmp.eq.s32.totalorder %s35, 0
      %p509 = por %p507, %p508
      %p510 = scmp.ne.s32.totalorder %s502, %s504
      %p511 = scmp.eq.s32.totalorder %s40, 1
      %p512 = por %p510, %p511
      %p513 = scmp.ne.s32.totalorder %s504, %s505
      %p514 = scmp.eq.s32.totalorder %s40, 0
      %p515 = por %p513, %p514
      %p516 = scmp.ne.s32.totalorder %s504, %s505
      %p517 = scmp.eq.s32.totalorder %s41, 1
      %p518 = por %p516, %p517
      %p520 = scmp.ne.s32.totalorder %s505, %s519
      %p521 = scmp.eq.s32.totalorder %s41, 0
      %p522 = por %p520, %p521
      %s524 = sadd.s32 %s523, 1
      %p527 = scmp.eq.s32.totalorder %s35, 1
      %p528 = scmp.ne.s32.totalorder %s523, %s525
      %p529 = scmp.eq.s32.totalorder %s35, 0
      %p530 = por %p528, %p529
      %p531 = scmp.ne.s32.totalorder %s523, %s525
      %p532 = scmp.eq.s32.totalorder %s40, 1
      %p533 = por %p531, %p532
      %p534 = scmp.ne.s32.totalorder %s525, %s526
      %p535 = scmp.eq.s32.totalorder %s40, 0
      %p536 = por %p534, %p535
      %p537 = scmp.ne.s32.totalorder %s525, %s526
      %p538 = scmp.eq.s32.totalorder %s41, 1
      %p539 = por %p537, %p538
      %p541 = scmp.ne.s32.totalorder %s526, %s540
      %p542 = scmp.eq.s32.totalorder %s41, 0
      %p543 = por %p541, %p542
      %s545 = sadd.s32 %s544, 1
      %p548 = scmp.eq.s32.totalorder %s35, 1
      %p549 = scmp.ne.s32.totalorder %s544, %s546
      %p550 = scmp.eq.s32.totalorder %s35, 0
      %p551 = por %p549, %p550
      %p552 = scmp.ne.s32.totalorder %s544, %s546
      %p553 = scmp.eq.s32.totalorder %s40, 1
      %p554 = por %p552, %p553
      %p555 = scmp.ne.s32.totalorder %s546, %s547
      %p556 = scmp.eq.s32.totalorder %s40, 0
      %p557 = por %p555, %p556
      %p558 = scmp.ne.s32.totalorder %s546, %s547
      %p559 = scmp.eq.s32.totalorder %s41, 1
      %p560 = por %p558, %p559
      %p562 = scmp.ne.s32.totalorder %s547, %s561
      %p563 = scmp.eq.s32.totalorder %s41, 0
      %p564 = por %p562, %p563
      %p565 = scmp.le.s32.totalorder 1, %s35
      %p566 = scmp.lt.s32.totalorder %s35, 3
      %p567 = pnand %p565, %p566
      %p568 = pneg %p567
      // Predicated region
      $region9: #{vit_forward.1} parent=5 // pred_check
        _
      $region10: #{vit_forward.1} parent=5 // pred_check_branch
        %570 = sbr.rel (%p567) target = $region12
      $region11: #{vit_forward.1} parent=5 // pred_region
        %s571 = ssub.s32 %s35, 1
        // Predicated region
        $region13: #{vit_forward.1} parent=11 // pred_check
          %p572 = pneg %p56
        $region14: #{vit_forward.1} parent=11 // pred_check_branch
          %574 = sbr.rel (%p572) target = $region16
        $region15: #{vit_forward.1} parent=11 // pred_region
          _
        $region16: #{vit_forward.1} parent=11 // pred_fallthru
          _
        // Predicated region
        $region17: #{vit_forward.1} parent=11 // pred_check
          %p575 = pneg %p77
        $region18: #{vit_forward.1} parent=11 // pred_check_branch
          %577 = sbr.rel (%p575) target = $region20
        $region19: #{vit_forward.1} parent=11 // pred_region
          %s579 = ssub.s32 4096, 4096
          %580 = vsyncadd [#allocation4], %s579
          %s581 = sshll.u32 [#allocation3], 4
          %s582 = int_to_ptr.vmem [resolvable:$true] %s581
          %587 = dma.hbm_to_vmem [thread:$0]  %s1, 4096, %s582, [#allocation4], 128, 128, 8
        $region20: #{vit_forward.1} parent=11 // pred_fallthru
          _
        // Predicated region
        $region21: #{vit_forward.1} parent=11 // pred_check
          %p588 = pneg %p98
        $region22: #{vit_forward.1} parent=11 // pred_check_branch
          %590 = sbr.rel (%p588) target = $region24
        $region23: #{vit_forward.1} parent=11 // pred_region
          _
        $region24: #{vit_forward.1} parent=11 // pred_fallthru
          _
        // Predicated region
        $region25: #{vit_forward.1} parent=11 // pred_check
          %p591 = pneg %p119
        $region26: #{vit_forward.1} parent=11 // pred_check_branch
          %593 = sbr.rel (%p591) target = $region28
        $region27: #{vit_forward.1} parent=11 // pred_region
          _
        $region28: #{vit_forward.1} parent=11 // pred_fallthru
          _
        // Predicated region
        $region29: #{vit_forward.1} parent=11 // pred_check
          %p594 = pneg %p140
        $region30: #{vit_forward.1} parent=11 // pred_check_branch
          %596 = sbr.rel (%p594) target = $region32
        $region31: #{vit_forward.1} parent=11 // pred_region
          _
        $region32: #{vit_forward.1} parent=11 // pred_fallthru
          _
        // Predicated region
        $region33: #{vit_forward.1} parent=11 // pred_check
          %p597 = pneg %p473
        $region34: #{vit_forward.1} parent=11 // pred_check_branch
          %599 = sbr.rel (%p597) target = $region36
        $region35: #{vit_forward.1} parent=11 // pred_region
          _
        $region36: #{vit_forward.1} parent=11 // pred_fallthru
          _
        // Predicated region
        $region37: #{vit_forward.1} parent=11 // pred_check
          %p600 = pneg %p494
        $region38: #{vit_forward.1} parent=11 // pred_check_branch
          %602 = sbr.rel (%p600) target = $region40
        $region39: #{vit_forward.1} parent=11 // pred_region
          _
        $region40: #{vit_forward.1} parent=11 // pred_fallthru
          _
        // Predicated region
        $region41: #{vit_forward.1} parent=11 // pred_check
          %p603 = pneg %p515
        $region42: #{vit_forward.1} parent=11 // pred_check_branch
          %605 = sbr.rel (%p603) target = $region44
        $region43: #{vit_forward.1} parent=11 // pred_region
          %s607 = ssub.s32 2048, 2048
          %608 = vsyncadd [#allocation10], %s607
          %s609 = sshll.u32 [#allocation11], 4
          %s610 = int_to_ptr.vmem [resolvable:$true] %s609
          %615 = dma.hbm_to_vmem [thread:$0]  %s19, 2048, %s610, [#allocation10], 64, 64, 4
        $region44: #{vit_forward.1} parent=11 // pred_fallthru
          _
        // Predicated region
        $region45: #{vit_forward.1} parent=11 // pred_check
          %p616 = pneg %p536
        $region46: #{vit_forward.1} parent=11 // pred_check_branch
          %618 = sbr.rel (%p616) target = $region48
        $region47: #{vit_forward.1} parent=11 // pred_region
          _
        $region48: #{vit_forward.1} parent=11 // pred_fallthru
          _
      $region12: #{vit_forward.1} parent=5 // pred_fallthru
        _
      %p619 = scmp.lt.s32.totalorder %s35, 2
      // Predicated region
      $region49: #{vit_forward.1} parent=5 // pred_check
        %p620 = pneg %p619
      $region50: #{vit_forward.1} parent=5 // pred_check_branch
        %622 = sbr.rel (%p620) target = $region52
      $region51: #{vit_forward.1} parent=5 // pred_region
        // Predicated region
        $region53: #{vit_forward.1} parent=51 // pred_check
          %p623 = pneg %p160
        $region54: #{vit_forward.1} parent=51 // pred_check_branch
          %625 = sbr.rel (%p623) target = $region56
        $region55: #{vit_forward.1} parent=51 // pred_region
          %p626 = scmp.lt.s32.totalorder %s35, 1
          %s627 = scalar_select %p626, %s35, 1
          %s628 = smul.addr %s627, 2
          %s629 = scalar_lea.vmem %s5, %s628
        $region56: #{vit_forward.1} parent=51 // pred_fallthru
          _
        // Predicated region
        $region57: #{vit_forward.1} parent=51 // pred_check
          %p630 = pneg %p186
        $region58: #{vit_forward.1} parent=51 // pred_check_branch
          %632 = sbr.rel (%p630) target = $region60
        $region59: #{vit_forward.1} parent=51 // pred_region
          %p633 = scmp.lt.s32.totalorder %s35, 1
          %s634 = scalar_select %p633, %s35, 1
          %s635 = smul.addr %s634, 2
          %s636 = scalar_lea.vmem %s6, %s635
        $region60: #{vit_forward.1} parent=51 // pred_fallthru
          _
        // Predicated region
        $region61: #{vit_forward.1} parent=51 // pred_check
          %p637 = pneg %p212
        $region62: #{vit_forward.1} parent=51 // pred_check_branch
          %639 = sbr.rel (%p637) target = $region64
        $region63: #{vit_forward.1} parent=51 // pred_region
          %s640 = sand.u32 %s35, 1
          %s641 = scalar_lea.sflag [#allocation7], %s640
          %s642 = sand.u32 %s202, 1
          %s643 = smul.addr %s642, 768
          %s644 = scalar_lea.vmem [#allocation6], %s643
          %s646 = ssub.s32 12288, 12288
          %647 = vsyncadd %s641, %s646
          %s648 = smul.addr %s35, 192
          %s649 = smul.addr %s648, 64
          %s650 = scalar_lea.hbm %s7, %s649
          %s651 = sshll.u32 %s644, 4
          %s652 = int_to_ptr.vmem [resolvable:$true] %s651
          %657 = dma.hbm_to_vmem [thread:$0]  %s650, 12288, %s652, %s641, 384, 384, 24
        $region64: #{vit_forward.1} parent=51 // pred_fallthru
          _
        // Predicated region
        $region65: #{vit_forward.1} parent=51 // pred_check
          %p658 = pneg %p238
        $region66: #{vit_forward.1} parent=51 // pred_check_branch
          %660 = sbr.rel (%p658) target = $region68
        $region67: #{vit_forward.1} parent=51 // pred_region
          %p661 = scmp.lt.s32.totalorder %s35, 1
          %s662 = scalar_select %p661, %s35, 1
          %s663 = smul.addr %s662, 6
          %s664 = scalar_lea.vmem %s8, %s663
        $region68: #{vit_forward.1} parent=51 // pred_fallthru
          _
        // Predicated region
        $region69: #{vit_forward.1} parent=51 // pred_check
          %p665 = pneg %p264
        $region70: #{vit_forward.1} parent=51 // pred_check_branch
          %667 = sbr.rel (%p665) target = $region72
        $region71: #{vit_forward.1} parent=51 // pred_region
          %p668 = scmp.lt.s32.totalorder %s35, 1
          %s669 = scalar_select %p668, %s35, 1
          %s670 = smul.addr %s669, 64
          %s671 = smul.addr %s670, 4
          %s672 = scalar_lea.vmem %s9, %s671
        $region72: #{vit_forward.1} parent=51 // pred_fallthru
          _
        // Predicated region
        $region73: #{vit_forward.1} parent=51 // pred_check
          %p673 = pneg %p290
        $region74: #{vit_forward.1} parent=51 // pred_check_branch
          %675 = sbr.rel (%p673) target = $region76
        $region75: #{vit_forward.1} parent=51 // pred_region
          %p676 = scmp.lt.s32.totalorder %s35, 1
          %s677 = scalar_select %p676, %s35, 1
          %s678 = smul.addr %s677, 2
          %s679 = scalar_lea.vmem %s10, %s678
        $region76: #{vit_forward.1} parent=51 // pred_fallthru
          _
        // Predicated region
        $region77: #{vit_forward.1} parent=51 // pred_check
          %p680 = pneg %p316
        $region78: #{vit_forward.1} parent=51 // pred_check_branch
          %682 = sbr.rel (%p680) target = $region80
        $region79: #{vit_forward.1} parent=51 // pred_region
          %p683 = scmp.lt.s32.totalorder %s35, 1
          %s684 = scalar_select %p683, %s35, 1
          %s685 = smul.addr %s684, 2
          %s686 = scalar_lea.vmem %s11, %s685
        $region80: #{vit_forward.1} parent=51 // pred_fallthru
          _
        // Predicated region
        $region81: #{vit_forward.1} parent=51 // pred_check
          %p687 = pneg %p342
        $region82: #{vit_forward.1} parent=51 // pred_check_branch
          %689 = sbr.rel (%p687) target = $region84
        $region83: #{vit_forward.1} parent=51 // pred_region
          %p690 = scmp.lt.s32.totalorder %s35, 1
          %s691 = scalar_select %p690, %s35, 1
          %s692 = smul.addr %s691, 2
          %s693 = scalar_lea.vmem %s12, %s692
        $region84: #{vit_forward.1} parent=51 // pred_fallthru
          _
        // Predicated region
        $region85: #{vit_forward.1} parent=51 // pred_check
          %p694 = pneg %p368
        $region86: #{vit_forward.1} parent=51 // pred_check_branch
          %696 = sbr.rel (%p694) target = $region88
        $region87: #{vit_forward.1} parent=51 // pred_region
          %s697 = sand.u32 %s35, 1
          %s698 = scalar_lea.sflag [#allocation7], %s697
          %s699 = sand.u32 %s358, 1
          %s700 = smul.addr %s699, 1024
          %s701 = scalar_lea.vmem [#allocation8], %s700
          %s703 = ssub.s32 16384, 16384
          %704 = vsyncadd %s698, %s703
          %s705 = smul.addr %s35, 256
          %s706 = smul.addr %s705, 64
          %s707 = scalar_lea.hbm %s13, %s706
          %s708 = sshll.u32 %s701, 4
          %s709 = int_to_ptr.vmem [resolvable:$true] %s708
          %714 = dma.hbm_to_vmem [thread:$0]  %s707, 16384, %s709, %s698, 512, 512, 32
        $region88: #{vit_forward.1} parent=51 // pred_fallthru
          _
        // Predicated region
        $region89: #{vit_forward.1} parent=51 // pred_check
          %p715 = pneg %p394
        $region90: #{vit_forward.1} parent=51 // pred_check_branch
          %717 = sbr.rel (%p715) target = $region92
        $region91: #{vit_forward.1} parent=51 // pred_region
          %p718 = scmp.lt.s32.totalorder %s35, 1
          %s719 = scalar_select %p718, %s35, 1
          %s720 = smul.addr %s719, 8
          %s721 = scalar_lea.vmem %s14, %s720
        $region92: #{vit_forward.1} parent=51 // pred_fallthru
          _
        // Predicated region
        $region93: #{vit_forward.1} parent=51 // pred_check
          %p722 = pneg %p420
        $region94: #{vit_forward.1} parent=51 // pred_check_branch
          %724 = sbr.rel (%p722) target = $region96
        $region95: #{vit_forward.1} parent=51 // pred_region
          %s725 = sand.u32 %s35, 1
          %s726 = scalar_lea.sflag [#allocation10], %s725
          %s727 = sand.u32 %s410, 1
          %s728 = smul.addr %s727, 1024
          %s729 = scalar_lea.vmem [#allocation9], %s728
          %s731 = ssub.s32 16384, 16384
          %732 = vsyncadd %s726, %s731
          %s733 = smul.addr %s35, 256
          %s734 = smul.addr %s733, 64
          %s735 = scalar_lea.hbm %s15, %s734
          %s736 = sshll.u32 %s729, 4
          %s737 = int_to_ptr.vmem [resolvable:$true] %s736
          %742 = dma.hbm_to_vmem [thread:$0]  %s735, 16384, %s737, %s726, 128, 128, 8
        $region96: #{vit_forward.1} parent=51 // pred_fallthru
          _
        // Predicated region
        $region97: #{vit_forward.1} parent=51 // pred_check
          %p743 = pneg %p446
        $region98: #{vit_forward.1} parent=51 // pred_check_branch
          %745 = sbr.rel (%p743) target = $region100
        $region99: #{vit_forward.1} parent=51 // pred_region
          %p746 = scmp.lt.s32.totalorder %s35, 1
          %s747 = scalar_select %p746, %s35, 1
          %s748 = smul.addr %s747, 2
          %s749 = scalar_lea.vmem %s16, %s748
        $region100: #{vit_forward.1} parent=51 // pred_fallthru
          _
      $region52: #{vit_forward.1} parent=5 // pred_fallthru
        _
      %p750 = scmp.le.s32.totalorder 1, %s35
      %p751 = scmp.lt.s32.totalorder %s35, 3
      %p752 = pnand %p750, %p751
      %p753 = pneg %p752
      // Predicated region
      $region101: #{vit_forward.1} parent=5 // pred_check
        _
      $region102: #{vit_forward.1} parent=5 // pred_check_branch
        %755 = sbr.rel (%p752) target = $region104
      $region103: #{vit_forward.1} parent=5 // pred_region
        %s756 = ssub.s32 %s35, 1
        // Predicated region
        $region105: #{vit_forward.1} parent=103 // pred_check
          %p757 = pneg %p77
        $region106: #{vit_forward.1} parent=103 // pred_check_branch
          %759 = sbr.rel (%p757) target = $region108
        $region107: #{vit_forward.1} parent=103 // pred_region
          %760 = dma.done [#allocation4], 4096
        $region108: #{vit_forward.1} parent=103 // pred_fallthru
          _
        %s761 = sand.u32 %s40, 1
        %s762 = scalar_lea.sflag [#allocation7], %s761
        %s763 = sand.u32 %s205, 1
        %s764 = smul.addr %s763, 768
        %s765 = scalar_lea.vmem [#allocation6], %s764
        // Predicated region
        $region109: #{vit_forward.1} parent=103 // pred_check
          %p766 = pneg %p218
        $region110: #{vit_forward.1} parent=103 // pred_check_branch
          %768 = sbr.rel (%p766) target = $region112
        $region111: #{vit_forward.1} parent=103 // pred_region
          %769 = dma.done %s762, 12288
        $region112: #{vit_forward.1} parent=103 // pred_fallthru
          _
        %s770 = sand.u32 %s40, 1
        %s771 = scalar_lea.sflag [#allocation7], %s770
        %s772 = sand.u32 %s361, 1
        %s773 = smul.addr %s772, 1024
        %s774 = scalar_lea.vmem [#allocation8], %s773
        // Predicated region
        $region113: #{vit_forward.1} parent=103 // pred_check
          %p775 = pneg %p374
        $region114: #{vit_forward.1} parent=103 // pred_check_branch
          %777 = sbr.rel (%p775) target = $region116
        $region115: #{vit_forward.1} parent=103 // pred_region
          %778 = dma.done %s771, 16384
        $region116: #{vit_forward.1} parent=103 // pred_fallthru
          _
        %s779 = sand.u32 %s40, 1
        %s780 = scalar_lea.sflag [#allocation10], %s779
        %s781 = sand.u32 %s413, 1
        %s782 = smul.addr %s781, 1024
        %s783 = scalar_lea.vmem [#allocation9], %s782
        // Predicated region
        $region117: #{vit_forward.1} parent=103 // pred_check
          %p784 = pneg %p426
        $region118: #{vit_forward.1} parent=103 // pred_check_branch
          %786 = sbr.rel (%p784) target = $region120
        $region119: #{vit_forward.1} parent=103 // pred_region
          %787 = dma.done %s780, 16384
        $region120: #{vit_forward.1} parent=103 // pred_fallthru
          _
        // Predicated region
        $region121: #{vit_forward.1} parent=103 // pred_check
          %p788 = pneg %p515
        $region122: #{vit_forward.1} parent=103 // pred_check_branch
          %790 = sbr.rel (%p788) target = $region124
        $region123: #{vit_forward.1} parent=103 // pred_region
          %791 = dma.done [#allocation10], 2048
        $region124: #{vit_forward.1} parent=103 // pred_fallthru
          _
        %p792 = pneg %p56
        %p793 = pneg %p53
        %p794 = pneg %p77
        %p795 = pneg %p74
        %p796 = pneg %p98
        %p797 = pneg %p95
        %p798 = pneg %p119
        %p799 = pneg %p116
        %p800 = pneg %p140
        %p801 = pneg %p137
        %p802 = scmp.lt.s32.totalorder %s40, 1
        %s803 = scalar_select %p802, %s40, 1
        %s804 = smul.addr %s803, 2
        %s805 = scalar_lea.vmem %s5, %s804
        %p806 = pneg %p166
        %p807 = pneg %p163
        %p808 = scmp.lt.s32.totalorder %s40, 1
        %s809 = scalar_select %p808, %s40, 1
        %s810 = smul.addr %s809, 2
        %s811 = scalar_lea.vmem %s6, %s810
        %p812 = pneg %p192
        %p813 = pneg %p189
        %s814 = sand.u32 %s40, 1
        %s815 = scalar_lea.sflag [#allocation7], %s814
        %s816 = sand.u32 %s205, 1
        %s817 = smul.addr %s816, 768
        %s818 = scalar_lea.vmem [#allocation6], %s817
        %p819 = pneg %p218
        %p820 = pneg %p215
        %p821 = scmp.lt.s32.totalorder %s40, 1
        %s822 = scalar_select %p821, %s40, 1
        %s823 = smul.addr %s822, 6
        %s824 = scalar_lea.vmem %s8, %s823
        %p825 = pneg %p244
        %p826 = pneg %p241
        %p827 = scmp.lt.s32.totalorder %s40, 1
        %s828 = scalar_select %p827, %s40, 1
        %s829 = smul.addr %s828, 64
        %s830 = smul.addr %s829, 4
        %s831 = scalar_lea.vmem %s9, %s830
        %p832 = pneg %p270
        %p833 = pneg %p267
        %p834 = scmp.lt.s32.totalorder %s40, 1
        %s835 = scalar_select %p834, %s40, 1
        %s836 = smul.addr %s835, 2
        %s837 = scalar_lea.vmem %s10, %s836
        %p838 = pneg %p296
        %p839 = pneg %p293
        %p840 = scmp.lt.s32.totalorder %s40, 1
        %s841 = scalar_select %p840, %s40, 1
        %s842 = smul.addr %s841, 2
        %s843 = scalar_lea.vmem %s11, %s842
        %p844 = pneg %p322
        %p845 = pneg %p319
        %p846 = scmp.lt.s32.totalorder %s40, 1
        %s847 = scalar_select %p846, %s40, 1
        %s848 = smul.addr %s847, 2
        %s849 = scalar_lea.vmem %s12, %s848
        %p850 = pneg %p348
        %p851 = pneg %p345
        %s852 = sand.u32 %s40, 1
        %s853 = scalar_lea.sflag [#allocation7], %s852
        %s854 = sand.u32 %s361, 1
        %s855 = smul.addr %s854, 1024
        %s856 = scalar_lea.vmem [#allocation8], %s855
        %p857 = pneg %p374
        %p858 = pneg %p371
        %p859 = scmp.lt.s32.totalorder %s40, 1
        %s860 = scalar_select %p859, %s40, 1
        %s861 = smul.addr %s860, 8
        %s862 = scalar_lea.vmem %s14, %s861
        %p863 = pneg %p400
        %p864 = pneg %p397
        %s865 = sand.u32 %s40, 1
        %s866 = scalar_lea.sflag [#allocation10], %s865
        %s867 = sand.u32 %s413, 1
        %s868 = smul.addr %s867, 1024
        %s869 = scalar_lea.vmem [#allocation9], %s868
        %p870 = pneg %p426
        %p871 = pneg %p423
        %p872 = scmp.lt.s32.totalorder %s40, 1
        %s873 = scalar_select %p872, %s40, 1
        %s874 = smul.addr %s873, 2
        %s875 = scalar_lea.vmem %s16, %s874
        %p876 = pneg %p452
        %p877 = pneg %p449
        %p878 = pneg %p473
        %p879 = pneg %p470
        %p880 = pneg %p494
        %p881 = pneg %p491
        %p882 = pneg %p515
        %p883 = pneg %p512
        %p884 = pneg %p536
        %p885 = pneg %p533
        %p886 = pneg %p557
        %p887 = pneg %p554
        %p888 = scmp.lt.s32.totalorder %s40, 1
        %s889 = scalar_select %p888, %s40, 1
        %s890 = smul.addr %s889, 2
        %s891 = scalar_lea.vmem %s5, %s890
        %p892 = scmp.lt.s32.totalorder %s40, 1
        %s893 = scalar_select %p892, %s40, 1
        %s894 = smul.addr %s893, 2
        %s895 = scalar_lea.vmem %s6, %s894
        %p896 = scmp.lt.s32.totalorder %s40, 1
        %s897 = scalar_select %p896, %s40, 1
        %s898 = smul.addr %s897, 6
        %s899 = scalar_lea.vmem %s8, %s898
        %p900 = scmp.lt.s32.totalorder %s40, 1
        %s901 = scalar_select %p900, %s40, 1
        %s902 = smul.addr %s901, 64
        %s903 = smul.addr %s902, 4
        %s904 = scalar_lea.vmem %s9, %s903
        %p905 = scmp.lt.s32.totalorder %s40, 1
        %s906 = scalar_select %p905, %s40, 1
        %s907 = smul.addr %s906, 2
        %s908 = scalar_lea.vmem %s10, %s907
        %p909 = scmp.lt.s32.totalorder %s40, 1
        %s910 = scalar_select %p909, %s40, 1
        %s911 = smul.addr %s910, 2
        %s912 = scalar_lea.vmem %s11, %s911
        %p913 = scmp.lt.s32.totalorder %s40, 1
        %s914 = scalar_select %p913, %s40, 1
        %s915 = smul.addr %s914, 2
        %s916 = scalar_lea.vmem %s12, %s915
        %p917 = scmp.lt.s32.totalorder %s40, 1
        %s918 = scalar_select %p917, %s40, 1
        %s919 = smul.addr %s918, 8
        %s920 = scalar_lea.vmem %s14, %s919
        %p921 = scmp.lt.s32.totalorder %s40, 1
        %s922 = scalar_select %p921, %s40, 1
        %s923 = smul.addr %s922, 2
        %s924 = scalar_lea.vmem %s16, %s923
        %p926 = scmp.eq.s32.totalorder %s40, 0
        // Predicated region
        $region125: #{vit_forward.1} parent=103 // pred_check
          %p927 = pneg %p926
        $region126: #{vit_forward.1} parent=103 // pred_check_branch
          %929 = sbr.rel (%p927) target = $region128
        $region127: #{vit_forward.1} parent=103 // pred_region
          %v930 = vld [vmem:[%s0] sm:$0xff]
          %v931 = vld [vmem:[%s0 + $0x8] sm:$0xff]
          %v932 = vpack.c.bf16 %v930, %v930
          %v933 = vpack.c.bf16 %v931, %v931
          %v934 = vld [vmem:[#allocation3] sm:$0xff]
          %v935 = vld [vmem:[#allocation3 + $0x8] sm:$0xff]
          %v936 = vld [vmem:[#allocation3 + $0x10] sm:$0xff]
          %v937 = vld [vmem:[#allocation3 + $0x18] sm:$0xff]
          %v938 = vld [vmem:[#allocation3 + $0x20] sm:$0xff]
          %v939 = vld [vmem:[#allocation3 + $0x28] sm:$0xff]
          %v940 = vld [vmem:[#allocation3 + $0x30] sm:$0xff]
          %v941 = vld [vmem:[#allocation3 + $0x38] sm:$0xff]
          %v942 = vld [vmem:[#allocation3 + $0x40] sm:$0xff]
          %v943 = vld [vmem:[#allocation3 + $0x48] sm:$0xff]
          %v944 = vld [vmem:[#allocation3 + $0x50] sm:$0xff]
          %v945 = vld [vmem:[#allocation3 + $0x58] sm:$0xff]
          %v946 = vld [vmem:[#allocation3 + $0x60] sm:$0xff]
          %v947 = vld [vmem:[#allocation3 + $0x68] sm:$0xff]
          %v948 = vld [vmem:[#allocation3 + $0x70] sm:$0xff]
          %v949 = vld [vmem:[#allocation3 + $0x78] sm:$0xff]
          %v950 = vld [vmem:[#allocation3 + $0x80] sm:$0xff]
          %v951 = vld [vmem:[#allocation3 + $0x88] sm:$0xff]
          %v952 = vld [vmem:[#allocation3 + $0x90] sm:$0xff]
          %v953 = vld [vmem:[#allocation3 + $0x98] sm:$0xff]
          %v954 = vld [vmem:[#allocation3 + $0xa0] sm:$0xff]
          %v955 = vld [vmem:[#allocation3 + $0xa8] sm:$0xff]
          %v956 = vld [vmem:[#allocation3 + $0xb0] sm:$0xff]
          %v957 = vld [vmem:[#allocation3 + $0xb8] sm:$0xff]
          %v958 = vld [vmem:[#allocation3 + $0xc0] sm:$0xff]
          %v959 = vld [vmem:[#allocation3 + $0xc8] sm:$0xff]
          %v960 = vld [vmem:[#allocation3 + $0xd0] sm:$0xff]
          %v961 = vld [vmem:[#allocation3 + $0xd8] sm:$0xff]
          %v962 = vld [vmem:[#allocation3 + $0xe0] sm:$0xff]
          %v963 = vld [vmem:[#allocation3 + $0xe8] sm:$0xff]
          %v964 = vld [vmem:[#allocation3 + $0xf0] sm:$0xff]
          %v965 = vld [vmem:[#allocation3 + $0xf8] sm:$0xff]
          %v966 = vld [vmem:[%s2] sm:$0x3]
          %v968 = vlaneseq
          %v969 = vshrl.u32 %v968, 7
          %v970 = vsub.s32 0, %v969
          %v971 = vrot.slane %v966, %v970
          %v972 = vlaneseq
          %v973 = vshrl.u32 %v972, 7
          %v974 = vsub.s32 1, %v973
          %v975 = vrot.slane %v966, %v974
          %v1010 = vunpack.c.l.b16 %v934
          %v1011 = vunpack.c.h.b16 %v934
          %v1012 = vunpack.c.l.b16 %v935
          %v1013 = vunpack.c.h.b16 %v935
          %v1014 = vunpack.c.l.b16 %v936
          %v1015 = vunpack.c.h.b16 %v936
          %v1016 = vunpack.c.l.b16 %v937
          %v1017 = vunpack.c.h.b16 %v937
          %v1018 = vunpack.c.l.b16 %v938
          %v1019 = vunpack.c.h.b16 %v938
          %v1020 = vunpack.c.l.b16 %v939
          %v1021 = vunpack.c.h.b16 %v939
          %v1022 = vunpack.c.l.b16 %v940
          %v1023 = vunpack.c.h.b16 %v940
          %v1024 = vunpack.c.l.b16 %v941
          %v1025 = vunpack.c.h.b16 %v941
          %v1026 = vunpack.c.l.b16 %v942
          %v1027 = vunpack.c.h.b16 %v942
          %v1028 = vunpack.c.l.b16 %v943
          %v1029 = vunpack.c.h.b16 %v943
          %v1030 = vunpack.c.l.b16 %v944
          %v1031 = vunpack.c.h.b16 %v944
          %v1032 = vunpack.c.l.b16 %v945
          %v1033 = vunpack.c.h.b16 %v945
          %v1034 = vunpack.c.l.b16 %v946
          %v1035 = vunpack.c.h.b16 %v946
          %v1036 = vunpack.c.l.b16 %v947
          %v1037 = vunpack.c.h.b16 %v947
          %v1038 = vunpack.c.l.b16 %v948
          %v1039 = vunpack.c.h.b16 %v948
          %v1040 = vunpack.c.l.b16 %v949
          %v1041 = vunpack.c.h.b16 %v949
          %v1042 = vunpack.c.l.b16 %v950
          %v1043 = vunpack.c.h.b16 %v950
          %v1044 = vunpack.c.l.b16 %v951
          %v1045 = vunpack.c.h.b16 %v951
          %v1046 = vunpack.c.l.b16 %v952
          %v1047 = vunpack.c.h.b16 %v952
          %v1048 = vunpack.c.l.b16 %v953
          %v1049 = vunpack.c.h.b16 %v953
          %v1050 = vunpack.c.l.b16 %v954
          %v1051 = vunpack.c.h.b16 %v954
          %v1052 = vunpack.c.l.b16 %v955
          %v1053 = vunpack.c.h.b16 %v955
          %v1054 = vunpack.c.l.b16 %v956
          %v1055 = vunpack.c.h.b16 %v956
          %v1056 = vunpack.c.l.b16 %v957
          %v1057 = vunpack.c.h.b16 %v957
          %v1058 = vunpack.c.l.b16 %v958
          %v1059 = vunpack.c.h.b16 %v958
          %v1060 = vunpack.c.l.b16 %v959
          %v1061 = vunpack.c.h.b16 %v959
          %v1062 = vunpack.c.l.b16 %v960
          %v1063 = vunpack.c.h.b16 %v960
          %v1064 = vunpack.c.l.b16 %v961
          %v1065 = vunpack.c.h.b16 %v961
          %v1066 = vunpack.c.l.b16 %v962
          %v1067 = vunpack.c.h.b16 %v962
          %v1068 = vunpack.c.l.b16 %v963
          %v1069 = vunpack.c.h.b16 %v963
          %v1070 = vunpack.c.l.b16 %v964
          %v1071 = vunpack.c.h.b16 %v964
          %v1072 = vunpack.c.l.b16 %v965
          %v1073 = vunpack.c.h.b16 %v965
          %v1074 = vpack.c.b16 %v1012, %v1010
          %v1075 = vpack.c.b16 %v1013, %v1011
          %v1076 = vpack.c.b16 %v1016, %v1014
          %v1077 = vpack.c.b16 %v1017, %v1015
          %v1078 = vpack.c.b16 %v1020, %v1018
          %v1079 = vpack.c.b16 %v1021, %v1019
          %v1080 = vpack.c.b16 %v1024, %v1022
          %v1081 = vpack.c.b16 %v1025, %v1023
          %v1082 = vpack.c.b16 %v1028, %v1026
          %v1083 = vpack.c.b16 %v1029, %v1027
          %v1084 = vpack.c.b16 %v1032, %v1030
          %v1085 = vpack.c.b16 %v1033, %v1031
          %v1086 = vpack.c.b16 %v1036, %v1034
          %v1087 = vpack.c.b16 %v1037, %v1035
          %v1088 = vpack.c.b16 %v1040, %v1038
          %v1089 = vpack.c.b16 %v1041, %v1039
          %v1090 = vpack.c.b16 %v1044, %v1042
          %v1091 = vpack.c.b16 %v1045, %v1043
          %v1092 = vpack.c.b16 %v1048, %v1046
          %v1093 = vpack.c.b16 %v1049, %v1047
          %v1094 = vpack.c.b16 %v1052, %v1050
          %v1095 = vpack.c.b16 %v1053, %v1051
          %v1096 = vpack.c.b16 %v1056, %v1054
          %v1097 = vpack.c.b16 %v1057, %v1055
          %v1098 = vpack.c.b16 %v1060, %v1058
          %v1099 = vpack.c.b16 %v1061, %v1059
          %v1100 = vpack.c.b16 %v1064, %v1062
          %v1101 = vpack.c.b16 %v1065, %v1063
          %v1102 = vpack.c.b16 %v1068, %v1066
          %v1103 = vpack.c.b16 %v1069, %v1067
          %v1104 = vpack.c.b16 %v1072, %v1070
          %v1105 = vpack.c.b16 %v1073, %v1071
          %1138 = vmatprep.subr.bf16.mxu0 %v1089
          %1139 = vmatpush1.bf16.msra.mxu0 %v1088
          %1140 = vmatprep.subr.bf16.mxu0 %v1087
          %1141 = vmatpush1.bf16.msra.mxu0 %v1086
          %1142 = vmatprep.subr.bf16.mxu0 %v1085
          %1143 = vmatpush1.bf16.msra.mxu0 %v1084
          %1144 = vmatprep.subr.bf16.mxu0 %v1083
          %1145 = vmatpush1.bf16.msra.mxu0 %v1082
          %1146 = vmatprep.subr.bf16.mxu0 %v1081
          %1147 = vmatpush1.bf16.msra.mxu0 %v1080
          %1148 = vmatprep.subr.bf16.mxu0 %v1079
          %1149 = vmatpush1.bf16.msra.mxu0 %v1078
          %1150 = vmatprep.subr.bf16.mxu0 %v1077
          %1151 = vmatpush1.bf16.msra.mxu0 %v1076
          %1152 = vmatprep.subr.bf16.mxu0 %v1075
          %1153 = vmatpush1.bf16.msra.mxu0 %v1074
          %1154 = vmatprep.subr.bf16.mxu0 %v1105
          %1155 = vmatpush2.bf16.msra.mxu0 %v1104
          %1156 = vmatprep.subr.bf16.mxu0 %v1103
          %1157 = vmatpush2.bf16.msra.mxu0 %v1102
          %1158 = vmatprep.subr.bf16.mxu0 %v1101
          %1159 = vmatpush2.bf16.msra.mxu0 %v1100
          %1160 = vmatprep.subr.bf16.mxu0 %v1099
          %1161 = vmatpush2.bf16.msra.mxu0 %v1098
          %1162 = vmatprep.subr.bf16.mxu0 %v1097
          %1163 = vmatpush2.bf16.msra.mxu0 %v1096
          %1164 = vmatprep.subr.bf16.mxu0 %v1095
          %1165 = vmatpush2.bf16.msra.mxu0 %v1094
          %1166 = vmatprep.subr.bf16.mxu0 %v1093
          %1167 = vmatpush2.bf16.msra.mxu0 %v1092
          %1168 = vmatprep.subr.bf16.mxu0 %v1091
          %1169 = vmatpush2.bf16.msra.mxu0 %v1090
          %1170 = vmatprep.mubr.bf16.mxu0 %v933
          %1171 = vmatmul.mubr.bf16.gmra.mxu0 %v932
          %v1172 = vpop.f32.mrf.mxu0
          %v1173 = vadd.f32 %v971, %v1172
          %v1174 = vpop.f32.mrf.mxu0
          %v1175 = vadd.f32 %v975, %v1174
          %v1176 = vpop.f32.mrf.mxu0
          %v1177 = vpop.f32.mrf.mxu0
          %1178 = vdwg.mxu0
          %v1179 = vld [vmem:[%s3] sm:$0x3]
          %v1180 = vld [vmem:[%s4] ss:$8 sm:$0x3]
          %v1181 = vadd.f32 %v1179, %v1180
          %v1182 = vlaneseq
          %vm1183 = vcmp.ge.s32.totalorder %v1182, 0
          %vm1184 = vcmp.lt.s32.totalorder %v1182, 256
          %vm1185 = vmand %vm1183, %vm1184
          %1186 = vst.msk [vmem:[#allocation2] ss:$8 sm:$0x3] %vm1185, %v1181
          %1187 = vst.msk [vmem:[#allocation2] ss:$8 sm:$0x0] %vm1185, %v1181
          %v1188 = vld [vmem:[%s4] sm:$0x1e]
          %v1189 = vld [vmem:[%s4 + $0x8] sm:$0x1e]
          %v1192 = vrot.slane %v1188, 1
          %v1193 = vrot.slane %v1189, 1
          %v1196 = vadd.f32 %v1173, %v1192
          %v1197 = vadd.f32 %v1175, %v1193
          %v1200 = vrot.slane %v1196, 7
          %v1201 = vrot.slane %v1197, 7
          %1204 = vst [vmem:[#allocation2] sm:$0x1e] %v1200
          %1205 = vst [vmem:[#allocation2 + $0x8] sm:$0x1e] %v1201
          %s1206 = scalar_lea.vmem [#allocation2], 5
          %1207 = vst.msk [vmem:[%s1206] ss:$8 sm:$0x3] %vm1185, %v1181
          %1208 = vst.msk [vmem:[%s1206] ss:$8 sm:$0x0] %vm1185, %v1181
          %v1209 = vld [vmem:[%s4] sm:$0x1e]
          %v1210 = vld [vmem:[%s4 + $0x8] sm:$0x1e]
          %v1213 = vrot.slane %v1209, 5
          %v1214 = vrot.slane %v1210, 5
          %v1217 = vadd.f32 %v1173, %v1213
          %v1218 = vadd.f32 %v1175, %v1214
          %v1221 = vrot.slane %v1217, 6
          %v1222 = vrot.slane %v1218, 6
          %1225 = vst [vmem:[#allocation2] sm:$0xc0] %v1221
          %1226 = vst [vmem:[#allocation2 + $0x8] sm:$0xc0] %v1222
          %1227 = vst [vmem:[#allocation2 + $0x10] sm:$0x3] %v1221
          %1228 = vst [vmem:[#allocation2 + $0x18] sm:$0x3] %v1222
        $region128: #{vit_forward.1} parent=103 // pred_fallthru
          _
        %v1229 = vld [vmem:[%s891] sm:$0x3]
        %v1230 = vld [vmem:[%s895] sm:$0x3]
        %v1231 = vld [vmem:[%s765] sm:$0xff]
        %v1232 = vld [vmem:[%s765 + $0x8] sm:$0xff]
        %v1233 = vld [vmem:[%s765 + $0x10] sm:$0xff]
        %v1234 = vld [vmem:[%s765 + $0x18] sm:$0xff]
        %v1235 = vld [vmem:[%s765 + $0x20] sm:$0xff]
        %v1236 = vld [vmem:[%s765 + $0x28] sm:$0xff]
        %v1237 = vld [vmem:[%s765 + $0x30] sm:$0xff]
        %v1238 = vld [vmem:[%s765 + $0x38] sm:$0xff]
        %v1239 = vld [vmem:[%s765 + $0x40] sm:$0xff]
        %v1240 = vld [vmem:[%s765 + $0x48] sm:$0xff]
        %v1241 = vld [vmem:[%s765 + $0x50] sm:$0xff]
        %v1242 = vld [vmem:[%s765 + $0x58] sm:$0xff]
        %v1243 = vld [vmem:[%s765 + $0x60] sm:$0xff]
        %v1244 = vld [vmem:[%s765 + $0x68] sm:$0xff]
        %v1245 = vld [vmem:[%s765 + $0x70] sm:$0xff]
        %v1246 = vld [vmem:[%s765 + $0x78] sm:$0xff]
        %v1247 = vld [vmem:[%s765 + $0x80] sm:$0xff]
        %v1248 = vld [vmem:[%s765 + $0x88] sm:$0xff]
        %v1249 = vld [vmem:[%s765 + $0x90] sm:$0xff]
        %v1250 = vld [vmem:[%s765 + $0x98] sm:$0xff]
        %v1251 = vld [vmem:[%s765 + $0xa0] sm:$0xff]
        %v1252 = vld [vmem:[%s765 + $0xa8] sm:$0xff]
        %v1253 = vld [vmem:[%s765 + $0xb0] sm:$0xff]
        %v1254 = vld [vmem:[%s765 + $0xb8] sm:$0xff]
        %v1255 = vld [vmem:[%s765 + $0xc0] sm:$0xff]
        %v1256 = vld [vmem:[%s765 + $0xc8] sm:$0xff]
        %v1257 = vld [vmem:[%s765 + $0xd0] sm:$0xff]
        %v1258 = vld [vmem:[%s765 + $0xd8] sm:$0xff]
        %v1259 = vld [vmem:[%s765 + $0xe0] sm:$0xff]
        %v1260 = vld [vmem:[%s765 + $0xe8] sm:$0xff]
        %v1261 = vld [vmem:[%s765 + $0xf0] sm:$0xff]
        %v1262 = vld [vmem:[%s765 + $0xf8] sm:$0xff]
        %v1263 = vld [vmem:[%s765 + $0x100] sm:$0xff]
        %v1264 = vld [vmem:[%s765 + $0x108] sm:$0xff]
        %v1265 = vld [vmem:[%s765 + $0x110] sm:$0xff]
        %v1266 = vld [vmem:[%s765 + $0x118] sm:$0xff]
        %v1267 = vld [vmem:[%s765 + $0x120] sm:$0xff]
        %v1268 = vld [vmem:[%s765 + $0x128] sm:$0xff]
        %v1269 = vld [vmem:[%s765 + $0x130] sm:$0xff]
        %v1270 = vld [vmem:[%s765 + $0x138] sm:$0xff]
        %v1271 = vld [vmem:[%s765 + $0x140] sm:$0xff]
        %v1272 = vld [vmem:[%s765 + $0x148] sm:$0xff]
        %v1273 = vld [vmem:[%s765 + $0x150] sm:$0xff]
        %v1274 = vld [vmem:[%s765 + $0x158] sm:$0xff]
        %v1275 = vld [vmem:[%s765 + $0x160] sm:$0xff]
        %v1276 = vld [vmem:[%s765 + $0x168] sm:$0xff]
        %v1277 = vld [vmem:[%s765 + $0x170] sm:$0xff]
        %v1278 = vld [vmem:[%s765 + $0x178] sm:$0xff]
        %v1279 = vld [vmem:[%s765 + $0x180] sm:$0xff]
        %v1280 = vld [vmem:[%s765 + $0x188] sm:$0xff]
        %v1281 = vld [vmem:[%s765 + $0x190] sm:$0xff]
        %v1282 = vld [vmem:[%s765 + $0x198] sm:$0xff]
        %v1283 = vld [vmem:[%s765 + $0x1a0] sm:$0xff]
        %v1284 = vld [vmem:[%s765 + $0x1a8] sm:$0xff]
        %v1285 = vld [vmem:[%s765 + $0x1b0] sm:$0xff]
        %v1286 = vld [vmem:[%s765 + $0x1b8] sm:$0xff]
        %v1287 = vld [vmem:[%s765 + $0x1c0] sm:$0xff]
        %v1288 = vld [vmem:[%s765 + $0x1c8] sm:$0xff]
        %v1289 = vld [vmem:[%s765 + $0x1d0] sm:$0xff]
        %v1290 = vld [vmem:[%s765 + $0x1d8] sm:$0xff]
        %v1291 = vld [vmem:[%s765 + $0x1e0] sm:$0xff]
        %v1292 = vld [vmem:[%s765 + $0x1e8] sm:$0xff]
        %v1293 = vld [vmem:[%s765 + $0x1f0] sm:$0xff]
        %v1294 = vld [vmem:[%s765 + $0x1f8] sm:$0xff]
        %v1295 = vld [vmem:[%s765 + $0x200] sm:$0xff]
        %v1296 = vld [vmem:[%s765 + $0x208] sm:$0xff]
        %v1297 = vld [vmem:[%s765 + $0x210] sm:$0xff]
        %v1298 = vld [vmem:[%s765 + $0x218] sm:$0xff]
        %v1299 = vld [vmem:[%s765 + $0x220] sm:$0xff]
        %v1300 = vld [vmem:[%s765 + $0x228] sm:$0xff]
        %v1301 = vld [vmem:[%s765 + $0x230] sm:$0xff]
        %v1302 = vld [vmem:[%s765 + $0x238] sm:$0xff]
        %v1303 = vld [vmem:[%s765 + $0x240] sm:$0xff]
        %v1304 = vld [vmem:[%s765 + $0x248] sm:$0xff]
        %v1305 = vld [vmem:[%s765 + $0x250] sm:$0xff]
        %v1306 = vld [vmem:[%s765 + $0x258] sm:$0xff]
        %v1307 = vld [vmem:[%s765 + $0x260] sm:$0xff]
        %v1308 = vld [vmem:[%s765 + $0x268] sm:$0xff]
        %v1309 = vld [vmem:[%s765 + $0x270] sm:$0xff]
        %v1310 = vld [vmem:[%s765 + $0x278] sm:$0xff]
        %v1311 = vld [vmem:[%s765 + $0x280] sm:$0xff]
        %v1312 = vld [vmem:[%s765 + $0x288] sm:$0xff]
        %v1313 = vld [vmem:[%s765 + $0x290] sm:$0xff]
        %v1314 = vld [vmem:[%s765 + $0x298] sm:$0xff]
        %v1315 = vld [vmem:[%s765 + $0x2a0] sm:$0xff]
        %v1316 = vld [vmem:[%s765 + $0x2a8] sm:$0xff]
        %v1317 = vld [vmem:[%s765 + $0x2b0] sm:$0xff]
        %v1318 = vld [vmem:[%s765 + $0x2b8] sm:$0xff]
        %v1319 = vld [vmem:[%s765 + $0x2c0] sm:$0xff]
        %v1320 = vld [vmem:[%s765 + $0x2c8] sm:$0xff]
        %v1321 = vld [vmem:[%s765 + $0x2d0] sm:$0xff]
        %v1322 = vld [vmem:[%s765 + $0x2d8] sm:$0xff]
        %v1323 = vld [vmem:[%s765 + $0x2e0] sm:$0xff]
        %v1324 = vld [vmem:[%s765 + $0x2e8] sm:$0xff]
        %v1325 = vld [vmem:[%s765 + $0x2f0] sm:$0xff]
        %v1326 = vld [vmem:[%s765 + $0x2f8] sm:$0xff]
        %v1327 = vld [vmem:[%s899] sm:$0x3f]
        %v1328 = vld [vmem:[%s904] sm:$0xff]
        %v1329 = vld [vmem:[%s904 + $0x8] sm:$0xff]
        %v1330 = vld [vmem:[%s904 + $0x10] sm:$0xff]
        %v1331 = vld [vmem:[%s904 + $0x18] sm:$0xff]
        %v1332 = vld [vmem:[%s904 + $0x20] sm:$0xff]
        %v1333 = vld [vmem:[%s904 + $0x28] sm:$0xff]
        %v1334 = vld [vmem:[%s904 + $0x30] sm:$0xff]
        %v1335 = vld [vmem:[%s904 + $0x38] sm:$0xff]
        %v1336 = vld [vmem:[%s904 + $0x40] sm:$0xff]
        %v1337 = vld [vmem:[%s904 + $0x48] sm:$0xff]
        %v1338 = vld [vmem:[%s904 + $0x50] sm:$0xff]
        %v1339 = vld [vmem:[%s904 + $0x58] sm:$0xff]
        %v1340 = vld [vmem:[%s904 + $0x60] sm:$0xff]
        %v1341 = vld [vmem:[%s904 + $0x68] sm:$0xff]
        %v1342 = vld [vmem:[%s904 + $0x70] sm:$0xff]
        %v1343 = vld [vmem:[%s904 + $0x78] sm:$0xff]
        %v1344 = vld [vmem:[%s904 + $0x80] sm:$0xff]
        %v1345 = vld [vmem:[%s904 + $0x88] sm:$0xff]
        %v1346 = vld [vmem:[%s904 + $0x90] sm:$0xff]
        %v1347 = vld [vmem:[%s904 + $0x98] sm:$0xff]
        %v1348 = vld [vmem:[%s904 + $0xa0] sm:$0xff]
        %v1349 = vld [vmem:[%s904 + $0xa8] sm:$0xff]
        %v1350 = vld [vmem:[%s904 + $0xb0] sm:$0xff]
        %v1351 = vld [vmem:[%s904 + $0xb8] sm:$0xff]
        %v1352 = vld [vmem:[%s904 + $0xc0] sm:$0xff]
        %v1353 = vld [vmem:[%s904 + $0xc8] sm:$0xff]
        %v1354 = vld [vmem:[%s904 + $0xd0] sm:$0xff]
        %v1355 = vld [vmem:[%s904 + $0xd8] sm:$0xff]
        %v1356 = vld [vmem:[%s904 + $0xe0] sm:$0xff]
        %v1357 = vld [vmem:[%s904 + $0xe8] sm:$0xff]
        %v1358 = vld [vmem:[%s904 + $0xf0] sm:$0xff]
        %v1359 = vld [vmem:[%s904 + $0xf8] sm:$0xff]
        %v1360 = vld [vmem:[%s908] sm:$0x3]
        %v1361 = vld [vmem:[%s912] sm:$0x3]
        %v1362 = vld [vmem:[%s916] sm:$0x3]
        %v1363 = vld [vmem:[%s774] sm:$0xff]
        %v1364 = vld [vmem:[%s774 + $0x8] sm:$0xff]
        %v1365 = vld [vmem:[%s774 + $0x10] sm:$0xff]
        %v1366 = vld [vmem:[%s774 + $0x18] sm:$0xff]
        %v1367 = vld [vmem:[%s774 + $0x20] sm:$0xff]
        %v1368 = vld [vmem:[%s774 + $0x28] sm:$0xff]
        %v1369 = vld [vmem:[%s774 + $0x30] sm:$0xff]
        %v1370 = vld [vmem:[%s774 + $0x38] sm:$0xff]
        %v1371 = vld [vmem:[%s774 + $0x40] sm:$0xff]
        %v1372 = vld [vmem:[%s774 + $0x48] sm:$0xff]
        %v1373 = vld [vmem:[%s774 + $0x50] sm:$0xff]
        %v1374 = vld [vmem:[%s774 + $0x58] sm:$0xff]
        %v1375 = vld [vmem:[%s774 + $0x60] sm:$0xff]
        %v1376 = vld [vmem:[%s774 + $0x68] sm:$0xff]
        %v1377 = vld [vmem:[%s774 + $0x70] sm:$0xff]
        %v1378 = vld [vmem:[%s774 + $0x78] sm:$0xff]
        %v1379 = vld [vmem:[%s774 + $0x80] sm:$0xff]
        %v1380 = vld [vmem:[%s774 + $0x88] sm:$0xff]
        %v1381 = vld [vmem:[%s774 + $0x90] sm:$0xff]
        %v1382 = vld [vmem:[%s774 + $0x98] sm:$0xff]
        %v1383 = vld [vmem:[%s774 + $0xa0] sm:$0xff]
        %v1384 = vld [vmem:[%s774 + $0xa8] sm:$0xff]
        %v1385 = vld [vmem:[%s774 + $0xb0] sm:$0xff]
        %v1386 = vld [vmem:[%s774 + $0xb8] sm:$0xff]
        %v1387 = vld [vmem:[%s774 + $0xc0] sm:$0xff]
        %v1388 = vld [vmem:[%s774 + $0xc8] sm:$0xff]
        %v1389 = vld [vmem:[%s774 + $0xd0] sm:$0xff]
        %v1390 = vld [vmem:[%s774 + $0xd8] sm:$0xff]
        %v1391 = vld [vmem:[%s774 + $0xe0] sm:$0xff]
        %v1392 = vld [vmem:[%s774 + $0xe8] sm:$0xff]
        %v1393 = vld [vmem:[%s774 + $0xf0] sm:$0xff]
        %v1394 = vld [vmem:[%s774 + $0xf8] sm:$0xff]
        %v1395 = vld [vmem:[%s774 + $0x100] sm:$0xff]
        %v1396 = vld [vmem:[%s774 + $0x108] sm:$0xff]
        %v1397 = vld [vmem:[%s774 + $0x110] sm:$0xff]
        %v1398 = vld [vmem:[%s774 + $0x118] sm:$0xff]
        %v1399 = vld [vmem:[%s774 + $0x120] sm:$0xff]
        %v1400 = vld [vmem:[%s774 + $0x128] sm:$0xff]
        %v1401 = vld [vmem:[%s774 + $0x130] sm:$0xff]
        %v1402 = vld [vmem:[%s774 + $0x138] sm:$0xff]
        %v1403 = vld [vmem:[%s774 + $0x140] sm:$0xff]
        %v1404 = vld [vmem:[%s774 + $0x148] sm:$0xff]
        %v1405 = vld [vmem:[%s774 + $0x150] sm:$0xff]
        %v1406 = vld [vmem:[%s774 + $0x158] sm:$0xff]
        %v1407 = vld [vmem:[%s774 + $0x160] sm:$0xff]
        %v1408 = vld [vmem:[%s774 + $0x168] sm:$0xff]
        %v1409 = vld [vmem:[%s774 + $0x170] sm:$0xff]
        %v1410 = vld [vmem:[%s774 + $0x178] sm:$0xff]
        %v1411 = vld [vmem:[%s774 + $0x180] sm:$0xff]
        %v1412 = vld [vmem:[%s774 + $0x188] sm:$0xff]
        %v1413 = vld [vmem:[%s774 + $0x190] sm:$0xff]
        %v1414 = vld [vmem:[%s774 + $0x198] sm:$0xff]
        %v1415 = vld [vmem:[%s774 + $0x1a0] sm:$0xff]
        %v1416 = vld [vmem:[%s774 + $0x1a8] sm:$0xff]
        %v1417 = vld [vmem:[%s774 + $0x1b0] sm:$0xff]
        %v1418 = vld [vmem:[%s774 + $0x1b8] sm:$0xff]
        %v1419 = vld [vmem:[%s774 + $0x1c0] sm:$0xff]
        %v1420 = vld [vmem:[%s774 + $0x1c8] sm:$0xff]
        %v1421 = vld [vmem:[%s774 + $0x1d0] sm:$0xff]
        %v1422 = vld [vmem:[%s774 + $0x1d8] sm:$0xff]
        %v1423 = vld [vmem:[%s774 + $0x1e0] sm:$0xff]
        %v1424 = vld [vmem:[%s774 + $0x1e8] sm:$0xff]
        %v1425 = vld [vmem:[%s774 + $0x1f0] sm:$0xff]
        %v1426 = vld [vmem:[%s774 + $0x1f8] sm:$0xff]
        %v1427 = vld [vmem:[%s774 + $0x200] sm:$0xff]
        %v1428 = vld [vmem:[%s774 + $0x208] sm:$0xff]
        %v1429 = vld [vmem:[%s774 + $0x210] sm:$0xff]
        %v1430 = vld [vmem:[%s774 + $0x218] sm:$0xff]
        %v1431 = vld [vmem:[%s774 + $0x220] sm:$0xff]
        %v1432 = vld [vmem:[%s774 + $0x228] sm:$0xff]
        %v1433 = vld [vmem:[%s774 + $0x230] sm:$0xff]
        %v1434 = vld [vmem:[%s774 + $0x238] sm:$0xff]
        %v1435 = vld [vmem:[%s774 + $0x240] sm:$0xff]
        %v1436 = vld [vmem:[%s774 + $0x248] sm:$0xff]
        %v1437 = vld [vmem:[%s774 + $0x250] sm:$0xff]
        %v1438 = vld [vmem:[%s774 + $0x258] sm:$0xff]
        %v1439 = vld [vmem:[%s774 + $0x260] sm:$0xff]
        %v1440 = vld [vmem:[%s774 + $0x268] sm:$0xff]
        %v1441 = vld [vmem:[%s774 + $0x270] sm:$0xff]
        %v1442 = vld [vmem:[%s774 + $0x278] sm:$0xff]
        %v1443 = vld [vmem:[%s774 + $0x280] sm:$0xff]
        %v1444 = vld [vmem:[%s774 + $0x288] sm:$0xff]
        %v1445 = vld [vmem:[%s774 + $0x290] sm:$0xff]
        %v1446 = vld [vmem:[%s774 + $0x298] sm:$0xff]
        %v1447 = vld [vmem:[%s774 + $0x2a0] sm:$0xff]
        %v1448 = vld [vmem:[%s774 + $0x2a8] sm:$0xff]
        %v1449 = vld [vmem:[%s774 + $0x2b0] sm:$0xff]
        %v1450 = vld [vmem:[%s774 + $0x2b8] sm:$0xff]
        %v1451 = vld [vmem:[%s774 + $0x2c0] sm:$0xff]
        %v1452 = vld [vmem:[%s774 + $0x2c8] sm:$0xff]
        %v1453 = vld [vmem:[%s774 + $0x2d0] sm:$0xff]
        %v1454 = vld [vmem:[%s774 + $0x2d8] sm:$0xff]
        %v1455 = vld [vmem:[%s774 + $0x2e0] sm:$0xff]
        %v1456 = vld [vmem:[%s774 + $0x2e8] sm:$0xff]
        %v1457 = vld [vmem:[%s774 + $0x2f0] sm:$0xff]
        %v1458 = vld [vmem:[%s774 + $0x2f8] sm:$0xff]
        %v1459 = vld [vmem:[%s774 + $0x300] sm:$0xff]
        %v1460 = vld [vmem:[%s774 + $0x308] sm:$0xff]
        %v1461 = vld [vmem:[%s774 + $0x310] sm:$0xff]
        %v1462 = vld [vmem:[%s774 + $0x318] sm:$0xff]
        %v1463 = vld [vmem:[%s774 + $0x320] sm:$0xff]
        %v1464 = vld [vmem:[%s774 + $0x328] sm:$0xff]
        %v1465 = vld [vmem:[%s774 + $0x330] sm:$0xff]
        %v1466 = vld [vmem:[%s774 + $0x338] sm:$0xff]
        %v1467 = vld [vmem:[%s774 + $0x340] sm:$0xff]
        %v1468 = vld [vmem:[%s774 + $0x348] sm:$0xff]
        %v1469 = vld [vmem:[%s774 + $0x350] sm:$0xff]
        %v1470 = vld [vmem:[%s774 + $0x358] sm:$0xff]
        %v1471 = vld [vmem:[%s774 + $0x360] sm:$0xff]
        %v1472 = vld [vmem:[%s774 + $0x368] sm:$0xff]
        %v1473 = vld [vmem:[%s774 + $0x370] sm:$0xff]
        %v1474 = vld [vmem:[%s774 + $0x378] sm:$0xff]
        %v1475 = vld [vmem:[%s774 + $0x380] sm:$0xff]
        %v1476 = vld [vmem:[%s774 + $0x388] sm:$0xff]
        %v1477 = vld [vmem:[%s774 + $0x390] sm:$0xff]
        %v1478 = vld [vmem:[%s774 + $0x398] sm:$0xff]
        %v1479 = vld [vmem:[%s774 + $0x3a0] sm:$0xff]
        %v1480 = vld [vmem:[%s774 + $0x3a8] sm:$0xff]
        %v1481 = vld [vmem:[%s774 + $0x3b0] sm:$0xff]
        %v1482 = vld [vmem:[%s774 + $0x3b8] sm:$0xff]
        %v1483 = vld [vmem:[%s774 + $0x3c0] sm:$0xff]
        %v1484 = vld [vmem:[%s774 + $0x3c8] sm:$0xff]
        %v1485 = vld [vmem:[%s774 + $0x3d0] sm:$0xff]
        %v1486 = vld [vmem:[%s774 + $0x3d8] sm:$0xff]
        %v1487 = vld [vmem:[%s774 + $0x3e0] sm:$0xff]
        %v1488 = vld [vmem:[%s774 + $0x3e8] sm:$0xff]
        %v1489 = vld [vmem:[%s774 + $0x3f0] sm:$0xff]
        %v1490 = vld [vmem:[%s774 + $0x3f8] sm:$0xff]
        %v1491 = vld [vmem:[%s920] sm:$0xff]
        %v1492 = vld [vmem:[%s783] sm:$0xff]
        %v1493 = vld [vmem:[%s783 + $0x8] sm:$0xff]
        %v1494 = vld [vmem:[%s783 + $0x10] sm:$0xff]
        %v1495 = vld [vmem:[%s783 + $0x18] sm:$0xff]
        %v1496 = vld [vmem:[%s783 + $0x20] sm:$0xff]
        %v1497 = vld [vmem:[%s783 + $0x28] sm:$0xff]
        %v1498 = vld [vmem:[%s783 + $0x30] sm:$0xff]
        %v1499 = vld [vmem:[%s783 + $0x38] sm:$0xff]
        %v1500 = vld [vmem:[%s783 + $0x40] sm:$0xff]
        %v1501 = vld [vmem:[%s783 + $0x48] sm:$0xff]
        %v1502 = vld [vmem:[%s783 + $0x50] sm:$0xff]
        %v1503 = vld [vmem:[%s783 + $0x58] sm:$0xff]
        %v1504 = vld [vmem:[%s783 + $0x60] sm:$0xff]
        %v1505 = vld [vmem:[%s783 + $0x68] sm:$0xff]
        %v1506 = vld [vmem:[%s783 + $0x70] sm:$0xff]
        %v1507 = vld [vmem:[%s783 + $0x78] sm:$0xff]
        %v1508 = vld [vmem:[%s783 + $0x80] sm:$0xff]
        %v1509 = vld [vmem:[%s783 + $0x88] sm:$0xff]
        %v1510 = vld [vmem:[%s783 + $0x90] sm:$0xff]
        %v1511 = vld [vmem:[%s783 + $0x98] sm:$0xff]
        %v1512 = vld [vmem:[%s783 + $0xa0] sm:$0xff]
        %v1513 = vld [vmem:[%s783 + $0xa8] sm:$0xff]
        %v1514 = vld [vmem:[%s783 + $0xb0] sm:$0xff]
        %v1515 = vld [vmem:[%s783 + $0xb8] sm:$0xff]
        %v1516 = vld [vmem:[%s783 + $0xc0] sm:$0xff]
        %v1517 = vld [vmem:[%s783 + $0xc8] sm:$0xff]
        %v1518 = vld [vmem:[%s783 + $0xd0] sm:$0xff]
        %v1519 = vld [vmem:[%s783 + $0xd8] sm:$0xff]
        %v1520 = vld [vmem:[%s783 + $0xe0] sm:$0xff]
        %v1521 = vld [vmem:[%s783 + $0xe8] sm:$0xff]
        %v1522 = vld [vmem:[%s783 + $0xf0] sm:$0xff]
        %v1523 = vld [vmem:[%s783 + $0xf8] sm:$0xff]
        %v1524 = vld [vmem:[%s783 + $0x100] sm:$0xff]
        %v1525 = vld [vmem:[%s783 + $0x108] sm:$0xff]
        %v1526 = vld [vmem:[%s783 + $0x110] sm:$0xff]
        %v1527 = vld [vmem:[%s783 + $0x118] sm:$0xff]
        %v1528 = vld [vmem:[%s783 + $0x120] sm:$0xff]
        %v1529 = vld [vmem:[%s783 + $0x128] sm:$0xff]
        %v1530 = vld [vmem:[%s783 + $0x130] sm:$0xff]
        %v1531 = vld [vmem:[%s783 + $0x138] sm:$0xff]
        %v1532 = vld [vmem:[%s783 + $0x140] sm:$0xff]
        %v1533 = vld [vmem:[%s783 + $0x148] sm:$0xff]
        %v1534 = vld [vmem:[%s783 + $0x150] sm:$0xff]
        %v1535 = vld [vmem:[%s783 + $0x158] sm:$0xff]
        %v1536 = vld [vmem:[%s783 + $0x160] sm:$0xff]
        %v1537 = vld [vmem:[%s783 + $0x168] sm:$0xff]
        %v1538 = vld [vmem:[%s783 + $0x170] sm:$0xff]
        %v1539 = vld [vmem:[%s783 + $0x178] sm:$0xff]
        %v1540 = vld [vmem:[%s783 + $0x180] sm:$0xff]
        %v1541 = vld [vmem:[%s783 + $0x188] sm:$0xff]
        %v1542 = vld [vmem:[%s783 + $0x190] sm:$0xff]
        %v1543 = vld [vmem:[%s783 + $0x198] sm:$0xff]
        %v1544 = vld [vmem:[%s783 + $0x1a0] sm:$0xff]
        %v1545 = vld [vmem:[%s783 + $0x1a8] sm:$0xff]
        %v1546 = vld [vmem:[%s783 + $0x1b0] sm:$0xff]
        %v1547 = vld [vmem:[%s783 + $0x1b8] sm:$0xff]
        %v1548 = vld [vmem:[%s783 + $0x1c0] sm:$0xff]
        %v1549 = vld [vmem:[%s783 + $0x1c8] sm:$0xff]
        %v1550 = vld [vmem:[%s783 + $0x1d0] sm:$0xff]
        %v1551 = vld [vmem:[%s783 + $0x1d8] sm:$0xff]
        %v1552 = vld [vmem:[%s783 + $0x1e0] sm:$0xff]
        %v1553 = vld [vmem:[%s783 + $0x1e8] sm:$0xff]
        %v1554 = vld [vmem:[%s783 + $0x1f0] sm:$0xff]
        %v1555 = vld [vmem:[%s783 + $0x1f8] sm:$0xff]
        %v1556 = vld [vmem:[%s783 + $0x200] sm:$0xff]
        %v1557 = vld [vmem:[%s783 + $0x208] sm:$0xff]
        %v1558 = vld [vmem:[%s783 + $0x210] sm:$0xff]
        %v1559 = vld [vmem:[%s783 + $0x218] sm:$0xff]
        %v1560 = vld [vmem:[%s783 + $0x220] sm:$0xff]
        %v1561 = vld [vmem:[%s783 + $0x228] sm:$0xff]
        %v1562 = vld [vmem:[%s783 + $0x230] sm:$0xff]
        %v1563 = vld [vmem:[%s783 + $0x238] sm:$0xff]
        %v1564 = vld [vmem:[%s783 + $0x240] sm:$0xff]
        %v1565 = vld [vmem:[%s783 + $0x248] sm:$0xff]
        %v1566 = vld [vmem:[%s783 + $0x250] sm:$0xff]
        %v1567 = vld [vmem:[%s783 + $0x258] sm:$0xff]
        %v1568 = vld [vmem:[%s783 + $0x260] sm:$0xff]
        %v1569 = vld [vmem:[%s783 + $0x268] sm:$0xff]
        %v1570 = vld [vmem:[%s783 + $0x270] sm:$0xff]
        %v1571 = vld [vmem:[%s783 + $0x278] sm:$0xff]
        %v1572 = vld [vmem:[%s783 + $0x280] sm:$0xff]
        %v1573 = vld [vmem:[%s783 + $0x288] sm:$0xff]
        %v1574 = vld [vmem:[%s783 + $0x290] sm:$0xff]
        %v1575 = vld [vmem:[%s783 + $0x298] sm:$0xff]
        %v1576 = vld [vmem:[%s783 + $0x2a0] sm:$0xff]
        %v1577 = vld [vmem:[%s783 + $0x2a8] sm:$0xff]
        %v1578 = vld [vmem:[%s783 + $0x2b0] sm:$0xff]
        %v1579 = vld [vmem:[%s783 + $0x2b8] sm:$0xff]
        %v1580 = vld [vmem:[%s783 + $0x2c0] sm:$0xff]
        %v1581 = vld [vmem:[%s783 + $0x2c8] sm:$0xff]
        %v1582 = vld [vmem:[%s783 + $0x2d0] sm:$0xff]
        %v1583 = vld [vmem:[%s783 + $0x2d8] sm:$0xff]
        %v1584 = vld [vmem:[%s783 + $0x2e0] sm:$0xff]
        %v1585 = vld [vmem:[%s783 + $0x2e8] sm:$0xff]
        %v1586 = vld [vmem:[%s783 + $0x2f0] sm:$0xff]
        %v1587 = vld [vmem:[%s783 + $0x2f8] sm:$0xff]
        %v1588 = vld [vmem:[%s783 + $0x300] sm:$0xff]
        %v1589 = vld [vmem:[%s783 + $0x308] sm:$0xff]
        %v1590 = vld [vmem:[%s783 + $0x310] sm:$0xff]
        %v1591 = vld [vmem:[%s783 + $0x318] sm:$0xff]
        %v1592 = vld [vmem:[%s783 + $0x320] sm:$0xff]
        %v1593 = vld [vmem:[%s783 + $0x328] sm:$0xff]
        %v1594 = vld [vmem:[%s783 + $0x330] sm:$0xff]
        %v1595 = vld [vmem:[%s783 + $0x338] sm:$0xff]
        %v1596 = vld [vmem:[%s783 + $0x340] sm:$0xff]
        %v1597 = vld [vmem:[%s783 + $0x348] sm:$0xff]
        %v1598 = vld [vmem:[%s783 + $0x350] sm:$0xff]
        %v1599 = vld [vmem:[%s783 + $0x358] sm:$0xff]
        %v1600 = vld [vmem:[%s783 + $0x360] sm:$0xff]
        %v1601 = vld [vmem:[%s783 + $0x368] sm:$0xff]
        %v1602 = vld [vmem:[%s783 + $0x370] sm:$0xff]
        %v1603 = vld [vmem:[%s783 + $0x378] sm:$0xff]
        %v1604 = vld [vmem:[%s783 + $0x380] sm:$0xff]
        %v1605 = vld [vmem:[%s783 + $0x388] sm:$0xff]
        %v1606 = vld [vmem:[%s783 + $0x390] sm:$0xff]
        %v1607 = vld [vmem:[%s783 + $0x398] sm:$0xff]
        %v1608 = vld [vmem:[%s783 + $0x3a0] sm:$0xff]
        %v1609 = vld [vmem:[%s783 + $0x3a8] sm:$0xff]
        %v1610 = vld [vmem:[%s783 + $0x3b0] sm:$0xff]
        %v1611 = vld [vmem:[%s783 + $0x3b8] sm:$0xff]
        %v1612 = vld [vmem:[%s783 + $0x3c0] sm:$0xff]
        %v1613 = vld [vmem:[%s783 + $0x3c8] sm:$0xff]
        %v1614 = vld [vmem:[%s783 + $0x3d0] sm:$0xff]
        %v1615 = vld [vmem:[%s783 + $0x3d8] sm:$0xff]
        %v1616 = vld [vmem:[%s783 + $0x3e0] sm:$0xff]
        %v1617 = vld [vmem:[%s783 + $0x3e8] sm:$0xff]
        %v1618 = vld [vmem:[%s783 + $0x3f0] sm:$0xff]
        %v1619 = vld [vmem:[%s783 + $0x3f8] sm:$0xff]
        %v1620 = vld [vmem:[%s924] sm:$0x3]
        %v1621 = vld [vmem:[#allocation2] sm:$0xff]
        %v1622 = vld [vmem:[#allocation2 + $0x8] sm:$0xff]
        %v1623 = vld [vmem:[#allocation2 + $0x10] sm:$0x3]
        %v1624 = vld [vmem:[#allocation2 + $0x18] sm:$0x3]
        %v1625 = vadd.f32 %v1621, %v1622
        %1626 = vadd.xlane.f32.xlu0 %v1625
        %v1627 = vpop.xlane.xlu0 %1626
        %vm1628 = vcmask 1041408
        %v1629 = vsel %vm1628, %v1623, 0.0
        %v1630 = vsel %vm1628, %v1624, 0.0
        %v1631 = vadd.f32 %v1629, %v1630
        %1632 = vadd.xlane.f32.xlu0 %v1631
        %v1633 = vpop.xlane.xlu0 %1632
        %v1634 = vrcp.pop 256.0
        %v1635 = vmul.f32 %v1627, %v1634
        %v1636 = vmul.f32 %v1633, %v1634
        %v1637 = vsub.f32 %v1621, %v1635
        %v1638 = vsub.f32 %v1622, %v1635
        %v1639 = vsub.f32 %v1623, %v1636
        %v1640 = vsub.f32 %v1624, %v1636
        %v1641 = vmul.f32 %v1637, %v1637
        %v1642 = vmul.f32 %v1638, %v1638
        %v1643 = vmul.f32 %v1639, %v1639
        %v1644 = vmul.f32 %v1640, %v1640
        %v1645 = vadd.f32 %v1641, %v1642
        %1646 = vadd.xlane.f32.xlu0 %v1645
        %v1647 = vpop.xlane.xlu0 %1646
        %v1648 = vsel %vm1628, %v1643, 0.0
        %v1649 = vsel %vm1628, %v1644, 0.0
        %v1650 = vadd.f32 %v1648, %v1649
        %1651 = vadd.xlane.f32.xlu0 %v1650
        %v1652 = vpop.xlane.xlu0 %1651
        %v1653 = vmul.f32 %v1647, %v1634
        %v1654 = vmul.f32 %v1652, %v1634
        %v1655 = vadd.f32 %v1653, 1e-06
        %v1656 = vadd.f32 %v1654, 1e-06
        %v1657 = vrsqrt.pop %v1655
        %v1658 = vrsqrt.pop %v1656
        %v1659 = vmul.f32 %v1637, %v1657
        %v1660 = vmul.f32 %v1638, %v1657
        %v1661 = vmul.f32 %v1639, %v1658
        %v1662 = vmul.f32 %v1640, %v1658
        %v1664 = vlaneseq
        %v1665 = vshrl.u32 %v1664, 7
        %v1666 = vsub.s32 0, %v1665
        %v1667 = vrot.slane %v1229, %v1666
        %v1668 = vlaneseq
        %v1669 = vshrl.u32 %v1668, 7
        %v1670 = vsub.s32 1, %v1669
        %v1671 = vrot.slane %v1229, %v1670
        %v1674 = vmul.f32 %v1659, %v1667
        %v1675 = vmul.f32 %v1660, %v1671
        %v1676 = vmul.f32 %v1661, %v1667
        %v1677 = vmul.f32 %v1662, %v1671
        %v1679 = vlaneseq
        %v1680 = vshrl.u32 %v1679, 7
        %v1681 = vsub.s32 0, %v1680
        %v1682 = vrot.slane %v1230, %v1681
        %v1683 = vlaneseq
        %v1684 = vshrl.u32 %v1683, 7
        %v1685 = vsub.s32 1, %v1684
        %v1686 = vrot.slane %v1230, %v1685
        %v1689 = vadd.f32 %v1674, %v1682
        %v1690 = vadd.f32 %v1675, %v1686
        %v1691 = vadd.f32 %v1676, %v1682
        %v1692 = vadd.f32 %v1677, %v1686
        %v1693 = vpack.c.bf16 %v1691, %v1689
        %v1694 = vpack.c.bf16 %v1692, %v1690
        %v1696 = vlaneseq
        %v1697 = vshrl.u32 %v1696, 7
        %v1698 = vsub.s32 0, %v1697
        %v1699 = vrot.slane %v1327, %v1698
        %v1700 = vlaneseq
        %v1701 = vshrl.u32 %v1700, 7
        %v1702 = vsub.s32 1, %v1701
        %v1703 = vrot.slane %v1327, %v1702
        %v1704 = vlaneseq
        %v1705 = vshrl.u32 %v1704, 7
        %v1706 = vsub.s32 2, %v1705
        %v1707 = vrot.slane %v1327, %v1706
        %v1708 = vlaneseq
        %v1709 = vshrl.u32 %v1708, 7
        %v1710 = vsub.s32 3, %v1709
        %v1711 = vrot.slane %v1327, %v1710
        %v1712 = vlaneseq
        %v1713 = vshrl.u32 %v1712, 7
        %v1714 = vsub.s32 4, %v1713
        %v1715 = vrot.slane %v1327, %v1714
        %v1716 = vlaneseq
        %v1717 = vshrl.u32 %v1716, 7
        %v1718 = vsub.s32 5, %v1717
        %v1719 = vrot.slane %v1327, %v1718
        %v1822 = vunpack.c.l.b16 %v1231
        %v1823 = vunpack.c.h.b16 %v1231
        %v1824 = vunpack.c.l.b16 %v1232
        %v1825 = vunpack.c.h.b16 %v1232
        %v1826 = vunpack.c.l.b16 %v1233
        %v1827 = vunpack.c.h.b16 %v1233
        %v1828 = vunpack.c.l.b16 %v1234
        %v1829 = vunpack.c.h.b16 %v1234
        %v1830 = vunpack.c.l.b16 %v1235
        %v1831 = vunpack.c.h.b16 %v1235
        %v1832 = vunpack.c.l.b16 %v1236
        %v1833 = vunpack.c.h.b16 %v1236
        %v1834 = vunpack.c.l.b16 %v1237
        %v1835 = vunpack.c.h.b16 %v1237
        %v1836 = vunpack.c.l.b16 %v1238
        %v1837 = vunpack.c.h.b16 %v1238
        %v1838 = vunpack.c.l.b16 %v1239
        %v1839 = vunpack.c.h.b16 %v1239
        %v1840 = vunpack.c.l.b16 %v1240
        %v1841 = vunpack.c.h.b16 %v1240
        %v1842 = vunpack.c.l.b16 %v1241
        %v1843 = vunpack.c.h.b16 %v1241
        %v1844 = vunpack.c.l.b16 %v1242
        %v1845 = vunpack.c.h.b16 %v1242
        %v1846 = vunpack.c.l.b16 %v1243
        %v1847 = vunpack.c.h.b16 %v1243
        %v1848 = vunpack.c.l.b16 %v1244
        %v1849 = vunpack.c.h.b16 %v1244
        %v1850 = vunpack.c.l.b16 %v1245
        %v1851 = vunpack.c.h.b16 %v1245
        %v1852 = vunpack.c.l.b16 %v1246
        %v1853 = vunpack.c.h.b16 %v1246
        %v1854 = vunpack.c.l.b16 %v1247
        %v1855 = vunpack.c.h.b16 %v1247
        %v1856 = vunpack.c.l.b16 %v1248
        %v1857 = vunpack.c.h.b16 %v1248
        %v1858 = vunpack.c.l.b16 %v1249
        %v1859 = vunpack.c.h.b16 %v1249
        %v1860 = vunpack.c.l.b16 %v1250
        %v1861 = vunpack.c.h.b16 %v1250
        %v1862 = vunpack.c.l.b16 %v1251
        %v1863 = vunpack.c.h.b16 %v1251
        %v1864 = vunpack.c.l.b16 %v1252
        %v1865 = vunpack.c.h.b16 %v1252
        %v1866 = vunpack.c.l.b16 %v1253
        %v1867 = vunpack.c.h.b16 %v1253
        %v1868 = vunpack.c.l.b16 %v1254
        %v1869 = vunpack.c.h.b16 %v1254
        %v1870 = vunpack.c.l.b16 %v1255
        %v1871 = vunpack.c.h.b16 %v1255
        %v1872 = vunpack.c.l.b16 %v1256
        %v1873 = vunpack.c.h.b16 %v1256
        %v1874 = vunpack.c.l.b16 %v1257
        %v1875 = vunpack.c.h.b16 %v1257
        %v1876 = vunpack.c.l.b16 %v1258
        %v1877 = vunpack.c.h.b16 %v1258
        %v1878 = vunpack.c.l.b16 %v1259
        %v1879 = vunpack.c.h.b16 %v1259
        %v1880 = vunpack.c.l.b16 %v1260
        %v1881 = vunpack.c.h.b16 %v1260
        %v1882 = vunpack.c.l.b16 %v1261
        %v1883 = vunpack.c.h.b16 %v1261
        %v1884 = vunpack.c.l.b16 %v1262
        %v1885 = vunpack.c.h.b16 %v1262
        %v1886 = vunpack.c.l.b16 %v1263
        %v1887 = vunpack.c.h.b16 %v1263
        %v1888 = vunpack.c.l.b16 %v1264
        %v1889 = vunpack.c.h.b16 %v1264
        %v1890 = vunpack.c.l.b16 %v1265
        %v1891 = vunpack.c.h.b16 %v1265
        %v1892 = vunpack.c.l.b16 %v1266
        %v1893 = vunpack.c.h.b16 %v1266
        %v1894 = vunpack.c.l.b16 %v1267
        %v1895 = vunpack.c.h.b16 %v1267
        %v1896 = vunpack.c.l.b16 %v1268
        %v1897 = vunpack.c.h.b16 %v1268
        %v1898 = vunpack.c.l.b16 %v1269
        %v1899 = vunpack.c.h.b16 %v1269
        %v1900 = vunpack.c.l.b16 %v1270
        %v1901 = vunpack.c.h.b16 %v1270
        %v1902 = vunpack.c.l.b16 %v1271
        %v1903 = vunpack.c.h.b16 %v1271
        %v1904 = vunpack.c.l.b16 %v1272
        %v1905 = vunpack.c.h.b16 %v1272
        %v1906 = vunpack.c.l.b16 %v1273
        %v1907 = vunpack.c.h.b16 %v1273
        %v1908 = vunpack.c.l.b16 %v1274
        %v1909 = vunpack.c.h.b16 %v1274
        %v1910 = vunpack.c.l.b16 %v1275
        %v1911 = vunpack.c.h.b16 %v1275
        %v1912 = vunpack.c.l.b16 %v1276
        %v1913 = vunpack.c.h.b16 %v1276
        %v1914 = vunpack.c.l.b16 %v1277
        %v1915 = vunpack.c.h.b16 %v1277
        %v1916 = vunpack.c.l.b16 %v1278
        %v1917 = vunpack.c.h.b16 %v1278
        %v1918 = vunpack.c.l.b16 %v1279
        %v1919 = vunpack.c.h.b16 %v1279
        %v1920 = vunpack.c.l.b16 %v1280
        %v1921 = vunpack.c.h.b16 %v1280
        %v1922 = vunpack.c.l.b16 %v1281
        %v1923 = vunpack.c.h.b16 %v1281
        %v1924 = vunpack.c.l.b16 %v1282
        %v1925 = vunpack.c.h.b16 %v1282
        %v1926 = vunpack.c.l.b16 %v1283
        %v1927 = vunpack.c.h.b16 %v1283
        %v1928 = vunpack.c.l.b16 %v1284
        %v1929 = vunpack.c.h.b16 %v1284
        %v1930 = vunpack.c.l.b16 %v1285
        %v1931 = vunpack.c.h.b16 %v1285
        %v1932 = vunpack.c.l.b16 %v1286
        %v1933 = vunpack.c.h.b16 %v1286
        %v1934 = vunpack.c.l.b16 %v1287
        %v1935 = vunpack.c.h.b16 %v1287
        %v1936 = vunpack.c.l.b16 %v1288
        %v1937 = vunpack.c.h.b16 %v1288
        %v1938 = vunpack.c.l.b16 %v1289
        %v1939 = vunpack.c.h.b16 %v1289
        %v1940 = vunpack.c.l.b16 %v1290
        %v1941 = vunpack.c.h.b16 %v1290
        %v1942 = vunpack.c.l.b16 %v1291
        %v1943 = vunpack.c.h.b16 %v1291
        %v1944 = vunpack.c.l.b16 %v1292
        %v1945 = vunpack.c.h.b16 %v1292
        %v1946 = vunpack.c.l.b16 %v1293
        %v1947 = vunpack.c.h.b16 %v1293
        %v1948 = vunpack.c.l.b16 %v1294
        %v1949 = vunpack.c.h.b16 %v1294
        %v1950 = vunpack.c.l.b16 %v1295
        %v1951 = vunpack.c.h.b16 %v1295
        %v1952 = vunpack.c.l.b16 %v1296
        %v1953 = vunpack.c.h.b16 %v1296
        %v1954 = vunpack.c.l.b16 %v1297
        %v1955 = vunpack.c.h.b16 %v1297
        %v1956 = vunpack.c.l.b16 %v1298
        %v1957 = vunpack.c.h.b16 %v1298
        %v1958 = vunpack.c.l.b16 %v1299
        %v1959 = vunpack.c.h.b16 %v1299
        %v1960 = vunpack.c.l.b16 %v1300
        %v1961 = vunpack.c.h.b16 %v1300
        %v1962 = vunpack.c.l.b16 %v1301
        %v1963 = vunpack.c.h.b16 %v1301
        %v1964 = vunpack.c.l.b16 %v1302
        %v1965 = vunpack.c.h.b16 %v1302
        %v1966 = vunpack.c.l.b16 %v1303
        %v1967 = vunpack.c.h.b16 %v1303
        %v1968 = vunpack.c.l.b16 %v1304
        %v1969 = vunpack.c.h.b16 %v1304
        %v1970 = vunpack.c.l.b16 %v1305
        %v1971 = vunpack.c.h.b16 %v1305
        %v1972 = vunpack.c.l.b16 %v1306
        %v1973 = vunpack.c.h.b16 %v1306
        %v1974 = vunpack.c.l.b16 %v1307
        %v1975 = vunpack.c.h.b16 %v1307
        %v1976 = vunpack.c.l.b16 %v1308
        %v1977 = vunpack.c.h.b16 %v1308
        %v1978 = vunpack.c.l.b16 %v1309
        %v1979 = vunpack.c.h.b16 %v1309
        %v1980 = vunpack.c.l.b16 %v1310
        %v1981 = vunpack.c.h.b16 %v1310
        %v1982 = vunpack.c.l.b16 %v1311
        %v1983 = vunpack.c.h.b16 %v1311
        %v1984 = vunpack.c.l.b16 %v1312
        %v1985 = vunpack.c.h.b16 %v1312
        %v1986 = vunpack.c.l.b16 %v1313
        %v1987 = vunpack.c.h.b16 %v1313
        %v1988 = vunpack.c.l.b16 %v1314
        %v1989 = vunpack.c.h.b16 %v1314
        %v1990 = vunpack.c.l.b16 %v1315
        %v1991 = vunpack.c.h.b16 %v1315
        %v1992 = vunpack.c.l.b16 %v1316
        %v1993 = vunpack.c.h.b16 %v1316
        %v1994 = vunpack.c.l.b16 %v1317
        %v1995 = vunpack.c.h.b16 %v1317
        %v1996 = vunpack.c.l.b16 %v1318
        %v1997 = vunpack.c.h.b16 %v1318
        %v1998 = vunpack.c.l.b16 %v1319
        %v1999 = vunpack.c.h.b16 %v1319
        %v2000 = vunpack.c.l.b16 %v1320
        %v2001 = vunpack.c.h.b16 %v1320
        %v2002 = vunpack.c.l.b16 %v1321
        %v2003 = vunpack.c.h.b16 %v1321
        %v2004 = vunpack.c.l.b16 %v1322
        %v2005 = vunpack.c.h.b16 %v1322
        %v2006 = vunpack.c.l.b16 %v1323
        %v2007 = vunpack.c.h.b16 %v1323
        %v2008 = vunpack.c.l.b16 %v1324
        %v2009 = vunpack.c.h.b16 %v1324
        %v2010 = vunpack.c.l.b16 %v1325
        %v2011 = vunpack.c.h.b16 %v1325
        %v2012 = vunpack.c.l.b16 %v1326
        %v2013 = vunpack.c.h.b16 %v1326
        %v2014 = vpack.c.b16 %v1828, %v1822
        %v2015 = vpack.c.b16 %v1829, %v1823
        %v2016 = vpack.c.b16 %v1830, %v1824
        %v2017 = vpack.c.b16 %v1831, %v1825
        %v2018 = vpack.c.b16 %v1832, %v1826
        %v2019 = vpack.c.b16 %v1833, %v1827
        %v2020 = vpack.c.b16 %v1840, %v1834
        %v2021 = vpack.c.b16 %v1841, %v1835
        %v2022 = vpack.c.b16 %v1842, %v1836
        %v2023 = vpack.c.b16 %v1843, %v1837
        %v2024 = vpack.c.b16 %v1844, %v1838
        %v2025 = vpack.c.b16 %v1845, %v1839
        %v2026 = vpack.c.b16 %v1852, %v1846
        %v2027 = vpack.c.b16 %v1853, %v1847
        %v2028 = vpack.c.b16 %v1854, %v1848
        %v2029 = vpack.c.b16 %v1855, %v1849
        %v2030 = vpack.c.b16 %v1856, %v1850
        %v2031 = vpack.c.b16 %v1857, %v1851
        %v2032 = vpack.c.b16 %v1864, %v1858
        %v2033 = vpack.c.b16 %v1865, %v1859
        %v2034 = vpack.c.b16 %v1866, %v1860
        %v2035 = vpack.c.b16 %v1867, %v1861
        %v2036 = vpack.c.b16 %v1868, %v1862
        %v2037 = vpack.c.b16 %v1869, %v1863
        %v2038 = vpack.c.b16 %v1876, %v1870
        %v2039 = vpack.c.b16 %v1877, %v1871
        %v2040 = vpack.c.b16 %v1878, %v1872
        %v2041 = vpack.c.b16 %v1879, %v1873
        %v2042 = vpack.c.b16 %v1880, %v1874
        %v2043 = vpack.c.b16 %v1881, %v1875
        %v2044 = vpack.c.b16 %v1888, %v1882
        %v2045 = vpack.c.b16 %v1889, %v1883
        %v2046 = vpack.c.b16 %v1890, %v1884
        %v2047 = vpack.c.b16 %v1891, %v1885
        %v2048 = vpack.c.b16 %v1892, %v1886
        %v2049 = vpack.c.b16 %v1893, %v1887
        %v2050 = vpack.c.b16 %v1900, %v1894
        %v2051 = vpack.c.b16 %v1901, %v1895
        %v2052 = vpack.c.b16 %v1902, %v1896
        %v2053 = vpack.c.b16 %v1903, %v1897
        %v2054 = vpack.c.b16 %v1904, %v1898
        %v2055 = vpack.c.b16 %v1905, %v1899
        %v2056 = vpack.c.b16 %v1912, %v1906
        %v2057 = vpack.c.b16 %v1913, %v1907
        %v2058 = vpack.c.b16 %v1914, %v1908
        %v2059 = vpack.c.b16 %v1915, %v1909
        %v2060 = vpack.c.b16 %v1916, %v1910
        %v2061 = vpack.c.b16 %v1917, %v1911
        %v2062 = vpack.c.b16 %v1924, %v1918
        %v2063 = vpack.c.b16 %v1925, %v1919
        %v2064 = vpack.c.b16 %v1926, %v1920
        %v2065 = vpack.c.b16 %v1927, %v1921
        %v2066 = vpack.c.b16 %v1928, %v1922
        %v2067 = vpack.c.b16 %v1929, %v1923
        %v2068 = vpack.c.b16 %v1936, %v1930
        %v2069 = vpack.c.b16 %v1937, %v1931
        %v2070 = vpack.c.b16 %v1938, %v1932
        %v2071 = vpack.c.b16 %v1939, %v1933
        %v2072 = vpack.c.b16 %v1940, %v1934
        %v2073 = vpack.c.b16 %v1941, %v1935
        %v2074 = vpack.c.b16 %v1948, %v1942
        %v2075 = vpack.c.b16 %v1949, %v1943
        %v2076 = vpack.c.b16 %v1950, %v1944
        %v2077 = vpack.c.b16 %v1951, %v1945
        %v2078 = vpack.c.b16 %v1952, %v1946
        %v2079 = vpack.c.b16 %v1953, %v1947
        %v2080 = vpack.c.b16 %v1960, %v1954
        %v2081 = vpack.c.b16 %v1961, %v1955
        %v2082 = vpack.c.b16 %v1962, %v1956
        %v2083 = vpack.c.b16 %v1963, %v1957
        %v2084 = vpack.c.b16 %v1964, %v1958
        %v2085 = vpack.c.b16 %v1965, %v1959
        %v2086 = vpack.c.b16 %v1972, %v1966
        %v2087 = vpack.c.b16 %v1973, %v1967
        %v2088 = vpack.c.b16 %v1974, %v1968
        %v2089 = vpack.c.b16 %v1975, %v1969
        %v2090 = vpack.c.b16 %v1976, %v1970
        %v2091 = vpack.c.b16 %v1977, %v1971
        %v2092 = vpack.c.b16 %v1984, %v1978
        %v2093 = vpack.c.b16 %v1985, %v1979
        %v2094 = vpack.c.b16 %v1986, %v1980
        %v2095 = vpack.c.b16 %v1987, %v1981
        %v2096 = vpack.c.b16 %v1988, %v1982
        %v2097 = vpack.c.b16 %v1989, %v1983
        %v2098 = vpack.c.b16 %v1996, %v1990
        %v2099 = vpack.c.b16 %v1997, %v1991
        %v2100 = vpack.c.b16 %v1998, %v1992
        %v2101 = vpack.c.b16 %v1999, %v1993
        %v2102 = vpack.c.b16 %v2000, %v1994
        %v2103 = vpack.c.b16 %v2001, %v1995
        %v2104 = vpack.c.b16 %v2008, %v2002
        %v2105 = vpack.c.b16 %v2009, %v2003
        %v2106 = vpack.c.b16 %v2010, %v2004
        %v2107 = vpack.c.b16 %v2011, %v2005
        %v2108 = vpack.c.b16 %v2012, %v2006
        %v2109 = vpack.c.b16 %v2013, %v2007
        %2206 = vmatprep.subr.bf16.mxu0 %v2057
        %2207 = vmatpush1.bf16.msra.mxu0 %v2056
        %2208 = vmatprep.subr.bf16.mxu0 %v2051
        %2209 = vmatpush1.bf16.msra.mxu0 %v2050
        %2210 = vmatprep.subr.bf16.mxu0 %v2045
        %2211 = vmatpush1.bf16.msra.mxu0 %v2044
        %2212 = vmatprep.subr.bf16.mxu0 %v2039
        %2213 = vmatpush1.bf16.msra.mxu0 %v2038
        %2214 = vmatprep.subr.bf16.mxu0 %v2033
        %2215 = vmatpush1.bf16.msra.mxu0 %v2032
        %2216 = vmatprep.subr.bf16.mxu0 %v2027
        %2217 = vmatpush1.bf16.msra.mxu0 %v2026
        %2218 = vmatprep.subr.bf16.mxu0 %v2021
        %2219 = vmatpush1.bf16.msra.mxu0 %v2020
        %2220 = vmatprep.subr.bf16.mxu0 %v2015
        %2221 = vmatpush1.bf16.msra.mxu0 %v2014
        %2222 = vmatprep.subr.bf16.mxu0 %v2105
        %2223 = vmatpush2.bf16.msra.mxu0 %v2104
        %2224 = vmatprep.subr.bf16.mxu0 %v2099
        %2225 = vmatpush2.bf16.msra.mxu0 %v2098
        %2226 = vmatprep.subr.bf16.mxu0 %v2093
        %2227 = vmatpush2.bf16.msra.mxu0 %v2092
        %2228 = vmatprep.subr.bf16.mxu0 %v2087
        %2229 = vmatpush2.bf16.msra.mxu0 %v2086
        %2230 = vmatprep.subr.bf16.mxu0 %v2081
        %2231 = vmatpush2.bf16.msra.mxu0 %v2080
        %2232 = vmatprep.subr.bf16.mxu0 %v2075
        %2233 = vmatpush2.bf16.msra.mxu0 %v2074
        %2234 = vmatprep.subr.bf16.mxu0 %v2069
        %2235 = vmatpush2.bf16.msra.mxu0 %v2068
        %2236 = vmatprep.subr.bf16.mxu0 %v2063
        %2237 = vmatpush2.bf16.msra.mxu0 %v2062
        %2238 = vmatprep.mubr.bf16.mxu0 %v1694
        %2239 = vmatmul.mubr.bf16.gmra.mxu0 %v1693
        %v2240 = vpop.f32.mrf.mxu0
        %v2241 = vadd.f32 %v1699, %v2240
        %v2242 = vpop.f32.mrf.mxu0
        %v2243 = vadd.f32 %v1703, %v2242
        %v2244 = vpop.f32.mrf.mxu0
        %v2245 = vadd.f32 %v1699, %v2244
        %v2246 = vpop.f32.mrf.mxu0
        %v2247 = vadd.f32 %v1703, %v2246
        %2248 = vdwg.mxu0
        %2249 = vmatprep.subr.bf16.mxu0 %v2059
        %2250 = vmatpush1.bf16.msra.mxu0 %v2058
        %2251 = vmatprep.subr.bf16.mxu0 %v2053
        %2252 = vmatpush1.bf16.msra.mxu0 %v2052
        %2253 = vmatprep.subr.bf16.mxu0 %v2047
        %2254 = vmatpush1.bf16.msra.mxu0 %v2046
        %2255 = vmatprep.subr.bf16.mxu0 %v2041
        %2256 = vmatpush1.bf16.msra.mxu0 %v2040
        %2257 = vmatprep.subr.bf16.mxu0 %v2035
        %2258 = vmatpush1.bf16.msra.mxu0 %v2034
        %2259 = vmatprep.subr.bf16.mxu0 %v2029
        %2260 = vmatpush1.bf16.msra.mxu0 %v2028
        %2261 = vmatprep.subr.bf16.mxu0 %v2023
        %2262 = vmatpush1.bf16.msra.mxu0 %v2022
        %2263 = vmatprep.subr.bf16.mxu0 %v2017
        %2264 = vmatpush1.bf16.msra.mxu0 %v2016
        %2265 = vmatprep.subr.bf16.mxu0 %v2107
        %2266 = vmatpush2.bf16.msra.mxu0 %v2106
        %2267 = vmatprep.subr.bf16.mxu0 %v2101
        %2268 = vmatpush2.bf16.msra.mxu0 %v2100
        %2269 = vmatprep.subr.bf16.mxu0 %v2095
        %2270 = vmatpush2.bf16.msra.mxu0 %v2094
        %2271 = vmatprep.subr.bf16.mxu0 %v2089
        %2272 = vmatpush2.bf16.msra.mxu0 %v2088
        %2273 = vmatprep.subr.bf16.mxu0 %v2083
        %2274 = vmatpush2.bf16.msra.mxu0 %v2082
        %2275 = vmatprep.subr.bf16.mxu0 %v2077
        %2276 = vmatpush2.bf16.msra.mxu0 %v2076
        %2277 = vmatprep.subr.bf16.mxu0 %v2071
        %2278 = vmatpush2.bf16.msra.mxu0 %v2070
        %2279 = vmatprep.subr.bf16.mxu0 %v2065
        %2280 = vmatpush2.bf16.msra.mxu0 %v2064
        %2281 = vmatprep.mubr.bf16.mxu0 %v1694
        %2282 = vmatmul.mubr.bf16.gmra.mxu0 %v1693
        %v2283 = vpop.f32.mrf.mxu0
        %v2284 = vadd.f32 %v1707, %v2283
        %v2285 = vpop.f32.mrf.mxu0
        %v2286 = vadd.f32 %v1711, %v2285
        %v2287 = vpop.f32.mrf.mxu0
        %v2288 = vadd.f32 %v1707, %v2287
        %v2289 = vpop.f32.mrf.mxu0
        %v2290 = vadd.f32 %v1711, %v2289
        %2291 = vdwg.mxu0
        %2292 = vmatprep.subr.bf16.mxu0 %v2061
        %2293 = vmatpush1.bf16.msra.mxu0 %v2060
        %2294 = vmatprep.subr.bf16.mxu0 %v2055
        %2295 = vmatpush1.bf16.msra.mxu0 %v2054
        %2296 = vmatprep.subr.bf16.mxu0 %v2049
        %2297 = vmatpush1.bf16.msra.mxu0 %v2048
        %2298 = vmatprep.subr.bf16.mxu0 %v2043
        %2299 = vmatpush1.bf16.msra.mxu0 %v2042
        %2300 = vmatprep.subr.bf16.mxu0 %v2037
        %2301 = vmatpush1.bf16.msra.mxu0 %v2036
        %2302 = vmatprep.subr.bf16.mxu0 %v2031
        %2303 = vmatpush1.bf16.msra.mxu0 %v2030
        %2304 = vmatprep.subr.bf16.mxu0 %v2025
        %2305 = vmatpush1.bf16.msra.mxu0 %v2024
        %2306 = vmatprep.subr.bf16.mxu0 %v2019
        %2307 = vmatpush1.bf16.msra.mxu0 %v2018
        %2308 = vmatprep.subr.bf16.mxu0 %v2109
        %2309 = vmatpush2.bf16.msra.mxu0 %v2108
        %2310 = vmatprep.subr.bf16.mxu0 %v2103
        %2311 = vmatpush2.bf16.msra.mxu0 %v2102
        %2312 = vmatprep.subr.bf16.mxu0 %v2097
        %2313 = vmatpush2.bf16.msra.mxu0 %v2096
        %2314 = vmatprep.subr.bf16.mxu0 %v2091
        %2315 = vmatpush2.bf16.msra.mxu0 %v2090
        %2316 = vmatprep.subr.bf16.mxu0 %v2085
        %2317 = vmatpush2.bf16.msra.mxu0 %v2084
        %2318 = vmatprep.subr.bf16.mxu0 %v2079
        %2319 = vmatpush2.bf16.msra.mxu0 %v2078
        %2320 = vmatprep.subr.bf16.mxu0 %v2073
        %2321 = vmatpush2.bf16.msra.mxu0 %v2072
        %2322 = vmatprep.subr.bf16.mxu0 %v2067
        %2323 = vmatpush2.bf16.msra.mxu0 %v2066
        %2324 = vmatprep.mubr.bf16.mxu0 %v1694
        %2325 = vmatmul.mubr.bf16.gmra.mxu0 %v1693
        %v2326 = vpop.f32.mrf.mxu0
        %v2327 = vadd.f32 %v1715, %v2326
        %v2328 = vpop.f32.mrf.mxu0
        %v2329 = vadd.f32 %v1719, %v2328
        %v2330 = vpop.f32.mrf.mxu0
        %v2331 = vadd.f32 %v1715, %v2330
        %v2332 = vpop.f32.mrf.mxu0
        %v2333 = vadd.f32 %v1719, %v2332
        %2334 = vdwg.mxu0
        %v2335 = vmul.f32 %v2241, 0.088388346
        %v2336 = vpack.c.bf16 %v2335, %v2335
        %v2337 = vpack.c.bf16 %v2284, %v2284
        %2338 = vmatprep.subr.bf16.mxu0 0
        %2339 = vmatpush1.bf16.xpose.msra.mxu0 0
        %2340 = vmatprep.subr.bf16.mxu0 0
        %2341 = vmatpush1.bf16.xpose.msra.mxu0 0
        %2342 = vmatprep.subr.bf16.mxu0 0
        %2343 = vmatpush1.bf16.xpose.msra.mxu0 0
        %2344 = vmatprep.subr.bf16.mxu0 0
        %2345 = vmatpush1.bf16.xpose.msra.mxu0 0
        %2346 = vmatprep.subr.bf16.mxu0 0
        %2347 = vmatpush1.bf16.xpose.msra.mxu0 0
        %2348 = vmatprep.subr.bf16.mxu0 0
        %2349 = vmatpush1.bf16.xpose.msra.mxu0 0
        %2350 = vmatprep.subr.bf16.mxu0 0
        %2351 = vmatpush1.bf16.xpose.msra.mxu0 0
        %2352 = vmatprep.subr.bf16.mxu0 0
        %2353 = vmatpush1.bf16.xpose.msra.mxu0 %v2337
        %2354 = vmatprep.subr.bf16.mxu0 0
        %2355 = vmatpush2.bf16.xpose.msra.mxu0 0
        %2356 = vmatprep.subr.bf16.mxu0 0
        %2357 = vmatpush2.bf16.xpose.msra.mxu0 0
        %2358 = vmatprep.subr.bf16.mxu0 0
        %2359 = vmatpush2.bf16.xpose.msra.mxu0 0
        %2360 = vmatprep.subr.bf16.mxu0 0
        %2361 = vmatpush2.bf16.xpose.msra.mxu0 0
        %2362 = vmatprep.subr.bf16.mxu0 0
        %2363 = vmatpush2.bf16.xpose.msra.mxu0 0
        %2364 = vmatprep.subr.bf16.mxu0 0
        %2365 = vmatpush2.bf16.xpose.msra.mxu0 0
        %2366 = vmatprep.subr.bf16.mxu0 0
        %2367 = vmatpush2.bf16.xpose.msra.mxu0 0
        %2368 = vmatprep.subr.bf16.mxu0 0
        %2369 = vmatpush2.bf16.xpose.msra.mxu0 0
        %2370 = vmatprep.mubr.bf16.mxu0 0
        %2371 = vmatmul.mubr.bf16.gmra.mxu0 %v2336
        %v2372 = vpop.f32.mrf.mxu0
        %v2373 = vadd.f32 0.0, %v2372
        %v2374 = vpop.f32.mrf.mxu0
        %v2375 = vpop.f32.mrf.mxu0
        %v2376 = vpop.f32.mrf.mxu0
        %2377 = vdwg.mxu0
        %vm2378 = vcmask 36864
        %v2379 = vsel %vm2378, %v2373, -inf
        %2380 = vmax.xlane.f32.xlu0 %v2379
        %v2381 = vpop.xlane.xlu0 %2380
        %v2382 = vsub.f32 %v2373, %v2381
        %v2383 = vmul.f32 %v2382, 1.442695
        %v2384 = vpow.pop %v2383
        %v2385 = vsel %vm2378, %v2384, 0.0
        %2386 = vadd.xlane.f32.xlu0 %v2385
        %v2387 = vpop.xlane.xlu0 %2386
        %v2388 = vrcp.pop %v2387
        %v2389 = vmul.f32 %v2384, %v2388
        %v2390 = vpack.c.bf16 %v2389, %v2389
        %v2391 = vpack.c.bf16 %v2327, %v2327
        %vm2392 = vcmask 39936
        %v2394 = vsel %vm2392, %v2390, 0
        %vm2396 = vcmask 1042432
        %v2397 = vsel %vm1628, 4294967295, 65535
        %v2398 = vsel %vm2396, %v2397, 0
        %v2400 = vand.u32 %v2391, %v2398
        %2402 = vmatprep.subr.bf16.mxu0 0
        %2403 = vmatpush1.bf16.msra.mxu0 0
        %2404 = vmatprep.subr.bf16.mxu0 0
        %2405 = vmatpush1.bf16.msra.mxu0 0
        %2406 = vmatprep.subr.bf16.mxu0 0
        %2407 = vmatpush1.bf16.msra.mxu0 0
        %2408 = vmatprep.subr.bf16.mxu0 0
        %2409 = vmatpush1.bf16.msra.mxu0 0
        %2410 = vmatprep.subr.bf16.mxu0 0
        %2411 = vmatpush1.bf16.msra.mxu0 0
        %2412 = vmatprep.subr.bf16.mxu0 0
        %2413 = vmatpush1.bf16.msra.mxu0 0
        %2414 = vmatprep.subr.bf16.mxu0 0
        %2415 = vmatpush1.bf16.msra.mxu0 0
        %2416 = vmatprep.subr.bf16.mxu0 0
        %2417 = vmatpush1.bf16.msra.mxu0 %v2400
        %2418 = vmatprep.subr.bf16.mxu0 0
        %2419 = vmatpush2.bf16.msra.mxu0 0
        %2420 = vmatprep.subr.bf16.mxu0 0
        %2421 = vmatpush2.bf16.msra.mxu0 0
        %2422 = vmatprep.subr.bf16.mxu0 0
        %2423 = vmatpush2.bf16.msra.mxu0 0
        %2424 = vmatprep.subr.bf16.mxu0 0
        %2425 = vmatpush2.bf16.msra.mxu0 0
        %2426 = vmatprep.subr.bf16.mxu0 0
        %2427 = vmatpush2.bf16.msra.mxu0 0
        %2428 = vmatprep.subr.bf16.mxu0 0
        %2429 = vmatpush2.bf16.msra.mxu0 0
        %2430 = vmatprep.subr.bf16.mxu0 0
        %2431 = vmatpush2.bf16.msra.mxu0 0
        %2432 = vmatprep.subr.bf16.mxu0 0
        %2433 = vmatpush2.bf16.msra.mxu0 0
        %2434 = vmatprep.mubr.bf16.mxu0 0
        %2435 = vmatmul.mubr.bf16.gmra.mxu0 %v2394
        %v2436 = vpop.f32.mrf.mxu0
        %v2437 = vadd.f32 0.0, %v2436
        %v2438 = vpop.f32.mrf.mxu0
        %v2439 = vpop.f32.mrf.mxu0
        %v2440 = vpop.f32.mrf.mxu0
        %2441 = vdwg.mxu0
        %v2442 = vpack.c.bf16 %v2437, %v2437
        %v2443 = vmul.f32 %v2243, 0.088388346
        %v2444 = vpack.c.bf16 %v2443, %v2443
        %v2445 = vpack.c.bf16 %v2286, %v2286
        %2446 = vmatprep.subr.bf16.mxu0 0
        %2447 = vmatpush1.bf16.xpose.msra.mxu0 0
        %2448 = vmatprep.subr.bf16.mxu0 0
        %2449 = vmatpush1.bf16.xpose.msra.mxu0 0
        %2450 = vmatprep.subr.bf16.mxu0 0
        %2451 = vmatpush1.bf16.xpose.msra.mxu0 0
        %2452 = vmatprep.subr.bf16.mxu0 0
        %2453 = vmatpush1.bf16.xpose.msra.mxu0 0
        %2454 = vmatprep.subr.bf16.mxu0 0
        %2455 = vmatpush1.bf16.xpose.msra.mxu0 0
        %2456 = vmatprep.subr.bf16.mxu0 0
        %2457 = vmatpush1.bf16.xpose.msra.mxu0 0
        %2458 = vmatprep.subr.bf16.mxu0 0
        %2459 = vmatpush1.bf16.xpose.msra.mxu0 0
        %2460 = vmatprep.subr.bf16.mxu0 0
        %2461 = vmatpush1.bf16.xpose.msra.mxu0 %v2445
        %2462 = vmatprep.subr.bf16.mxu0 0
        %2463 = vmatpush2.bf16.xpose.msra.mxu0 0
        %2464 = vmatprep.subr.bf16.mxu0 0
        %2465 = vmatpush2.bf16.xpose.msra.mxu0 0
        %2466 = vmatprep.subr.bf16.mxu0 0
        %2467 = vmatpush2.bf16.xpose.msra.mxu0 0
        %2468 = vmatprep.subr.bf16.mxu0 0
        %2469 = vmatpush2.bf16.xpose.msra.mxu0 0
        %2470 = vmatprep.subr.bf16.mxu0 0
        %2471 = vmatpush2.bf16.xpose.msra.mxu0 0
        %2472 = vmatprep.subr.bf16.mxu0 0
        %2473 = vmatpush2.bf16.xpose.msra.mxu0 0
        %2474 = vmatprep.subr.bf16.mxu0 0
        %2475 = vmatpush2.bf16.xpose.msra.mxu0 0
        %2476 = vmatprep.subr.bf16.mxu0 0
        %2477 = vmatpush2.bf16.xpose.msra.mxu0 0
        %2478 = vmatprep.mubr.bf16.mxu0 0
        %2479 = vmatmul.mubr.bf16.gmra.mxu0 %v2444
        %v2480 = vpop.f32.mrf.mxu0
        %v2481 = vadd.f32 0.0, %v2480
        %v2482 = vpop.f32.mrf.mxu0
        %v2483 = vpop.f32.mrf.mxu0
        %v2484 = vpop.f32.mrf.mxu0
        %2485 = vdwg.mxu0
        %v2486 = vsel %vm2378, %v2481, -inf
        %2487 = vmax.xlane.f32.xlu0 %v2486
        %v2488 = vpop.xlane.xlu0 %2487
        %v2489 = vsub.f32 %v2481, %v2488
        %v2490 = vmul.f32 %v2489, 1.442695
        %v2491 = vpow.pop %v2490
        %v2492 = vsel %vm2378, %v2491, 0.0
        %2493 = vadd.xlane.f32.xlu0 %v2492
        %v2494 = vpop.xlane.xlu0 %2493
        %v2495 = vrcp.pop %v2494
        %v2496 = vmul.f32 %v2491, %v2495
        %v2497 = vpack.c.bf16 %v2496, %v2496
        %v2498 = vpack.c.bf16 %v2329, %v2329
        %v2500 = vsel %vm2392, %v2497, 0
        %v2503 = vand.u32 %v2498, %v2398
        %2505 = vmatprep.subr.bf16.mxu0 0
        %2506 = vmatpush1.bf16.msra.mxu0 0
        %2507 = vmatprep.subr.bf16.mxu0 0
        %2508 = vmatpush1.bf16.msra.mxu0 0
        %2509 = vmatprep.subr.bf16.mxu0 0
        %2510 = vmatpush1.bf16.msra.mxu0 0
        %2511 = vmatprep.subr.bf16.mxu0 0
        %2512 = vmatpush1.bf16.msra.mxu0 0
        %2513 = vmatprep.subr.bf16.mxu0 0
        %2514 = vmatpush1.bf16.msra.mxu0 0
        %2515 = vmatprep.subr.bf16.mxu0 0
        %2516 = vmatpush1.bf16.msra.mxu0 0
        %2517 = vmatprep.subr.bf16.mxu0 0
        %2518 = vmatpush1.bf16.msra.mxu0 0
        %2519 = vmatprep.subr.bf16.mxu0 0
        %2520 = vmatpush1.bf16.msra.mxu0 %v2503
        %2521 = vmatprep.subr.bf16.mxu0 0
        %2522 = vmatpush2.bf16.msra.mxu0 0
        %2523 = vmatprep.subr.bf16.mxu0 0
        %2524 = vmatpush2.bf16.msra.mxu0 0
        %2525 = vmatprep.subr.bf16.mxu0 0
        %2526 = vmatpush2.bf16.msra.mxu0 0
        %2527 = vmatprep.subr.bf16.mxu0 0
        %2528 = vmatpush2.bf16.msra.mxu0 0
        %2529 = vmatprep.subr.bf16.mxu0 0
        %2530 = vmatpush2.bf16.msra.mxu0 0
        %2531 = vmatprep.subr.bf16.mxu0 0
        %2532 = vmatpush2.bf16.msra.mxu0 0
        %2533 = vmatprep.subr.bf16.mxu0 0
        %2534 = vmatpush2.bf16.msra.mxu0 0
        %2535 = vmatprep.subr.bf16.mxu0 0
        %2536 = vmatpush2.bf16.msra.mxu0 0
        %2537 = vmatprep.mubr.bf16.mxu0 0
        %2538 = vmatmul.mubr.bf16.gmra.mxu0 %v2500
        %v2539 = vpop.f32.mrf.mxu0
        %v2540 = vadd.f32 0.0, %v2539
        %v2541 = vpop.f32.mrf.mxu0
        %v2542 = vpop.f32.mrf.mxu0
        %v2543 = vpop.f32.mrf.mxu0
        %2544 = vdwg.mxu0
        %v2545 = vpack.c.bf16 %v2540, %v2540
        %v2562 = vunpack.c.l.b16 %v1344
        %v2563 = vunpack.c.h.b16 %v1344
        %v2564 = vunpack.c.l.b16 %v1345
        %v2565 = vunpack.c.h.b16 %v1345
        %v2566 = vunpack.c.l.b16 %v1346
        %v2567 = vunpack.c.h.b16 %v1346
        %v2568 = vunpack.c.l.b16 %v1347
        %v2569 = vunpack.c.h.b16 %v1347
        %v2570 = vunpack.c.l.b16 %v1348
        %v2571 = vunpack.c.h.b16 %v1348
        %v2572 = vunpack.c.l.b16 %v1349
        %v2573 = vunpack.c.h.b16 %v1349
        %v2574 = vunpack.c.l.b16 %v1350
        %v2575 = vunpack.c.h.b16 %v1350
        %v2576 = vunpack.c.l.b16 %v1351
        %v2577 = vunpack.c.h.b16 %v1351
        %v2578 = vunpack.c.l.b16 %v1352
        %v2579 = vunpack.c.h.b16 %v1352
        %v2580 = vunpack.c.l.b16 %v1353
        %v2581 = vunpack.c.h.b16 %v1353
        %v2582 = vunpack.c.l.b16 %v1354
        %v2583 = vunpack.c.h.b16 %v1354
        %v2584 = vunpack.c.l.b16 %v1355
        %v2585 = vunpack.c.h.b16 %v1355
        %v2586 = vunpack.c.l.b16 %v1356
        %v2587 = vunpack.c.h.b16 %v1356
        %v2588 = vunpack.c.l.b16 %v1357
        %v2589 = vunpack.c.h.b16 %v1357
        %v2590 = vunpack.c.l.b16 %v1358
        %v2591 = vunpack.c.h.b16 %v1358
        %v2592 = vunpack.c.l.b16 %v1359
        %v2593 = vunpack.c.h.b16 %v1359
        %v2594 = vpack.c.b16 %v2564, %v2562
        %v2595 = vpack.c.b16 %v2565, %v2563
        %v2596 = vpack.c.b16 %v2568, %v2566
        %v2597 = vpack.c.b16 %v2569, %v2567
        %v2598 = vpack.c.b16 %v2572, %v2570
        %v2599 = vpack.c.b16 %v2573, %v2571
        %v2600 = vpack.c.b16 %v2576, %v2574
        %v2601 = vpack.c.b16 %v2577, %v2575
        %v2602 = vpack.c.b16 %v2580, %v2578
        %v2603 = vpack.c.b16 %v2581, %v2579
        %v2604 = vpack.c.b16 %v2584, %v2582
        %v2605 = vpack.c.b16 %v2585, %v2583
        %v2606 = vpack.c.b16 %v2588, %v2586
        %v2607 = vpack.c.b16 %v2589, %v2587
        %v2608 = vpack.c.b16 %v2592, %v2590
        %v2609 = vpack.c.b16 %v2593, %v2591
        %2626 = vmatprep.subr.bf16.mxu0 %v2609
        %2627 = vmatpush1.bf16.msra.mxu0 %v2608
        %2628 = vmatprep.subr.bf16.mxu0 %v2607
        %2629 = vmatpush1.bf16.msra.mxu0 %v2606
        %2630 = vmatprep.subr.bf16.mxu0 %v2605
        %2631 = vmatpush1.bf16.msra.mxu0 %v2604
        %2632 = vmatprep.subr.bf16.mxu0 %v2603
        %2633 = vmatpush1.bf16.msra.mxu0 %v2602
        %2634 = vmatprep.subr.bf16.mxu0 %v2601
        %2635 = vmatpush1.bf16.msra.mxu0 %v2600
        %2636 = vmatprep.subr.bf16.mxu0 %v2599
        %2637 = vmatpush1.bf16.msra.mxu0 %v2598
        %2638 = vmatprep.subr.bf16.mxu0 %v2597
        %2639 = vmatpush1.bf16.msra.mxu0 %v2596
        %2640 = vmatprep.subr.bf16.mxu0 %v2595
        %2641 = vmatpush1.bf16.msra.mxu0 %v2594
        %2642 = vmatprep.subr.bf16.mxu0 0
        %2643 = vmatpush2.bf16.msra.mxu0 0
        %2644 = vmatprep.subr.bf16.mxu0 0
        %2645 = vmatpush2.bf16.msra.mxu0 0
        %2646 = vmatprep.subr.bf16.mxu0 0
        %2647 = vmatpush2.bf16.msra.mxu0 0
        %2648 = vmatprep.subr.bf16.mxu0 0
        %2649 = vmatpush2.bf16.msra.mxu0 0
        %2650 = vmatprep.subr.bf16.mxu0 0
        %2651 = vmatpush2.bf16.msra.mxu0 0
        %2652 = vmatprep.subr.bf16.mxu0 0
        %2653 = vmatpush2.bf16.msra.mxu0 0
        %2654 = vmatprep.subr.bf16.mxu0 0
        %2655 = vmatpush2.bf16.msra.mxu0 0
        %2656 = vmatprep.subr.bf16.mxu0 0
        %2657 = vmatpush2.bf16.msra.mxu0 0
        %2658 = vmatprep.mubr.bf16.mxu0 0
        %2659 = vmatmul.mubr.bf16.gmra.mxu0 %v2545
        %v2660 = vpop.f32.mrf.mxu0
        %v2661 = vadd.f32 0.0, %v2660
        %v2662 = vpop.f32.mrf.mxu0
        %v2663 = vadd.f32 0.0, %v2662
        %v2664 = vpop.f32.mrf.mxu0
        %v2665 = vpop.f32.mrf.mxu0
        %2666 = vdwg.mxu0
        %v2683 = vunpack.c.l.b16 %v1328
        %v2684 = vunpack.c.h.b16 %v1328
        %v2685 = vunpack.c.l.b16 %v1329
        %v2686 = vunpack.c.h.b16 %v1329
        %v2687 = vunpack.c.l.b16 %v1330
        %v2688 = vunpack.c.h.b16 %v1330
        %v2689 = vunpack.c.l.b16 %v1331
        %v2690 = vunpack.c.h.b16 %v1331
        %v2691 = vunpack.c.l.b16 %v1332
        %v2692 = vunpack.c.h.b16 %v1332
        %v2693 = vunpack.c.l.b16 %v1333
        %v2694 = vunpack.c.h.b16 %v1333
        %v2695 = vunpack.c.l.b16 %v1334
        %v2696 = vunpack.c.h.b16 %v1334
        %v2697 = vunpack.c.l.b16 %v1335
        %v2698 = vunpack.c.h.b16 %v1335
        %v2699 = vunpack.c.l.b16 %v1336
        %v2700 = vunpack.c.h.b16 %v1336
        %v2701 = vunpack.c.l.b16 %v1337
        %v2702 = vunpack.c.h.b16 %v1337
        %v2703 = vunpack.c.l.b16 %v1338
        %v2704 = vunpack.c.h.b16 %v1338
        %v2705 = vunpack.c.l.b16 %v1339
        %v2706 = vunpack.c.h.b16 %v1339
        %v2707 = vunpack.c.l.b16 %v1340
        %v2708 = vunpack.c.h.b16 %v1340
        %v2709 = vunpack.c.l.b16 %v1341
        %v2710 = vunpack.c.h.b16 %v1341
        %v2711 = vunpack.c.l.b16 %v1342
        %v2712 = vunpack.c.h.b16 %v1342
        %v2713 = vunpack.c.l.b16 %v1343
        %v2714 = vunpack.c.h.b16 %v1343
        %v2715 = vpack.c.b16 %v2685, %v2683
        %v2716 = vpack.c.b16 %v2686, %v2684
        %v2717 = vpack.c.b16 %v2689, %v2687
        %v2718 = vpack.c.b16 %v2690, %v2688
        %v2719 = vpack.c.b16 %v2693, %v2691
        %v2720 = vpack.c.b16 %v2694, %v2692
        %v2721 = vpack.c.b16 %v2697, %v2695
        %v2722 = vpack.c.b16 %v2698, %v2696
        %v2723 = vpack.c.b16 %v2701, %v2699
        %v2724 = vpack.c.b16 %v2702, %v2700
        %v2725 = vpack.c.b16 %v2705, %v2703
        %v2726 = vpack.c.b16 %v2706, %v2704
        %v2727 = vpack.c.b16 %v2709, %v2707
        %v2728 = vpack.c.b16 %v2710, %v2708
        %v2729 = vpack.c.b16 %v2713, %v2711
        %v2730 = vpack.c.b16 %v2714, %v2712
        %2747 = vmatprep.subr.bf16.mxu0 %v2730
        %2748 = vmatpush1.bf16.msra.mxu0 %v2729
        %2749 = vmatprep.subr.bf16.mxu0 %v2728
        %2750 = vmatpush1.bf16.msra.mxu0 %v2727
        %2751 = vmatprep.subr.bf16.mxu0 %v2726
        %2752 = vmatpush1.bf16.msra.mxu0 %v2725
        %2753 = vmatprep.subr.bf16.mxu0 %v2724
        %2754 = vmatpush1.bf16.msra.mxu0 %v2723
        %2755 = vmatprep.subr.bf16.mxu0 %v2722
        %2756 = vmatpush1.bf16.msra.mxu0 %v2721
        %2757 = vmatprep.subr.bf16.mxu0 %v2720
        %2758 = vmatpush1.bf16.msra.mxu0 %v2719
        %2759 = vmatprep.subr.bf16.mxu0 %v2718
        %2760 = vmatpush1.bf16.msra.mxu0 %v2717
        %2761 = vmatprep.subr.bf16.mxu0 %v2716
        %2762 = vmatpush1.bf16.msra.mxu0 %v2715
        %2763 = vmatprep.subr.bf16.mxu0 0
        %2764 = vmatpush2.bf16.msra.mxu0 0
        %2765 = vmatprep.subr.bf16.mxu0 0
        %2766 = vmatpush2.bf16.msra.mxu0 0
        %2767 = vmatprep.subr.bf16.mxu0 0
        %2768 = vmatpush2.bf16.msra.mxu0 0
        %2769 = vmatprep.subr.bf16.mxu0 0
        %2770 = vmatpush2.bf16.msra.mxu0 0
        %2771 = vmatprep.subr.bf16.mxu0 0
        %2772 = vmatpush2.bf16.msra.mxu0 0
        %2773 = vmatprep.subr.bf16.mxu0 0
        %2774 = vmatpush2.bf16.msra.mxu0 0
        %2775 = vmatprep.subr.bf16.mxu0 0
        %2776 = vmatpush2.bf16.msra.mxu0 0
        %2777 = vmatprep.subr.bf16.mxu0 0
        %2778 = vmatpush2.bf16.msra.mxu0 0
        %2779 = vmatprep.mubr.bf16.mxu0 0
        %2780 = vmatmul.mubr.bf16.gmra.mxu0 %v2442
        %v2781 = vpop.f32.mrf.mxu0
        %v2782 = vadd.f32 %v2661, %v2781
        %v2783 = vpop.f32.mrf.mxu0
        %v2784 = vadd.f32 %v2663, %v2783
        %v2785 = vpop.f32.mrf.mxu0
        %v2786 = vpop.f32.mrf.mxu0
        %2787 = vdwg.mxu0
        %v2788 = vadd.f32 %v1621, %v2782
        %v2789 = vadd.f32 %v1622, %v2784
        %v2791 = vlaneseq
        %v2792 = vshrl.u32 %v2791, 7
        %v2793 = vsub.s32 0, %v2792
        %v2794 = vrot.slane %v1360, %v2793
        %v2795 = vlaneseq
        %v2796 = vshrl.u32 %v2795, 7
        %v2797 = vsub.s32 1, %v2796
        %v2798 = vrot.slane %v1360, %v2797
        %v2801 = vadd.f32 %v2788, %v2794
        %v2802 = vadd.f32 %v2789, %v2798
        %2803 = vst [vmem:[#allocation2] sm:$0x1f] %v2801
        %2804 = vst [vmem:[#allocation2 + $0x8] sm:$0x1f] %v2802
        %v2805 = vmul.f32 %v2245, 0.088388346
        %v2806 = vpack.c.bf16 %v2805, %v2335
        %v2807 = vpack.c.bf16 %v2288, %v2284
        %v2809 = vshrl.u32 %v2806, 16
        %v2811 = vrot.slane %v2809, 2
        %v2812 = vshll.u32 %v2806, 16
        %v2814 = vrot.slane %v2812, 3
        %v2815 = vor.u32 %v2811, %v2814
        %v2818 = vshrl.u32 %v2807, 16
        %v2820 = vrot.slane %v2818, 2
        %v2821 = vshll.u32 %v2807, 16
        %v2823 = vrot.slane %v2821, 3
        %v2824 = vor.u32 %v2820, %v2823
        %2826 = vmatprep.subr.bf16.mxu0 0
        %2827 = vmatpush1.bf16.xpose.msra.mxu0 0
        %2828 = vmatprep.subr.bf16.mxu0 0
        %2829 = vmatpush1.bf16.xpose.msra.mxu0 0
        %2830 = vmatprep.subr.bf16.mxu0 0
        %2831 = vmatpush1.bf16.xpose.msra.mxu0 0
        %2832 = vmatprep.subr.bf16.mxu0 0
        %2833 = vmatpush1.bf16.xpose.msra.mxu0 0
        %2834 = vmatprep.subr.bf16.mxu0 0
        %2835 = vmatpush1.bf16.xpose.msra.mxu0 0
        %2836 = vmatprep.subr.bf16.mxu0 0
        %2837 = vmatpush1.bf16.xpose.msra.mxu0 0
        %2838 = vmatprep.subr.bf16.mxu0 0
        %2839 = vmatpush1.bf16.xpose.msra.mxu0 0
        %2840 = vmatprep.subr.bf16.mxu0 0
        %2841 = vmatpush1.bf16.xpose.msra.mxu0 %v2824
        %2842 = vmatprep.subr.bf16.mxu0 0
        %2843 = vmatpush2.bf16.xpose.msra.mxu0 0
        %2844 = vmatprep.subr.bf16.mxu0 0
        %2845 = vmatpush2.bf16.xpose.msra.mxu0 0
        %2846 = vmatprep.subr.bf16.mxu0 0
        %2847 = vmatpush2.bf16.xpose.msra.mxu0 0
        %2848 = vmatprep.subr.bf16.mxu0 0
        %2849 = vmatpush2.bf16.xpose.msra.mxu0 0
        %2850 = vmatprep.subr.bf16.mxu0 0
        %2851 = vmatpush2.bf16.xpose.msra.mxu0 0
        %2852 = vmatprep.subr.bf16.mxu0 0
        %2853 = vmatpush2.bf16.xpose.msra.mxu0 0
        %2854 = vmatprep.subr.bf16.mxu0 0
        %2855 = vmatpush2.bf16.xpose.msra.mxu0 0
        %2856 = vmatprep.subr.bf16.mxu0 0
        %2857 = vmatpush2.bf16.xpose.msra.mxu0 0
        %2858 = vmatprep.mubr.bf16.mxu0 0
        %2859 = vmatmul.mubr.bf16.gmra.mxu0 %v2815
        %v2860 = vpop.f32.mrf.mxu0
        %v2861 = vadd.f32 0.0, %v2860
        %v2862 = vpop.f32.mrf.mxu0
        %v2863 = vpop.f32.mrf.mxu0
        %v2864 = vpop.f32.mrf.mxu0
        %2865 = vdwg.mxu0
        %v2866 = vsel %vm2378, %v2861, -inf
        %2867 = vmax.xlane.f32.xlu0 %v2866
        %v2868 = vpop.xlane.xlu0 %2867
        %v2869 = vsub.f32 %v2861, %v2868
        %v2870 = vmul.f32 %v2869, 1.442695
        %v2871 = vpow.pop %v2870
        %v2872 = vsel %vm2378, %v2871, 0.0
        %2873 = vadd.xlane.f32.xlu0 %v2872
        %v2874 = vpop.xlane.xlu0 %2873
        %v2875 = vrcp.pop %v2874
        %v2876 = vmul.f32 %v2871, %v2875
        %v2877 = vpack.c.bf16 %v2876, %v2876
        %v2878 = vpack.c.bf16 %v2331, %v2327
        %v2880 = vshrl.u32 %v2878, 16
        %v2882 = vrot.slane %v2880, 2
        %v2883 = vshll.u32 %v2878, 16
        %v2885 = vrot.slane %v2883, 3
        %v2886 = vor.u32 %v2882, %v2885
        %v2888 = vsel %vm2392, %v2877, 0
        %v2891 = vand.u32 %v2886, %v2398
        %2893 = vmatprep.subr.bf16.mxu0 0
        %2894 = vmatpush1.bf16.msra.mxu0 0
        %2895 = vmatprep.subr.bf16.mxu0 0
        %2896 = vmatpush1.bf16.msra.mxu0 0
        %2897 = vmatprep.subr.bf16.mxu0 0
        %2898 = vmatpush1.bf16.msra.mxu0 0
        %2899 = vmatprep.subr.bf16.mxu0 0
        %2900 = vmatpush1.bf16.msra.mxu0 0
        %2901 = vmatprep.subr.bf16.mxu0 0
        %2902 = vmatpush1.bf16.msra.mxu0 0
        %2903 = vmatprep.subr.bf16.mxu0 0
        %2904 = vmatpush1.bf16.msra.mxu0 0
        %2905 = vmatprep.subr.bf16.mxu0 0
        %2906 = vmatpush1.bf16.msra.mxu0 0
        %2907 = vmatprep.subr.bf16.mxu0 0
        %2908 = vmatpush1.bf16.msra.mxu0 %v2891
        %2909 = vmatprep.subr.bf16.mxu0 0
        %2910 = vmatpush2.bf16.msra.mxu0 0
        %2911 = vmatprep.subr.bf16.mxu0 0
        %2912 = vmatpush2.bf16.msra.mxu0 0
        %2913 = vmatprep.subr.bf16.mxu0 0
        %2914 = vmatpush2.bf16.msra.mxu0 0
        %2915 = vmatprep.subr.bf16.mxu0 0
        %2916 = vmatpush2.bf16.msra.mxu0 0
        %2917 = vmatprep.subr.bf16.mxu0 0
        %2918 = vmatpush2.bf16.msra.mxu0 0
        %2919 = vmatprep.subr.bf16.mxu0 0
        %2920 = vmatpush2.bf16.msra.mxu0 0
        %2921 = vmatprep.subr.bf16.mxu0 0
        %2922 = vmatpush2.bf16.msra.mxu0 0
        %2923 = vmatprep.subr.bf16.mxu0 0
        %2924 = vmatpush2.bf16.msra.mxu0 0
        %2925 = vmatprep.mubr.bf16.mxu0 0
        %2926 = vmatmul.mubr.bf16.gmra.mxu0 %v2888
        %v2927 = vpop.f32.mrf.mxu0
        %v2928 = vadd.f32 0.0, %v2927
        %v2929 = vpop.f32.mrf.mxu0
        %v2930 = vpop.f32.mrf.mxu0
        %v2931 = vpop.f32.mrf.mxu0
        %2932 = vdwg.mxu0
        %v2933 = vpack.c.bf16 %v2928, %v2928
        %v2934 = vmul.f32 %v2247, 0.088388346
        %v2935 = vpack.c.bf16 %v2934, %v2443
        %v2936 = vpack.c.bf16 %v2290, %v2286
        %v2938 = vshrl.u32 %v2935, 16
        %v2940 = vrot.slane %v2938, 2
        %v2941 = vshll.u32 %v2935, 16
        %v2943 = vrot.slane %v2941, 3
        %v2944 = vor.u32 %v2940, %v2943
        %v2947 = vshrl.u32 %v2936, 16
        %v2949 = vrot.slane %v2947, 2
        %v2950 = vshll.u32 %v2936, 16
        %v2952 = vrot.slane %v2950, 3
        %v2953 = vor.u32 %v2949, %v2952
        %2955 = vmatprep.subr.bf16.mxu0 0
        %2956 = vmatpush1.bf16.xpose.msra.mxu0 0
        %2957 = vmatprep.subr.bf16.mxu0 0
        %2958 = vmatpush1.bf16.xpose.msra.mxu0 0
        %2959 = vmatprep.subr.bf16.mxu0 0
        %2960 = vmatpush1.bf16.xpose.msra.mxu0 0
        %2961 = vmatprep.subr.bf16.mxu0 0
        %2962 = vmatpush1.bf16.xpose.msra.mxu0 0
        %2963 = vmatprep.subr.bf16.mxu0 0
        %2964 = vmatpush1.bf16.xpose.msra.mxu0 0
        %2965 = vmatprep.subr.bf16.mxu0 0
        %2966 = vmatpush1.bf16.xpose.msra.mxu0 0
        %2967 = vmatprep.subr.bf16.mxu0 0
        %2968 = vmatpush1.bf16.xpose.msra.mxu0 0
        %2969 = vmatprep.subr.bf16.mxu0 0
        %2970 = vmatpush1.bf16.xpose.msra.mxu0 %v2953
        %2971 = vmatprep.subr.bf16.mxu0 0
        %2972 = vmatpush2.bf16.xpose.msra.mxu0 0
        %2973 = vmatprep.subr.bf16.mxu0 0
        %2974 = vmatpush2.bf16.xpose.msra.mxu0 0
        %2975 = vmatprep.subr.bf16.mxu0 0
        %2976 = vmatpush2.bf16.xpose.msra.mxu0 0
        %2977 = vmatprep.subr.bf16.mxu0 0
        %2978 = vmatpush2.bf16.xpose.msra.mxu0 0
        %2979 = vmatprep.subr.bf16.mxu0 0
        %2980 = vmatpush2.bf16.xpose.msra.mxu0 0
        %2981 = vmatprep.subr.bf16.mxu0 0
        %2982 = vmatpush2.bf16.xpose.msra.mxu0 0
        %2983 = vmatprep.subr.bf16.mxu0 0
        %2984 = vmatpush2.bf16.xpose.msra.mxu0 0
        %2985 = vmatprep.subr.bf16.mxu0 0
        %2986 = vmatpush2.bf16.xpose.msra.mxu0 0
        %2987 = vmatprep.mubr.bf16.mxu0 0
        %2988 = vmatmul.mubr.bf16.gmra.mxu0 %v2944
        %v2989 = vpop.f32.mrf.mxu0
        %v2990 = vadd.f32 0.0, %v2989
        %v2991 = vpop.f32.mrf.mxu0
        %v2992 = vpop.f32.mrf.mxu0
        %v2993 = vpop.f32.mrf.mxu0
        %2994 = vdwg.mxu0
        %v2995 = vsel %vm2378, %v2990, -inf
        %2996 = vmax.xlane.f32.xlu0 %v2995
        %v2997 = vpop.xlane.xlu0 %2996
        %v2998 = vsub.f32 %v2990, %v2997
        %v2999 = vmul.f32 %v2998, 1.442695
        %v3000 = vpow.pop %v2999
        %v3001 = vsel %vm2378, %v3000, 0.0
        %3002 = vadd.xlane.f32.xlu0 %v3001
        %v3003 = vpop.xlane.xlu0 %3002
        %v3004 = vrcp.pop %v3003
        %v3005 = vmul.f32 %v3000, %v3004
        %v3006 = vpack.c.bf16 %v3005, %v3005
        %v3007 = vpack.c.bf16 %v2333, %v2329
        %v3009 = vshrl.u32 %v3007, 16
        %v3011 = vrot.slane %v3009, 2
        %v3012 = vshll.u32 %v3007, 16
        %v3014 = vrot.slane %v3012, 3
        %v3015 = vor.u32 %v3011, %v3014
        %v3017 = vsel %vm2392, %v3006, 0
        %v3020 = vand.u32 %v3015, %v2398
        %3022 = vmatprep.subr.bf16.mxu0 0
        %3023 = vmatpush1.bf16.msra.mxu0 0
        %3024 = vmatprep.subr.bf16.mxu0 0
        %3025 = vmatpush1.bf16.msra.mxu0 0
        %3026 = vmatprep.subr.bf16.mxu0 0
        %3027 = vmatpush1.bf16.msra.mxu0 0
        %3028 = vmatprep.subr.bf16.mxu0 0
        %3029 = vmatpush1.bf16.msra.mxu0 0
        %3030 = vmatprep.subr.bf16.mxu0 0
        %3031 = vmatpush1.bf16.msra.mxu0 0
        %3032 = vmatprep.subr.bf16.mxu0 0
        %3033 = vmatpush1.bf16.msra.mxu0 0
        %3034 = vmatprep.subr.bf16.mxu0 0
        %3035 = vmatpush1.bf16.msra.mxu0 0
        %3036 = vmatprep.subr.bf16.mxu0 0
        %3037 = vmatpush1.bf16.msra.mxu0 %v3020
        %3038 = vmatprep.subr.bf16.mxu0 0
        %3039 = vmatpush2.bf16.msra.mxu0 0
        %3040 = vmatprep.subr.bf16.mxu0 0
        %3041 = vmatpush2.bf16.msra.mxu0 0
        %3042 = vmatprep.subr.bf16.mxu0 0
        %3043 = vmatpush2.bf16.msra.mxu0 0
        %3044 = vmatprep.subr.bf16.mxu0 0
        %3045 = vmatpush2.bf16.msra.mxu0 0
        %3046 = vmatprep.subr.bf16.mxu0 0
        %3047 = vmatpush2.bf16.msra.mxu0 0
        %3048 = vmatprep.subr.bf16.mxu0 0
        %3049 = vmatpush2.bf16.msra.mxu0 0
        %3050 = vmatprep.subr.bf16.mxu0 0
        %3051 = vmatpush2.bf16.msra.mxu0 0
        %3052 = vmatprep.subr.bf16.mxu0 0
        %3053 = vmatpush2.bf16.msra.mxu0 0
        %3054 = vmatprep.mubr.bf16.mxu0 0
        %3055 = vmatmul.mubr.bf16.gmra.mxu0 %v3017
        %v3056 = vpop.f32.mrf.mxu0
        %v3057 = vadd.f32 0.0, %v3056
        %v3058 = vpop.f32.mrf.mxu0
        %v3059 = vpop.f32.mrf.mxu0
        %v3060 = vpop.f32.mrf.mxu0
        %3061 = vdwg.mxu0
        %v3062 = vpack.c.bf16 %v3057, %v3057
        %3063 = vmatprep.subr.bf16.mxu0 %v2609
        %3064 = vmatpush1.bf16.msra.mxu0 %v2608
        %3065 = vmatprep.subr.bf16.mxu0 %v2607
        %3066 = vmatpush1.bf16.msra.mxu0 %v2606
        %3067 = vmatprep.subr.bf16.mxu0 %v2605
        %3068 = vmatpush1.bf16.msra.mxu0 %v2604
        %3069 = vmatprep.subr.bf16.mxu0 %v2603
        %3070 = vmatpush1.bf16.msra.mxu0 %v2602
        %3071 = vmatprep.subr.bf16.mxu0 %v2601
        %3072 = vmatpush1.bf16.msra.mxu0 %v2600
        %3073 = vmatprep.subr.bf16.mxu0 %v2599
        %3074 = vmatpush1.bf16.msra.mxu0 %v2598
        %3075 = vmatprep.subr.bf16.mxu0 %v2597
        %3076 = vmatpush1.bf16.msra.mxu0 %v2596
        %3077 = vmatprep.subr.bf16.mxu0 %v2595
        %3078 = vmatpush1.bf16.msra.mxu0 %v2594
        %3079 = vmatprep.subr.bf16.mxu0 0
        %3080 = vmatpush2.bf16.msra.mxu0 0
        %3081 = vmatprep.subr.bf16.mxu0 0
        %3082 = vmatpush2.bf16.msra.mxu0 0
        %3083 = vmatprep.subr.bf16.mxu0 0
        %3084 = vmatpush2.bf16.msra.mxu0 0
        %3085 = vmatprep.subr.bf16.mxu0 0
        %3086 = vmatpush2.bf16.msra.mxu0 0
        %3087 = vmatprep.subr.bf16.mxu0 0
        %3088 = vmatpush2.bf16.msra.mxu0 0
        %3089 = vmatprep.subr.bf16.mxu0 0
        %3090 = vmatpush2.bf16.msra.mxu0 0
        %3091 = vmatprep.subr.bf16.mxu0 0
        %3092 = vmatpush2.bf16.msra.mxu0 0
        %3093 = vmatprep.subr.bf16.mxu0 0
        %3094 = vmatpush2.bf16.msra.mxu0 0
        %3095 = vmatprep.mubr.bf16.mxu0 0
        %3096 = vmatmul.mubr.bf16.gmra.mxu0 %v3062
        %v3097 = vpop.f32.mrf.mxu0
        %v3098 = vadd.f32 0.0, %v3097
        %v3099 = vpop.f32.mrf.mxu0
        %v3100 = vadd.f32 0.0, %v3099
        %v3101 = vpop.f32.mrf.mxu0
        %v3102 = vpop.f32.mrf.mxu0
        %3103 = vdwg.mxu0
        %3104 = vmatprep.subr.bf16.mxu0 %v2730
        %3105 = vmatpush1.bf16.msra.mxu0 %v2729
        %3106 = vmatprep.subr.bf16.mxu0 %v2728
        %3107 = vmatpush1.bf16.msra.mxu0 %v2727
        %3108 = vmatprep.subr.bf16.mxu0 %v2726
        %3109 = vmatpush1.bf16.msra.mxu0 %v2725
        %3110 = vmatprep.subr.bf16.mxu0 %v2724
        %3111 = vmatpush1.bf16.msra.mxu0 %v2723
        %3112 = vmatprep.subr.bf16.mxu0 %v2722
        %3113 = vmatpush1.bf16.msra.mxu0 %v2721
        %3114 = vmatprep.subr.bf16.mxu0 %v2720
        %3115 = vmatpush1.bf16.msra.mxu0 %v2719
        %3116 = vmatprep.subr.bf16.mxu0 %v2718
        %3117 = vmatpush1.bf16.msra.mxu0 %v2717
        %3118 = vmatprep.subr.bf16.mxu0 %v2716
        %3119 = vmatpush1.bf16.msra.mxu0 %v2715
        %3120 = vmatprep.subr.bf16.mxu0 0
        %3121 = vmatpush2.bf16.msra.mxu0 0
        %3122 = vmatprep.subr.bf16.mxu0 0
        %3123 = vmatpush2.bf16.msra.mxu0 0
        %3124 = vmatprep.subr.bf16.mxu0 0
        %3125 = vmatpush2.bf16.msra.mxu0 0
        %3126 = vmatprep.subr.bf16.mxu0 0
        %3127 = vmatpush2.bf16.msra.mxu0 0
        %3128 = vmatprep.subr.bf16.mxu0 0
        %3129 = vmatpush2.bf16.msra.mxu0 0
        %3130 = vmatprep.subr.bf16.mxu0 0
        %3131 = vmatpush2.bf16.msra.mxu0 0
        %3132 = vmatprep.subr.bf16.mxu0 0
        %3133 = vmatpush2.bf16.msra.mxu0 0
        %3134 = vmatprep.subr.bf16.mxu0 0
        %3135 = vmatpush2.bf16.msra.mxu0 0
        %3136 = vmatprep.mubr.bf16.mxu0 0
        %3137 = vmatmul.mubr.bf16.gmra.mxu0 %v2933
        %v3138 = vpop.f32.mrf.mxu0
        %v3139 = vadd.f32 %v3098, %v3138
        %v3140 = vpop.f32.mrf.mxu0
        %v3141 = vadd.f32 %v3100, %v3140
        %v3142 = vpop.f32.mrf.mxu0
        %v3143 = vpop.f32.mrf.mxu0
        %3144 = vdwg.mxu0
        %v3147 = vrot.slane %v3139, 3
        %v3148 = vrot.slane %v3141, 3
        %v3151 = vadd.f32 %v1621, %v3147
        %v3152 = vadd.f32 %v1622, %v3148
        %v3153 = vadd.f32 %v1623, %v3147
        %v3154 = vadd.f32 %v1624, %v3148
        %v3155 = vadd.f32 %v3151, %v2794
        %v3156 = vadd.f32 %v3152, %v2798
        %v3157 = vadd.f32 %v3153, %v2794
        %v3158 = vadd.f32 %v3154, %v2798
        %3159 = vst [vmem:[#allocation2] sm:$0xe0] %v3155
        %3160 = vst [vmem:[#allocation2 + $0x8] sm:$0xe0] %v3156
        %3161 = vst [vmem:[#allocation2 + $0x10] sm:$0x3] %v3157
        %3162 = vst [vmem:[#allocation2 + $0x18] sm:$0x3] %v3158
        %v3163 = vld [vmem:[#allocation2] sm:$0xff]
        %v3164 = vld [vmem:[#allocation2 + $0x8] sm:$0xff]
        %v3165 = vld [vmem:[#allocation2 + $0x10] sm:$0x3]
        %v3166 = vld [vmem:[#allocation2 + $0x18] sm:$0x3]
        %v3167 = vadd.f32 %v3163, %v3164
        %3168 = vadd.xlane.f32.xlu0 %v3167
        %v3169 = vpop.xlane.xlu0 %3168
        %v3170 = vsel %vm1628, %v3165, 0.0
        %v3171 = vsel %vm1628, %v3166, 0.0
        %v3172 = vadd.f32 %v3170, %v3171
        %3173 = vadd.xlane.f32.xlu0 %v3172
        %v3174 = vpop.xlane.xlu0 %3173
        %v3175 = vmul.f32 %v3169, %v1634
        %v3176 = vmul.f32 %v3174, %v1634
        %v3177 = vsub.f32 %v3163, %v3175
        %v3178 = vsub.f32 %v3164, %v3175
        %v3179 = vsub.f32 %v3165, %v3176
        %v3180 = vsub.f32 %v3166, %v3176
        %v3181 = vmul.f32 %v3177, %v3177
        %v3182 = vmul.f32 %v3178, %v3178
        %v3183 = vmul.f32 %v3179, %v3179
        %v3184 = vmul.f32 %v3180, %v3180
        %v3185 = vadd.f32 %v3181, %v3182
        %3186 = vadd.xlane.f32.xlu0 %v3185
        %v3187 = vpop.xlane.xlu0 %3186
        %v3188 = vsel %vm1628, %v3183, 0.0
        %v3189 = vsel %vm1628, %v3184, 0.0
        %v3190 = vadd.f32 %v3188, %v3189
        %3191 = vadd.xlane.f32.xlu0 %v3190
        %v3192 = vpop.xlane.xlu0 %3191
        %v3193 = vmul.f32 %v3187, %v1634
        %v3194 = vmul.f32 %v3192, %v1634
        %v3195 = vadd.f32 %v3193, 1e-06
        %v3196 = vadd.f32 %v3194, 1e-06
        %v3197 = vrsqrt.pop %v3195
        %v3198 = vrsqrt.pop %v3196
        %v3199 = vmul.f32 %v3177, %v3197
        %v3200 = vmul.f32 %v3178, %v3197
        %v3201 = vmul.f32 %v3179, %v3198
        %v3202 = vmul.f32 %v3180, %v3198
        %v3204 = vlaneseq
        %v3205 = vshrl.u32 %v3204, 7
        %v3206 = vsub.s32 0, %v3205
        %v3207 = vrot.slane %v1361, %v3206
        %v3208 = vlaneseq
        %v3209 = vshrl.u32 %v3208, 7
        %v3210 = vsub.s32 1, %v3209
        %v3211 = vrot.slane %v1361, %v3210
        %v3214 = vmul.f32 %v3199, %v3207
        %v3215 = vmul.f32 %v3200, %v3211
        %v3216 = vmul.f32 %v3201, %v3207
        %v3217 = vmul.f32 %v3202, %v3211
        %v3219 = vlaneseq
        %v3220 = vshrl.u32 %v3219, 7
        %v3221 = vsub.s32 0, %v3220
        %v3222 = vrot.slane %v1362, %v3221
        %v3223 = vlaneseq
        %v3224 = vshrl.u32 %v3223, 7
        %v3225 = vsub.s32 1, %v3224
        %v3226 = vrot.slane %v1362, %v3225
        %v3229 = vadd.f32 %v3214, %v3222
        %v3230 = vadd.f32 %v3215, %v3226
        %v3231 = vadd.f32 %v3216, %v3222
        %v3232 = vadd.f32 %v3217, %v3226
        %v3233 = vpack.c.bf16 %v3231, %v3229
        %v3234 = vpack.c.bf16 %v3232, %v3230
        %v3236 = vlaneseq
        %v3237 = vshrl.u32 %v3236, 7
        %v3238 = vsub.s32 0, %v3237
        %v3239 = vrot.slane %v1491, %v3238
        %v3240 = vlaneseq
        %v3241 = vshrl.u32 %v3240, 7
        %v3242 = vsub.s32 1, %v3241
        %v3243 = vrot.slane %v1491, %v3242
        %v3244 = vlaneseq
        %v3245 = vshrl.u32 %v3244, 7
        %v3246 = vsub.s32 2, %v3245
        %v3247 = vrot.slane %v1491, %v3246
        %v3248 = vlaneseq
        %v3249 = vshrl.u32 %v3248, 7
        %v3250 = vsub.s32 3, %v3249
        %v3251 = vrot.slane %v1491, %v3250
        %v3252 = vlaneseq
        %v3253 = vshrl.u32 %v3252, 7
        %v3254 = vsub.s32 4, %v3253
        %v3255 = vrot.slane %v1491, %v3254
        %v3256 = vlaneseq
        %v3257 = vshrl.u32 %v3256, 7
        %v3258 = vsub.s32 5, %v3257
        %v3259 = vrot.slane %v1491, %v3258
        %v3260 = vlaneseq
        %v3261 = vshrl.u32 %v3260, 7
        %v3262 = vsub.s32 6, %v3261
        %v3263 = vrot.slane %v1491, %v3262
        %v3264 = vlaneseq
        %v3265 = vshrl.u32 %v3264, 7
        %v3266 = vsub.s32 7, %v3265
        %v3267 = vrot.slane %v1491, %v3266
        %v3404 = vunpack.c.l.b16 %v1363
        %v3405 = vunpack.c.h.b16 %v1363
        %v3406 = vunpack.c.l.b16 %v1364
        %v3407 = vunpack.c.h.b16 %v1364
        %v3408 = vunpack.c.l.b16 %v1365
        %v3409 = vunpack.c.h.b16 %v1365
        %v3410 = vunpack.c.l.b16 %v1366
        %v3411 = vunpack.c.h.b16 %v1366
        %v3412 = vunpack.c.l.b16 %v1367
        %v3413 = vunpack.c.h.b16 %v1367
        %v3414 = vunpack.c.l.b16 %v1368
        %v3415 = vunpack.c.h.b16 %v1368
        %v3416 = vunpack.c.l.b16 %v1369
        %v3417 = vunpack.c.h.b16 %v1369
        %v3418 = vunpack.c.l.b16 %v1370
        %v3419 = vunpack.c.h.b16 %v1370
        %v3420 = vunpack.c.l.b16 %v1371
        %v3421 = vunpack.c.h.b16 %v1371
        %v3422 = vunpack.c.l.b16 %v1372
        %v3423 = vunpack.c.h.b16 %v1372
        %v3424 = vunpack.c.l.b16 %v1373
        %v3425 = vunpack.c.h.b16 %v1373
        %v3426 = vunpack.c.l.b16 %v1374
        %v3427 = vunpack.c.h.b16 %v1374
        %v3428 = vunpack.c.l.b16 %v1375
        %v3429 = vunpack.c.h.b16 %v1375
        %v3430 = vunpack.c.l.b16 %v1376
        %v3431 = vunpack.c.h.b16 %v1376
        %v3432 = vunpack.c.l.b16 %v1377
        %v3433 = vunpack.c.h.b16 %v1377
        %v3434 = vunpack.c.l.b16 %v1378
        %v3435 = vunpack.c.h.b16 %v1378
        %v3436 = vunpack.c.l.b16 %v1379
        %v3437 = vunpack.c.h.b16 %v1379
        %v3438 = vunpack.c.l.b16 %v1380
        %v3439 = vunpack.c.h.b16 %v1380
        %v3440 = vunpack.c.l.b16 %v1381
        %v3441 = vunpack.c.h.b16 %v1381
        %v3442 = vunpack.c.l.b16 %v1382
        %v3443 = vunpack.c.h.b16 %v1382
        %v3444 = vunpack.c.l.b16 %v1383
        %v3445 = vunpack.c.h.b16 %v1383
        %v3446 = vunpack.c.l.b16 %v1384
        %v3447 = vunpack.c.h.b16 %v1384
        %v3448 = vunpack.c.l.b16 %v1385
        %v3449 = vunpack.c.h.b16 %v1385
        %v3450 = vunpack.c.l.b16 %v1386
        %v3451 = vunpack.c.h.b16 %v1386
        %v3452 = vunpack.c.l.b16 %v1387
        %v3453 = vunpack.c.h.b16 %v1387
        %v3454 = vunpack.c.l.b16 %v1388
        %v3455 = vunpack.c.h.b16 %v1388
        %v3456 = vunpack.c.l.b16 %v1389
        %v3457 = vunpack.c.h.b16 %v1389
        %v3458 = vunpack.c.l.b16 %v1390
        %v3459 = vunpack.c.h.b16 %v1390
        %v3460 = vunpack.c.l.b16 %v1391
        %v3461 = vunpack.c.h.b16 %v1391
        %v3462 = vunpack.c.l.b16 %v1392
        %v3463 = vunpack.c.h.b16 %v1392
        %v3464 = vunpack.c.l.b16 %v1393
        %v3465 = vunpack.c.h.b16 %v1393
        %v3466 = vunpack.c.l.b16 %v1394
        %v3467 = vunpack.c.h.b16 %v1394
        %v3468 = vunpack.c.l.b16 %v1395
        %v3469 = vunpack.c.h.b16 %v1395
        %v3470 = vunpack.c.l.b16 %v1396
        %v3471 = vunpack.c.h.b16 %v1396
        %v3472 = vunpack.c.l.b16 %v1397
        %v3473 = vunpack.c.h.b16 %v1397
        %v3474 = vunpack.c.l.b16 %v1398
        %v3475 = vunpack.c.h.b16 %v1398
        %v3476 = vunpack.c.l.b16 %v1399
        %v3477 = vunpack.c.h.b16 %v1399
        %v3478 = vunpack.c.l.b16 %v1400
        %v3479 = vunpack.c.h.b16 %v1400
        %v3480 = vunpack.c.l.b16 %v1401
        %v3481 = vunpack.c.h.b16 %v1401
        %v3482 = vunpack.c.l.b16 %v1402
        %v3483 = vunpack.c.h.b16 %v1402
        %v3484 = vunpack.c.l.b16 %v1403
        %v3485 = vunpack.c.h.b16 %v1403
        %v3486 = vunpack.c.l.b16 %v1404
        %v3487 = vunpack.c.h.b16 %v1404
        %v3488 = vunpack.c.l.b16 %v1405
        %v3489 = vunpack.c.h.b16 %v1405
        %v3490 = vunpack.c.l.b16 %v1406
        %v3491 = vunpack.c.h.b16 %v1406
        %v3492 = vunpack.c.l.b16 %v1407
        %v3493 = vunpack.c.h.b16 %v1407
        %v3494 = vunpack.c.l.b16 %v1408
        %v3495 = vunpack.c.h.b16 %v1408
        %v3496 = vunpack.c.l.b16 %v1409
        %v3497 = vunpack.c.h.b16 %v1409
        %v3498 = vunpack.c.l.b16 %v1410
        %v3499 = vunpack.c.h.b16 %v1410
        %v3500 = vunpack.c.l.b16 %v1411
        %v3501 = vunpack.c.h.b16 %v1411
        %v3502 = vunpack.c.l.b16 %v1412
        %v3503 = vunpack.c.h.b16 %v1412
        %v3504 = vunpack.c.l.b16 %v1413
        %v3505 = vunpack.c.h.b16 %v1413
        %v3506 = vunpack.c.l.b16 %v1414
        %v3507 = vunpack.c.h.b16 %v1414
        %v3508 = vunpack.c.l.b16 %v1415
        %v3509 = vunpack.c.h.b16 %v1415
        %v3510 = vunpack.c.l.b16 %v1416
        %v3511 = vunpack.c.h.b16 %v1416
        %v3512 = vunpack.c.l.b16 %v1417
        %v3513 = vunpack.c.h.b16 %v1417
        %v3514 = vunpack.c.l.b16 %v1418
        %v3515 = vunpack.c.h.b16 %v1418
        %v3516 = vunpack.c.l.b16 %v1419
        %v3517 = vunpack.c.h.b16 %v1419
        %v3518 = vunpack.c.l.b16 %v1420
        %v3519 = vunpack.c.h.b16 %v1420
        %v3520 = vunpack.c.l.b16 %v1421
        %v3521 = vunpack.c.h.b16 %v1421
        %v3522 = vunpack.c.l.b16 %v1422
        %v3523 = vunpack.c.h.b16 %v1422
        %v3524 = vunpack.c.l.b16 %v1423
        %v3525 = vunpack.c.h.b16 %v1423
        %v3526 = vunpack.c.l.b16 %v1424
        %v3527 = vunpack.c.h.b16 %v1424
        %v3528 = vunpack.c.l.b16 %v1425
        %v3529 = vunpack.c.h.b16 %v1425
        %v3530 = vunpack.c.l.b16 %v1426
        %v3531 = vunpack.c.h.b16 %v1426
        %v3532 = vunpack.c.l.b16 %v1427
        %v3533 = vunpack.c.h.b16 %v1427
        %v3534 = vunpack.c.l.b16 %v1428
        %v3535 = vunpack.c.h.b16 %v1428
        %v3536 = vunpack.c.l.b16 %v1429
        %v3537 = vunpack.c.h.b16 %v1429
        %v3538 = vunpack.c.l.b16 %v1430
        %v3539 = vunpack.c.h.b16 %v1430
        %v3540 = vunpack.c.l.b16 %v1431
        %v3541 = vunpack.c.h.b16 %v1431
        %v3542 = vunpack.c.l.b16 %v1432
        %v3543 = vunpack.c.h.b16 %v1432
        %v3544 = vunpack.c.l.b16 %v1433
        %v3545 = vunpack.c.h.b16 %v1433
        %v3546 = vunpack.c.l.b16 %v1434
        %v3547 = vunpack.c.h.b16 %v1434
        %v3548 = vunpack.c.l.b16 %v1435
        %v3549 = vunpack.c.h.b16 %v1435
        %v3550 = vunpack.c.l.b16 %v1436
        %v3551 = vunpack.c.h.b16 %v1436
        %v3552 = vunpack.c.l.b16 %v1437
        %v3553 = vunpack.c.h.b16 %v1437
        %v3554 = vunpack.c.l.b16 %v1438
        %v3555 = vunpack.c.h.b16 %v1438
        %v3556 = vunpack.c.l.b16 %v1439
        %v3557 = vunpack.c.h.b16 %v1439
        %v3558 = vunpack.c.l.b16 %v1440
        %v3559 = vunpack.c.h.b16 %v1440
        %v3560 = vunpack.c.l.b16 %v1441
        %v3561 = vunpack.c.h.b16 %v1441
        %v3562 = vunpack.c.l.b16 %v1442
        %v3563 = vunpack.c.h.b16 %v1442
        %v3564 = vunpack.c.l.b16 %v1443
        %v3565 = vunpack.c.h.b16 %v1443
        %v3566 = vunpack.c.l.b16 %v1444
        %v3567 = vunpack.c.h.b16 %v1444
        %v3568 = vunpack.c.l.b16 %v1445
        %v3569 = vunpack.c.h.b16 %v1445
        %v3570 = vunpack.c.l.b16 %v1446
        %v3571 = vunpack.c.h.b16 %v1446
        %v3572 = vunpack.c.l.b16 %v1447
        %v3573 = vunpack.c.h.b16 %v1447
        %v3574 = vunpack.c.l.b16 %v1448
        %v3575 = vunpack.c.h.b16 %v1448
        %v3576 = vunpack.c.l.b16 %v1449
        %v3577 = vunpack.c.h.b16 %v1449
        %v3578 = vunpack.c.l.b16 %v1450
        %v3579 = vunpack.c.h.b16 %v1450
        %v3580 = vunpack.c.l.b16 %v1451
        %v3581 = vunpack.c.h.b16 %v1451
        %v3582 = vunpack.c.l.b16 %v1452
        %v3583 = vunpack.c.h.b16 %v1452
        %v3584 = vunpack.c.l.b16 %v1453
        %v3585 = vunpack.c.h.b16 %v1453
        %v3586 = vunpack.c.l.b16 %v1454
        %v3587 = vunpack.c.h.b16 %v1454
        %v3588 = vunpack.c.l.b16 %v1455
        %v3589 = vunpack.c.h.b16 %v1455
        %v3590 = vunpack.c.l.b16 %v1456
        %v3591 = vunpack.c.h.b16 %v1456
        %v3592 = vunpack.c.l.b16 %v1457
        %v3593 = vunpack.c.h.b16 %v1457
        %v3594 = vunpack.c.l.b16 %v1458
        %v3595 = vunpack.c.h.b16 %v1458
        %v3596 = vunpack.c.l.b16 %v1459
        %v3597 = vunpack.c.h.b16 %v1459
        %v3598 = vunpack.c.l.b16 %v1460
        %v3599 = vunpack.c.h.b16 %v1460
        %v3600 = vunpack.c.l.b16 %v1461
        %v3601 = vunpack.c.h.b16 %v1461
        %v3602 = vunpack.c.l.b16 %v1462
        %v3603 = vunpack.c.h.b16 %v1462
        %v3604 = vunpack.c.l.b16 %v1463
        %v3605 = vunpack.c.h.b16 %v1463
        %v3606 = vunpack.c.l.b16 %v1464
        %v3607 = vunpack.c.h.b16 %v1464
        %v3608 = vunpack.c.l.b16 %v1465
        %v3609 = vunpack.c.h.b16 %v1465
        %v3610 = vunpack.c.l.b16 %v1466
        %v3611 = vunpack.c.h.b16 %v1466
        %v3612 = vunpack.c.l.b16 %v1467
        %v3613 = vunpack.c.h.b16 %v1467
        %v3614 = vunpack.c.l.b16 %v1468
        %v3615 = vunpack.c.h.b16 %v1468
        %v3616 = vunpack.c.l.b16 %v1469
        %v3617 = vunpack.c.h.b16 %v1469
        %v3618 = vunpack.c.l.b16 %v1470
        %v3619 = vunpack.c.h.b16 %v1470
        %v3620 = vunpack.c.l.b16 %v1471
        %v3621 = vunpack.c.h.b16 %v1471
        %v3622 = vunpack.c.l.b16 %v1472
        %v3623 = vunpack.c.h.b16 %v1472
        %v3624 = vunpack.c.l.b16 %v1473
        %v3625 = vunpack.c.h.b16 %v1473
        %v3626 = vunpack.c.l.b16 %v1474
        %v3627 = vunpack.c.h.b16 %v1474
        %v3628 = vunpack.c.l.b16 %v1475
        %v3629 = vunpack.c.h.b16 %v1475
        %v3630 = vunpack.c.l.b16 %v1476
        %v3631 = vunpack.c.h.b16 %v1476
        %v3632 = vunpack.c.l.b16 %v1477
        %v3633 = vunpack.c.h.b16 %v1477
        %v3634 = vunpack.c.l.b16 %v1478
        %v3635 = vunpack.c.h.b16 %v1478
        %v3636 = vunpack.c.l.b16 %v1479
        %v3637 = vunpack.c.h.b16 %v1479
        %v3638 = vunpack.c.l.b16 %v1480
        %v3639 = vunpack.c.h.b16 %v1480
        %v3640 = vunpack.c.l.b16 %v1481
        %v3641 = vunpack.c.h.b16 %v1481
        %v3642 = vunpack.c.l.b16 %v1482
        %v3643 = vunpack.c.h.b16 %v1482
        %v3644 = vunpack.c.l.b16 %v1483
        %v3645 = vunpack.c.h.b16 %v1483
        %v3646 = vunpack.c.l.b16 %v1484
        %v3647 = vunpack.c.h.b16 %v1484
        %v3648 = vunpack.c.l.b16 %v1485
        %v3649 = vunpack.c.h.b16 %v1485
        %v3650 = vunpack.c.l.b16 %v1486
        %v3651 = vunpack.c.h.b16 %v1486
        %v3652 = vunpack.c.l.b16 %v1487
        %v3653 = vunpack.c.h.b16 %v1487
        %v3654 = vunpack.c.l.b16 %v1488
        %v3655 = vunpack.c.h.b16 %v1488
        %v3656 = vunpack.c.l.b16 %v1489
        %v3657 = vunpack.c.h.b16 %v1489
        %v3658 = vunpack.c.l.b16 %v1490
        %v3659 = vunpack.c.h.b16 %v1490
        %v3660 = vpack.c.b16 %v3412, %v3404
        %v3661 = vpack.c.b16 %v3413, %v3405
        %v3662 = vpack.c.b16 %v3414, %v3406
        %v3663 = vpack.c.b16 %v3415, %v3407
        %v3664 = vpack.c.b16 %v3416, %v3408
        %v3665 = vpack.c.b16 %v3417, %v3409
        %v3666 = vpack.c.b16 %v3418, %v3410
        %v3667 = vpack.c.b16 %v3419, %v3411
        %v3668 = vpack.c.b16 %v3428, %v3420
        %v3669 = vpack.c.b16 %v3429, %v3421
        %v3670 = vpack.c.b16 %v3430, %v3422
        %v3671 = vpack.c.b16 %v3431, %v3423
        %v3672 = vpack.c.b16 %v3432, %v3424
        %v3673 = vpack.c.b16 %v3433, %v3425
        %v3674 = vpack.c.b16 %v3434, %v3426
        %v3675 = vpack.c.b16 %v3435, %v3427
        %v3676 = vpack.c.b16 %v3444, %v3436
        %v3677 = vpack.c.b16 %v3445, %v3437
        %v3678 = vpack.c.b16 %v3446, %v3438
        %v3679 = vpack.c.b16 %v3447, %v3439
        %v3680 = vpack.c.b16 %v3448, %v3440
        %v3681 = vpack.c.b16 %v3449, %v3441
        %v3682 = vpack.c.b16 %v3450, %v3442
        %v3683 = vpack.c.b16 %v3451, %v3443
        %v3684 = vpack.c.b16 %v3460, %v3452
        %v3685 = vpack.c.b16 %v3461, %v3453
        %v3686 = vpack.c.b16 %v3462, %v3454
        %v3687 = vpack.c.b16 %v3463, %v3455
        %v3688 = vpack.c.b16 %v3464, %v3456
        %v3689 = vpack.c.b16 %v3465, %v3457
        %v3690 = vpack.c.b16 %v3466, %v3458
        %v3691 = vpack.c.b16 %v3467, %v3459
        %v3692 = vpack.c.b16 %v3476, %v3468
        %v3693 = vpack.c.b16 %v3477, %v3469
        %v3694 = vpack.c.b16 %v3478, %v3470
        %v3695 = vpack.c.b16 %v3479, %v3471
        %v3696 = vpack.c.b16 %v3480, %v3472
        %v3697 = vpack.c.b16 %v3481, %v3473
        %v3698 = vpack.c.b16 %v3482, %v3474
        %v3699 = vpack.c.b16 %v3483, %v3475
        %v3700 = vpack.c.b16 %v3492, %v3484
        %v3701 = vpack.c.b16 %v3493, %v3485
        %v3702 = vpack.c.b16 %v3494, %v3486
        %v3703 = vpack.c.b16 %v3495, %v3487
        %v3704 = vpack.c.b16 %v3496, %v3488
        %v3705 = vpack.c.b16 %v3497, %v3489
        %v3706 = vpack.c.b16 %v3498, %v3490
        %v3707 = vpack.c.b16 %v3499, %v3491
        %v3708 = vpack.c.b16 %v3508, %v3500
        %v3709 = vpack.c.b16 %v3509, %v3501
        %v3710 = vpack.c.b16 %v3510, %v3502
        %v3711 = vpack.c.b16 %v3511, %v3503
        %v3712 = vpack.c.b16 %v3512, %v3504
        %v3713 = vpack.c.b16 %v3513, %v3505
        %v3714 = vpack.c.b16 %v3514, %v3506
        %v3715 = vpack.c.b16 %v3515, %v3507
        %v3716 = vpack.c.b16 %v3524, %v3516
        %v3717 = vpack.c.b16 %v3525, %v3517
        %v3718 = vpack.c.b16 %v3526, %v3518
        %v3719 = vpack.c.b16 %v3527, %v3519
        %v3720 = vpack.c.b16 %v3528, %v3520
        %v3721 = vpack.c.b16 %v3529, %v3521
        %v3722 = vpack.c.b16 %v3530, %v3522
        %v3723 = vpack.c.b16 %v3531, %v3523
        %v3724 = vpack.c.b16 %v3540, %v3532
        %v3725 = vpack.c.b16 %v3541, %v3533
        %v3726 = vpack.c.b16 %v3542, %v3534
        %v3727 = vpack.c.b16 %v3543, %v3535
        %v3728 = vpack.c.b16 %v3544, %v3536
        %v3729 = vpack.c.b16 %v3545, %v3537
        %v3730 = vpack.c.b16 %v3546, %v3538
        %v3731 = vpack.c.b16 %v3547, %v3539
        %v3732 = vpack.c.b16 %v3556, %v3548
        %v3733 = vpack.c.b16 %v3557, %v3549
        %v3734 = vpack.c.b16 %v3558, %v3550
        %v3735 = vpack.c.b16 %v3559, %v3551
        %v3736 = vpack.c.b16 %v3560, %v3552
        %v3737 = vpack.c.b16 %v3561, %v3553
        %v3738 = vpack.c.b16 %v3562, %v3554
        %v3739 = vpack.c.b16 %v3563, %v3555
        %v3740 = vpack.c.b16 %v3572, %v3564
        %v3741 = vpack.c.b16 %v3573, %v3565
        %v3742 = vpack.c.b16 %v3574, %v3566
        %v3743 = vpack.c.b16 %v3575, %v3567
        %v3744 = vpack.c.b16 %v3576, %v3568
        %v3745 = vpack.c.b16 %v3577, %v3569
        %v3746 = vpack.c.b16 %v3578, %v3570
        %v3747 = vpack.c.b16 %v3579, %v3571
        %v3748 = vpack.c.b16 %v3588, %v3580
        %v3749 = vpack.c.b16 %v3589, %v3581
        %v3750 = vpack.c.b16 %v3590, %v3582
        %v3751 = vpack.c.b16 %v3591, %v3583
        %v3752 = vpack.c.b16 %v3592, %v3584
        %v3753 = vpack.c.b16 %v3593, %v3585
        %v3754 = vpack.c.b16 %v3594, %v3586
        %v3755 = vpack.c.b16 %v3595, %v3587
        %v3756 = vpack.c.b16 %v3604, %v3596
        %v3757 = vpack.c.b16 %v3605, %v3597
        %v3758 = vpack.c.b16 %v3606, %v3598
        %v3759 = vpack.c.b16 %v3607, %v3599
        %v3760 = vpack.c.b16 %v3608, %v3600
        %v3761 = vpack.c.b16 %v3609, %v3601
        %v3762 = vpack.c.b16 %v3610, %v3602
        %v3763 = vpack.c.b16 %v3611, %v3603
        %v3764 = vpack.c.b16 %v3620, %v3612
        %v3765 = vpack.c.b16 %v3621, %v3613
        %v3766 = vpack.c.b16 %v3622, %v3614
        %v3767 = vpack.c.b16 %v3623, %v3615
        %v3768 = vpack.c.b16 %v3624, %v3616
        %v3769 = vpack.c.b16 %v3625, %v3617
        %v3770 = vpack.c.b16 %v3626, %v3618
        %v3771 = vpack.c.b16 %v3627, %v3619
        %v3772 = vpack.c.b16 %v3636, %v3628
        %v3773 = vpack.c.b16 %v3637, %v3629
        %v3774 = vpack.c.b16 %v3638, %v3630
        %v3775 = vpack.c.b16 %v3639, %v3631
        %v3776 = vpack.c.b16 %v3640, %v3632
        %v3777 = vpack.c.b16 %v3641, %v3633
        %v3778 = vpack.c.b16 %v3642, %v3634
        %v3779 = vpack.c.b16 %v3643, %v3635
        %v3780 = vpack.c.b16 %v3652, %v3644
        %v3781 = vpack.c.b16 %v3653, %v3645
        %v3782 = vpack.c.b16 %v3654, %v3646
        %v3783 = vpack.c.b16 %v3655, %v3647
        %v3784 = vpack.c.b16 %v3656, %v3648
        %v3785 = vpack.c.b16 %v3657, %v3649
        %v3786 = vpack.c.b16 %v3658, %v3650
        %v3787 = vpack.c.b16 %v3659, %v3651
        %3916 = vmatprep.subr.bf16.mxu0 %v3717
        %3917 = vmatpush1.bf16.msra.mxu0 %v3716
        %3918 = vmatprep.subr.bf16.mxu0 %v3709
        %3919 = vmatpush1.bf16.msra.mxu0 %v3708
        %3920 = vmatprep.subr.bf16.mxu0 %v3701
        %3921 = vmatpush1.bf16.msra.mxu0 %v3700
        %3922 = vmatprep.subr.bf16.mxu0 %v3693
        %3923 = vmatpush1.bf16.msra.mxu0 %v3692
        %3924 = vmatprep.subr.bf16.mxu0 %v3685
        %3925 = vmatpush1.bf16.msra.mxu0 %v3684
        %3926 = vmatprep.subr.bf16.mxu0 %v3677
        %3927 = vmatpush1.bf16.msra.mxu0 %v3676
        %3928 = vmatprep.subr.bf16.mxu0 %v3669
        %3929 = vmatpush1.bf16.msra.mxu0 %v3668
        %3930 = vmatprep.subr.bf16.mxu0 %v3661
        %3931 = vmatpush1.bf16.msra.mxu0 %v3660
        %3932 = vmatprep.subr.bf16.mxu0 %v3781
        %3933 = vmatpush2.bf16.msra.mxu0 %v3780
        %3934 = vmatprep.subr.bf16.mxu0 %v3773
        %3935 = vmatpush2.bf16.msra.mxu0 %v3772
        %3936 = vmatprep.subr.bf16.mxu0 %v3765
        %3937 = vmatpush2.bf16.msra.mxu0 %v3764
        %3938 = vmatprep.subr.bf16.mxu0 %v3757
        %3939 = vmatpush2.bf16.msra.mxu0 %v3756
        %3940 = vmatprep.subr.bf16.mxu0 %v3749
        %3941 = vmatpush2.bf16.msra.mxu0 %v3748
        %3942 = vmatprep.subr.bf16.mxu0 %v3741
        %3943 = vmatpush2.bf16.msra.mxu0 %v3740
        %3944 = vmatprep.subr.bf16.mxu0 %v3733
        %3945 = vmatpush2.bf16.msra.mxu0 %v3732
        %3946 = vmatprep.subr.bf16.mxu0 %v3725
        %3947 = vmatpush2.bf16.msra.mxu0 %v3724
        %3948 = vmatprep.mubr.bf16.mxu0 %v3234
        %3949 = vmatmul.mubr.bf16.gmra.mxu0 %v3233
        %v3950 = vpop.f32.mrf.mxu0
        %v3951 = vadd.f32 %v3239, %v3950
        %v3952 = vpop.f32.mrf.mxu0
        %v3953 = vadd.f32 %v3243, %v3952
        %v3954 = vpop.f32.mrf.mxu0
        %v3955 = vadd.f32 %v3239, %v3954
        %v3956 = vpop.f32.mrf.mxu0
        %v3957 = vadd.f32 %v3243, %v3956
        %3958 = vdwg.mxu0
        %3959 = vmatprep.subr.bf16.mxu0 %v3719
        %3960 = vmatpush1.bf16.msra.mxu0 %v3718
        %3961 = vmatprep.subr.bf16.mxu0 %v3711
        %3962 = vmatpush1.bf16.msra.mxu0 %v3710
        %3963 = vmatprep.subr.bf16.mxu0 %v3703
        %3964 = vmatpush1.bf16.msra.mxu0 %v3702
        %3965 = vmatprep.subr.bf16.mxu0 %v3695
        %3966 = vmatpush1.bf16.msra.mxu0 %v3694
        %3967 = vmatprep.subr.bf16.mxu0 %v3687
        %3968 = vmatpush1.bf16.msra.mxu0 %v3686
        %3969 = vmatprep.subr.bf16.mxu0 %v3679
        %3970 = vmatpush1.bf16.msra.mxu0 %v3678
        %3971 = vmatprep.subr.bf16.mxu0 %v3671
        %3972 = vmatpush1.bf16.msra.mxu0 %v3670
        %3973 = vmatprep.subr.bf16.mxu0 %v3663
        %3974 = vmatpush1.bf16.msra.mxu0 %v3662
        %3975 = vmatprep.subr.bf16.mxu0 %v3783
        %3976 = vmatpush2.bf16.msra.mxu0 %v3782
        %3977 = vmatprep.subr.bf16.mxu0 %v3775
        %3978 = vmatpush2.bf16.msra.mxu0 %v3774
        %3979 = vmatprep.subr.bf16.mxu0 %v3767
        %3980 = vmatpush2.bf16.msra.mxu0 %v3766
        %3981 = vmatprep.subr.bf16.mxu0 %v3759
        %3982 = vmatpush2.bf16.msra.mxu0 %v3758
        %3983 = vmatprep.subr.bf16.mxu0 %v3751
        %3984 = vmatpush2.bf16.msra.mxu0 %v3750
        %3985 = vmatprep.subr.bf16.mxu0 %v3743
        %3986 = vmatpush2.bf16.msra.mxu0 %v3742
        %3987 = vmatprep.subr.bf16.mxu0 %v3735
        %3988 = vmatpush2.bf16.msra.mxu0 %v3734
        %3989 = vmatprep.subr.bf16.mxu0 %v3727
        %3990 = vmatpush2.bf16.msra.mxu0 %v3726
        %3991 = vmatprep.mubr.bf16.mxu0 %v3234
        %3992 = vmatmul.mubr.bf16.gmra.mxu0 %v3233
        %v3993 = vpop.f32.mrf.mxu0
        %v3994 = vadd.f32 %v3247, %v3993
        %v3995 = vpop.f32.mrf.mxu0
        %v3996 = vadd.f32 %v3251, %v3995
        %v3997 = vpop.f32.mrf.mxu0
        %v3998 = vadd.f32 %v3247, %v3997
        %v3999 = vpop.f32.mrf.mxu0
        %v4000 = vadd.f32 %v3251, %v3999
        %4001 = vdwg.mxu0
        %4002 = vmatprep.subr.bf16.mxu0 %v3721
        %4003 = vmatpush1.bf16.msra.mxu0 %v3720
        %4004 = vmatprep.subr.bf16.mxu0 %v3713
        %4005 = vmatpush1.bf16.msra.mxu0 %v3712
        %4006 = vmatprep.subr.bf16.mxu0 %v3705
        %4007 = vmatpush1.bf16.msra.mxu0 %v3704
        %4008 = vmatprep.subr.bf16.mxu0 %v3697
        %4009 = vmatpush1.bf16.msra.mxu0 %v3696
        %4010 = vmatprep.subr.bf16.mxu0 %v3689
        %4011 = vmatpush1.bf16.msra.mxu0 %v3688
        %4012 = vmatprep.subr.bf16.mxu0 %v3681
        %4013 = vmatpush1.bf16.msra.mxu0 %v3680
        %4014 = vmatprep.subr.bf16.mxu0 %v3673
        %4015 = vmatpush1.bf16.msra.mxu0 %v3672
        %4016 = vmatprep.subr.bf16.mxu0 %v3665
        %4017 = vmatpush1.bf16.msra.mxu0 %v3664
        %4018 = vmatprep.subr.bf16.mxu0 %v3785
        %4019 = vmatpush2.bf16.msra.mxu0 %v3784
        %4020 = vmatprep.subr.bf16.mxu0 %v3777
        %4021 = vmatpush2.bf16.msra.mxu0 %v3776
        %4022 = vmatprep.subr.bf16.mxu0 %v3769
        %4023 = vmatpush2.bf16.msra.mxu0 %v3768
        %4024 = vmatprep.subr.bf16.mxu0 %v3761
        %4025 = vmatpush2.bf16.msra.mxu0 %v3760
        %4026 = vmatprep.subr.bf16.mxu0 %v3753
        %4027 = vmatpush2.bf16.msra.mxu0 %v3752
        %4028 = vmatprep.subr.bf16.mxu0 %v3745
        %4029 = vmatpush2.bf16.msra.mxu0 %v3744
        %4030 = vmatprep.subr.bf16.mxu0 %v3737
        %4031 = vmatpush2.bf16.msra.mxu0 %v3736
        %4032 = vmatprep.subr.bf16.mxu0 %v3729
        %4033 = vmatpush2.bf16.msra.mxu0 %v3728
        %4034 = vmatprep.mubr.bf16.mxu0 %v3234
        %4035 = vmatmul.mubr.bf16.gmra.mxu0 %v3233
        %v4036 = vpop.f32.mrf.mxu0
        %v4037 = vadd.f32 %v3255, %v4036
        %v4038 = vpop.f32.mrf.mxu0
        %v4039 = vadd.f32 %v3259, %v4038
        %v4040 = vpop.f32.mrf.mxu0
        %v4041 = vadd.f32 %v3255, %v4040
        %v4042 = vpop.f32.mrf.mxu0
        %v4043 = vadd.f32 %v3259, %v4042
        %4044 = vdwg.mxu0
        %4045 = vmatprep.subr.bf16.mxu0 %v3723
        %4046 = vmatpush1.bf16.msra.mxu0 %v3722
        %4047 = vmatprep.subr.bf16.mxu0 %v3715
        %4048 = vmatpush1.bf16.msra.mxu0 %v3714
        %4049 = vmatprep.subr.bf16.mxu0 %v3707
        %4050 = vmatpush1.bf16.msra.mxu0 %v3706
        %4051 = vmatprep.subr.bf16.mxu0 %v3699
        %4052 = vmatpush1.bf16.msra.mxu0 %v3698
        %4053 = vmatprep.subr.bf16.mxu0 %v3691
        %4054 = vmatpush1.bf16.msra.mxu0 %v3690
        %4055 = vmatprep.subr.bf16.mxu0 %v3683
        %4056 = vmatpush1.bf16.msra.mxu0 %v3682
        %4057 = vmatprep.subr.bf16.mxu0 %v3675
        %4058 = vmatpush1.bf16.msra.mxu0 %v3674
        %4059 = vmatprep.subr.bf16.mxu0 %v3667
        %4060 = vmatpush1.bf16.msra.mxu0 %v3666
        %4061 = vmatprep.subr.bf16.mxu0 %v3787
        %4062 = vmatpush2.bf16.msra.mxu0 %v3786
        %4063 = vmatprep.subr.bf16.mxu0 %v3779
        %4064 = vmatpush2.bf16.msra.mxu0 %v3778
        %4065 = vmatprep.subr.bf16.mxu0 %v3771
        %4066 = vmatpush2.bf16.msra.mxu0 %v3770
        %4067 = vmatprep.subr.bf16.mxu0 %v3763
        %4068 = vmatpush2.bf16.msra.mxu0 %v3762
        %4069 = vmatprep.subr.bf16.mxu0 %v3755
        %4070 = vmatpush2.bf16.msra.mxu0 %v3754
        %4071 = vmatprep.subr.bf16.mxu0 %v3747
        %4072 = vmatpush2.bf16.msra.mxu0 %v3746
        %4073 = vmatprep.subr.bf16.mxu0 %v3739
        %4074 = vmatpush2.bf16.msra.mxu0 %v3738
        %4075 = vmatprep.subr.bf16.mxu0 %v3731
        %4076 = vmatpush2.bf16.msra.mxu0 %v3730
        %4077 = vmatprep.mubr.bf16.mxu0 %v3234
        %4078 = vmatmul.mubr.bf16.gmra.mxu0 %v3233
        %v4079 = vpop.f32.mrf.mxu0
        %v4080 = vadd.f32 %v3263, %v4079
        %v4081 = vpop.f32.mrf.mxu0
        %v4082 = vadd.f32 %v3267, %v4081
        %v4083 = vpop.f32.mrf.mxu0
        %v4084 = vadd.f32 %v3263, %v4083
        %v4085 = vpop.f32.mrf.mxu0
        %v4086 = vadd.f32 %v3267, %v4085
        %4087 = vdwg.mxu0
        %v4088 = vmul.f32 %v3951, 0.5
        %v4089 = vmul.f32 %v3953, 0.5
        %v4090 = vmul.f32 %v3994, 0.5
        %v4091 = vmul.f32 %v3996, 0.5
        %v4092 = vmul.f32 %v4037, 0.5
        %v4093 = vmul.f32 %v4039, 0.5
        %v4094 = vmul.f32 %v4080, 0.5
        %v4095 = vmul.f32 %v4082, 0.5
        %v4096 = vmul.f32 %v3955, 0.5
        %v4097 = vmul.f32 %v3957, 0.5
        %v4098 = vmul.f32 %v3998, 0.5
        %v4099 = vmul.f32 %v4000, 0.5
        %v4100 = vmul.f32 %v4041, 0.5
        %v4101 = vmul.f32 %v4043, 0.5
        %v4102 = vmul.f32 %v4084, 0.5
        %v4103 = vmul.f32 %v4086, 0.5
        %v4104 = vmul.f32 %v3951, 0.044715
        %v4105 = vmul.f32 %v3953, 0.044715
        %v4106 = vmul.f32 %v3994, 0.044715
        %v4107 = vmul.f32 %v3996, 0.044715
        %v4108 = vmul.f32 %v4037, 0.044715
        %v4109 = vmul.f32 %v4039, 0.044715
        %v4110 = vmul.f32 %v4080, 0.044715
        %v4111 = vmul.f32 %v4082, 0.044715
        %v4112 = vmul.f32 %v3955, 0.044715
        %v4113 = vmul.f32 %v3957, 0.044715
        %v4114 = vmul.f32 %v3998, 0.044715
        %v4115 = vmul.f32 %v4000, 0.044715
        %v4116 = vmul.f32 %v4041, 0.044715
        %v4117 = vmul.f32 %v4043, 0.044715
        %v4118 = vmul.f32 %v4084, 0.044715
        %v4119 = vmul.f32 %v4086, 0.044715
        %v4120 = vmul.f32 %v4104, %v3951
        %v4121 = vmul.f32 %v4105, %v3953
        %v4122 = vmul.f32 %v4106, %v3994
        %v4123 = vmul.f32 %v4107, %v3996
        %v4124 = vmul.f32 %v4108, %v4037
        %v4125 = vmul.f32 %v4109, %v4039
        %v4126 = vmul.f32 %v4110, %v4080
        %v4127 = vmul.f32 %v4111, %v4082
        %v4128 = vmul.f32 %v4112, %v3955
        %v4129 = vmul.f32 %v4113, %v3957
        %v4130 = vmul.f32 %v4114, %v3998
        %v4131 = vmul.f32 %v4115, %v4000
        %v4132 = vmul.f32 %v4116, %v4041
        %v4133 = vmul.f32 %v4117, %v4043
        %v4134 = vmul.f32 %v4118, %v4084
        %v4135 = vmul.f32 %v4119, %v4086
        %v4136 = vmul.f32 %v4120, %v3951
        %v4137 = vmul.f32 %v4121, %v3953
        %v4138 = vmul.f32 %v4122, %v3994
        %v4139 = vmul.f32 %v4123, %v3996
        %v4140 = vmul.f32 %v4124, %v4037
        %v4141 = vmul.f32 %v4125, %v4039
        %v4142 = vmul.f32 %v4126, %v4080
        %v4143 = vmul.f32 %v4127, %v4082
        %v4144 = vmul.f32 %v4128, %v3955
        %v4145 = vmul.f32 %v4129, %v3957
        %v4146 = vmul.f32 %v4130, %v3998
        %v4147 = vmul.f32 %v4131, %v4000
        %v4148 = vmul.f32 %v4132, %v4041
        %v4149 = vmul.f32 %v4133, %v4043
        %v4150 = vmul.f32 %v4134, %v4084
        %v4151 = vmul.f32 %v4135, %v4086
        %v4152 = vadd.f32 %v3951, %v4136
        %v4153 = vadd.f32 %v3953, %v4137
        %v4154 = vadd.f32 %v3994, %v4138
        %v4155 = vadd.f32 %v3996, %v4139
        %v4156 = vadd.f32 %v4037, %v4140
        %v4157 = vadd.f32 %v4039, %v4141
        %v4158 = vadd.f32 %v4080, %v4142
        %v4159 = vadd.f32 %v4082, %v4143
        %v4160 = vadd.f32 %v3955, %v4144
        %v4161 = vadd.f32 %v3957, %v4145
        %v4162 = vadd.f32 %v3998, %v4146
        %v4163 = vadd.f32 %v4000, %v4147
        %v4164 = vadd.f32 %v4041, %v4148
        %v4165 = vadd.f32 %v4043, %v4149
        %v4166 = vadd.f32 %v4084, %v4150
        %v4167 = vadd.f32 %v4086, %v4151
        %v4168 = vmul.f32 %v4152, 0.7978846
        %v4169 = vmul.f32 %v4153, 0.7978846
        %v4170 = vmul.f32 %v4154, 0.7978846
        %v4171 = vmul.f32 %v4155, 0.7978846
        %v4172 = vmul.f32 %v4156, 0.7978846
        %v4173 = vmul.f32 %v4157, 0.7978846
        %v4174 = vmul.f32 %v4158, 0.7978846
        %v4175 = vmul.f32 %v4159, 0.7978846
        %v4176 = vmul.f32 %v4160, 0.7978846
        %v4177 = vmul.f32 %v4161, 0.7978846
        %v4178 = vmul.f32 %v4162, 0.7978846
        %v4179 = vmul.f32 %v4163, 0.7978846
        %v4180 = vmul.f32 %v4164, 0.7978846
        %v4181 = vmul.f32 %v4165, 0.7978846
        %v4182 = vmul.f32 %v4166, 0.7978846
        %v4183 = vmul.f32 %v4167, 0.7978846
        %v4184 = vtanh.pop %v4168
        %v4185 = vtanh.pop %v4169
        %v4186 = vtanh.pop %v4170
        %v4187 = vtanh.pop %v4171
        %v4188 = vtanh.pop %v4172
        %v4189 = vtanh.pop %v4173
        %v4190 = vtanh.pop %v4174
        %v4191 = vtanh.pop %v4175
        %v4192 = vtanh.pop %v4176
        %v4193 = vtanh.pop %v4177
        %v4194 = vtanh.pop %v4178
        %v4195 = vtanh.pop %v4179
        %v4196 = vtanh.pop %v4180
        %v4197 = vtanh.pop %v4181
        %v4198 = vtanh.pop %v4182
        %v4199 = vtanh.pop %v4183
        %v4200 = vadd.f32 %v4184, 1.0
        %v4201 = vadd.f32 %v4185, 1.0
        %v4202 = vadd.f32 %v4186, 1.0
        %v4203 = vadd.f32 %v4187, 1.0
        %v4204 = vadd.f32 %v4188, 1.0
        %v4205 = vadd.f32 %v4189, 1.0
        %v4206 = vadd.f32 %v4190, 1.0
        %v4207 = vadd.f32 %v4191, 1.0
        %v4208 = vadd.f32 %v4192, 1.0
        %v4209 = vadd.f32 %v4193, 1.0
        %v4210 = vadd.f32 %v4194, 1.0
        %v4211 = vadd.f32 %v4195, 1.0
        %v4212 = vadd.f32 %v4196, 1.0
        %v4213 = vadd.f32 %v4197, 1.0
        %v4214 = vadd.f32 %v4198, 1.0
        %v4215 = vadd.f32 %v4199, 1.0
        %v4216 = vmul.f32 %v4088, %v4200
        %v4217 = vmul.f32 %v4089, %v4201
        %v4218 = vmul.f32 %v4090, %v4202
        %v4219 = vmul.f32 %v4091, %v4203
        %v4220 = vmul.f32 %v4092, %v4204
        %v4221 = vmul.f32 %v4093, %v4205
        %v4222 = vmul.f32 %v4094, %v4206
        %v4223 = vmul.f32 %v4095, %v4207
        %v4224 = vmul.f32 %v4096, %v4208
        %v4225 = vmul.f32 %v4097, %v4209
        %v4226 = vmul.f32 %v4098, %v4210
        %v4227 = vmul.f32 %v4099, %v4211
        %v4228 = vmul.f32 %v4100, %v4212
        %v4229 = vmul.f32 %v4101, %v4213
        %v4230 = vmul.f32 %v4102, %v4214
        %v4231 = vmul.f32 %v4103, %v4215
        %v4232 = vpack.c.bf16 %v4224, %v4216
        %v4233 = vpack.c.bf16 %v4225, %v4217
        %v4234 = vpack.c.bf16 %v4226, %v4218
        %v4235 = vpack.c.bf16 %v4227, %v4219
        %v4236 = vpack.c.bf16 %v4228, %v4220
        %v4237 = vpack.c.bf16 %v4229, %v4221
        %v4238 = vpack.c.bf16 %v4230, %v4222
        %v4239 = vpack.c.bf16 %v4231, %v4223
        %v4368 = vunpack.c.l.b16 %v1492
        %v4369 = vunpack.c.h.b16 %v1492
        %v4370 = vunpack.c.l.b16 %v1493
        %v4371 = vunpack.c.h.b16 %v1493
        %v4372 = vunpack.c.l.b16 %v1494
        %v4373 = vunpack.c.h.b16 %v1494
        %v4374 = vunpack.c.l.b16 %v1495
        %v4375 = vunpack.c.h.b16 %v1495
        %v4376 = vunpack.c.l.b16 %v1496
        %v4377 = vunpack.c.h.b16 %v1496
        %v4378 = vunpack.c.l.b16 %v1497
        %v4379 = vunpack.c.h.b16 %v1497
        %v4380 = vunpack.c.l.b16 %v1498
        %v4381 = vunpack.c.h.b16 %v1498
        %v4382 = vunpack.c.l.b16 %v1499
        %v4383 = vunpack.c.h.b16 %v1499
        %v4384 = vunpack.c.l.b16 %v1500
        %v4385 = vunpack.c.h.b16 %v1500
        %v4386 = vunpack.c.l.b16 %v1501
        %v4387 = vunpack.c.h.b16 %v1501
        %v4388 = vunpack.c.l.b16 %v1502
        %v4389 = vunpack.c.h.b16 %v1502
        %v4390 = vunpack.c.l.b16 %v1503
        %v4391 = vunpack.c.h.b16 %v1503
        %v4392 = vunpack.c.l.b16 %v1504
        %v4393 = vunpack.c.h.b16 %v1504
        %v4394 = vunpack.c.l.b16 %v1505
        %v4395 = vunpack.c.h.b16 %v1505
        %v4396 = vunpack.c.l.b16 %v1506
        %v4397 = vunpack.c.h.b16 %v1506
        %v4398 = vunpack.c.l.b16 %v1507
        %v4399 = vunpack.c.h.b16 %v1507
        %v4400 = vunpack.c.l.b16 %v1508
        %v4401 = vunpack.c.h.b16 %v1508
        %v4402 = vunpack.c.l.b16 %v1509
        %v4403 = vunpack.c.h.b16 %v1509
        %v4404 = vunpack.c.l.b16 %v1510
        %v4405 = vunpack.c.h.b16 %v1510
        %v4406 = vunpack.c.l.b16 %v1511
        %v4407 = vunpack.c.h.b16 %v1511
        %v4408 = vunpack.c.l.b16 %v1512
        %v4409 = vunpack.c.h.b16 %v1512
        %v4410 = vunpack.c.l.b16 %v1513
        %v4411 = vunpack.c.h.b16 %v1513
        %v4412 = vunpack.c.l.b16 %v1514
        %v4413 = vunpack.c.h.b16 %v1514
        %v4414 = vunpack.c.l.b16 %v1515
        %v4415 = vunpack.c.h.b16 %v1515
        %v4416 = vunpack.c.l.b16 %v1516
        %v4417 = vunpack.c.h.b16 %v1516
        %v4418 = vunpack.c.l.b16 %v1517
        %v4419 = vunpack.c.h.b16 %v1517
        %v4420 = vunpack.c.l.b16 %v1518
        %v4421 = vunpack.c.h.b16 %v1518
        %v4422 = vunpack.c.l.b16 %v1519
        %v4423 = vunpack.c.h.b16 %v1519
        %v4424 = vunpack.c.l.b16 %v1520
        %v4425 = vunpack.c.h.b16 %v1520
        %v4426 = vunpack.c.l.b16 %v1521
        %v4427 = vunpack.c.h.b16 %v1521
        %v4428 = vunpack.c.l.b16 %v1522
        %v4429 = vunpack.c.h.b16 %v1522
        %v4430 = vunpack.c.l.b16 %v1523
        %v4431 = vunpack.c.h.b16 %v1523
        %v4432 = vunpack.c.l.b16 %v1524
        %v4433 = vunpack.c.h.b16 %v1524
        %v4434 = vunpack.c.l.b16 %v1525
        %v4435 = vunpack.c.h.b16 %v1525
        %v4436 = vunpack.c.l.b16 %v1526
        %v4437 = vunpack.c.h.b16 %v1526
        %v4438 = vunpack.c.l.b16 %v1527
        %v4439 = vunpack.c.h.b16 %v1527
        %v4440 = vunpack.c.l.b16 %v1528
        %v4441 = vunpack.c.h.b16 %v1528
        %v4442 = vunpack.c.l.b16 %v1529
        %v4443 = vunpack.c.h.b16 %v1529
        %v4444 = vunpack.c.l.b16 %v1530
        %v4445 = vunpack.c.h.b16 %v1530
        %v4446 = vunpack.c.l.b16 %v1531
        %v4447 = vunpack.c.h.b16 %v1531
        %v4448 = vunpack.c.l.b16 %v1532
        %v4449 = vunpack.c.h.b16 %v1532
        %v4450 = vunpack.c.l.b16 %v1533
        %v4451 = vunpack.c.h.b16 %v1533
        %v4452 = vunpack.c.l.b16 %v1534
        %v4453 = vunpack.c.h.b16 %v1534
        %v4454 = vunpack.c.l.b16 %v1535
        %v4455 = vunpack.c.h.b16 %v1535
        %v4456 = vunpack.c.l.b16 %v1536
        %v4457 = vunpack.c.h.b16 %v1536
        %v4458 = vunpack.c.l.b16 %v1537
        %v4459 = vunpack.c.h.b16 %v1537
        %v4460 = vunpack.c.l.b16 %v1538
        %v4461 = vunpack.c.h.b16 %v1538
        %v4462 = vunpack.c.l.b16 %v1539
        %v4463 = vunpack.c.h.b16 %v1539
        %v4464 = vunpack.c.l.b16 %v1540
        %v4465 = vunpack.c.h.b16 %v1540
        %v4466 = vunpack.c.l.b16 %v1541
        %v4467 = vunpack.c.h.b16 %v1541
        %v4468 = vunpack.c.l.b16 %v1542
        %v4469 = vunpack.c.h.b16 %v1542
        %v4470 = vunpack.c.l.b16 %v1543
        %v4471 = vunpack.c.h.b16 %v1543
        %v4472 = vunpack.c.l.b16 %v1544
        %v4473 = vunpack.c.h.b16 %v1544
        %v4474 = vunpack.c.l.b16 %v1545
        %v4475 = vunpack.c.h.b16 %v1545
        %v4476 = vunpack.c.l.b16 %v1546
        %v4477 = vunpack.c.h.b16 %v1546
        %v4478 = vunpack.c.l.b16 %v1547
        %v4479 = vunpack.c.h.b16 %v1547
        %v4480 = vunpack.c.l.b16 %v1548
        %v4481 = vunpack.c.h.b16 %v1548
        %v4482 = vunpack.c.l.b16 %v1549
        %v4483 = vunpack.c.h.b16 %v1549
        %v4484 = vunpack.c.l.b16 %v1550
        %v4485 = vunpack.c.h.b16 %v1550
        %v4486 = vunpack.c.l.b16 %v1551
        %v4487 = vunpack.c.h.b16 %v1551
        %v4488 = vunpack.c.l.b16 %v1552
        %v4489 = vunpack.c.h.b16 %v1552
        %v4490 = vunpack.c.l.b16 %v1553
        %v4491 = vunpack.c.h.b16 %v1553
        %v4492 = vunpack.c.l.b16 %v1554
        %v4493 = vunpack.c.h.b16 %v1554
        %v4494 = vunpack.c.l.b16 %v1555
        %v4495 = vunpack.c.h.b16 %v1555
        %v4496 = vunpack.c.l.b16 %v1556
        %v4497 = vunpack.c.h.b16 %v1556
        %v4498 = vunpack.c.l.b16 %v1557
        %v4499 = vunpack.c.h.b16 %v1557
        %v4500 = vunpack.c.l.b16 %v1558
        %v4501 = vunpack.c.h.b16 %v1558
        %v4502 = vunpack.c.l.b16 %v1559
        %v4503 = vunpack.c.h.b16 %v1559
        %v4504 = vunpack.c.l.b16 %v1560
        %v4505 = vunpack.c.h.b16 %v1560
        %v4506 = vunpack.c.l.b16 %v1561
        %v4507 = vunpack.c.h.b16 %v1561
        %v4508 = vunpack.c.l.b16 %v1562
        %v4509 = vunpack.c.h.b16 %v1562
        %v4510 = vunpack.c.l.b16 %v1563
        %v4511 = vunpack.c.h.b16 %v1563
        %v4512 = vunpack.c.l.b16 %v1564
        %v4513 = vunpack.c.h.b16 %v1564
        %v4514 = vunpack.c.l.b16 %v1565
        %v4515 = vunpack.c.h.b16 %v1565
        %v4516 = vunpack.c.l.b16 %v1566
        %v4517 = vunpack.c.h.b16 %v1566
        %v4518 = vunpack.c.l.b16 %v1567
        %v4519 = vunpack.c.h.b16 %v1567
        %v4520 = vunpack.c.l.b16 %v1568
        %v4521 = vunpack.c.h.b16 %v1568
        %v4522 = vunpack.c.l.b16 %v1569
        %v4523 = vunpack.c.h.b16 %v1569
        %v4524 = vunpack.c.l.b16 %v1570
        %v4525 = vunpack.c.h.b16 %v1570
        %v4526 = vunpack.c.l.b16 %v1571
        %v4527 = vunpack.c.h.b16 %v1571
        %v4528 = vunpack.c.l.b16 %v1572
        %v4529 = vunpack.c.h.b16 %v1572
        %v4530 = vunpack.c.l.b16 %v1573
        %v4531 = vunpack.c.h.b16 %v1573
        %v4532 = vunpack.c.l.b16 %v1574
        %v4533 = vunpack.c.h.b16 %v1574
        %v4534 = vunpack.c.l.b16 %v1575
        %v4535 = vunpack.c.h.b16 %v1575
        %v4536 = vunpack.c.l.b16 %v1576
        %v4537 = vunpack.c.h.b16 %v1576
        %v4538 = vunpack.c.l.b16 %v1577
        %v4539 = vunpack.c.h.b16 %v1577
        %v4540 = vunpack.c.l.b16 %v1578
        %v4541 = vunpack.c.h.b16 %v1578
        %v4542 = vunpack.c.l.b16 %v1579
        %v4543 = vunpack.c.h.b16 %v1579
        %v4544 = vunpack.c.l.b16 %v1580
        %v4545 = vunpack.c.h.b16 %v1580
        %v4546 = vunpack.c.l.b16 %v1581
        %v4547 = vunpack.c.h.b16 %v1581
        %v4548 = vunpack.c.l.b16 %v1582
        %v4549 = vunpack.c.h.b16 %v1582
        %v4550 = vunpack.c.l.b16 %v1583
        %v4551 = vunpack.c.h.b16 %v1583
        %v4552 = vunpack.c.l.b16 %v1584
        %v4553 = vunpack.c.h.b16 %v1584
        %v4554 = vunpack.c.l.b16 %v1585
        %v4555 = vunpack.c.h.b16 %v1585
        %v4556 = vunpack.c.l.b16 %v1586
        %v4557 = vunpack.c.h.b16 %v1586
        %v4558 = vunpack.c.l.b16 %v1587
        %v4559 = vunpack.c.h.b16 %v1587
        %v4560 = vunpack.c.l.b16 %v1588
        %v4561 = vunpack.c.h.b16 %v1588
        %v4562 = vunpack.c.l.b16 %v1589
        %v4563 = vunpack.c.h.b16 %v1589
        %v4564 = vunpack.c.l.b16 %v1590
        %v4565 = vunpack.c.h.b16 %v1590
        %v4566 = vunpack.c.l.b16 %v1591
        %v4567 = vunpack.c.h.b16 %v1591
        %v4568 = vunpack.c.l.b16 %v1592
        %v4569 = vunpack.c.h.b16 %v1592
        %v4570 = vunpack.c.l.b16 %v1593
        %v4571 = vunpack.c.h.b16 %v1593
        %v4572 = vunpack.c.l.b16 %v1594
        %v4573 = vunpack.c.h.b16 %v1594
        %v4574 = vunpack.c.l.b16 %v1595
        %v4575 = vunpack.c.h.b16 %v1595
        %v4576 = vunpack.c.l.b16 %v1596
        %v4577 = vunpack.c.h.b16 %v1596
        %v4578 = vunpack.c.l.b16 %v1597
        %v4579 = vunpack.c.h.b16 %v1597
        %v4580 = vunpack.c.l.b16 %v1598
        %v4581 = vunpack.c.h.b16 %v1598
        %v4582 = vunpack.c.l.b16 %v1599
        %v4583 = vunpack.c.h.b16 %v1599
        %v4584 = vunpack.c.l.b16 %v1600
        %v4585 = vunpack.c.h.b16 %v1600
        %v4586 = vunpack.c.l.b16 %v1601
        %v4587 = vunpack.c.h.b16 %v1601
        %v4588 = vunpack.c.l.b16 %v1602
        %v4589 = vunpack.c.h.b16 %v1602
        %v4590 = vunpack.c.l.b16 %v1603
        %v4591 = vunpack.c.h.b16 %v1603
        %v4592 = vunpack.c.l.b16 %v1604
        %v4593 = vunpack.c.h.b16 %v1604
        %v4594 = vunpack.c.l.b16 %v1605
        %v4595 = vunpack.c.h.b16 %v1605
        %v4596 = vunpack.c.l.b16 %v1606
        %v4597 = vunpack.c.h.b16 %v1606
        %v4598 = vunpack.c.l.b16 %v1607
        %v4599 = vunpack.c.h.b16 %v1607
        %v4600 = vunpack.c.l.b16 %v1608
        %v4601 = vunpack.c.h.b16 %v1608
        %v4602 = vunpack.c.l.b16 %v1609
        %v4603 = vunpack.c.h.b16 %v1609
        %v4604 = vunpack.c.l.b16 %v1610
        %v4605 = vunpack.c.h.b16 %v1610
        %v4606 = vunpack.c.l.b16 %v1611
        %v4607 = vunpack.c.h.b16 %v1611
        %v4608 = vunpack.c.l.b16 %v1612
        %v4609 = vunpack.c.h.b16 %v1612
        %v4610 = vunpack.c.l.b16 %v1613
        %v4611 = vunpack.c.h.b16 %v1613
        %v4612 = vunpack.c.l.b16 %v1614
        %v4613 = vunpack.c.h.b16 %v1614
        %v4614 = vunpack.c.l.b16 %v1615
        %v4615 = vunpack.c.h.b16 %v1615
        %v4616 = vunpack.c.l.b16 %v1616
        %v4617 = vunpack.c.h.b16 %v1616
        %v4618 = vunpack.c.l.b16 %v1617
        %v4619 = vunpack.c.h.b16 %v1617
        %v4620 = vunpack.c.l.b16 %v1618
        %v4621 = vunpack.c.h.b16 %v1618
        %v4622 = vunpack.c.l.b16 %v1619
        %v4623 = vunpack.c.h.b16 %v1619
        %v4624 = vpack.c.b16 %v4370, %v4368
        %v4625 = vpack.c.b16 %v4371, %v4369
        %v4626 = vpack.c.b16 %v4374, %v4372
        %v4627 = vpack.c.b16 %v4375, %v4373
        %v4628 = vpack.c.b16 %v4378, %v4376
        %v4629 = vpack.c.b16 %v4379, %v4377
        %v4630 = vpack.c.b16 %v4382, %v4380
        %v4631 = vpack.c.b16 %v4383, %v4381
        %v4632 = vpack.c.b16 %v4386, %v4384
        %v4633 = vpack.c.b16 %v4387, %v4385
        %v4634 = vpack.c.b16 %v4390, %v4388
        %v4635 = vpack.c.b16 %v4391, %v4389
        %v4636 = vpack.c.b16 %v4394, %v4392
        %v4637 = vpack.c.b16 %v4395, %v4393
        %v4638 = vpack.c.b16 %v4398, %v4396
        %v4639 = vpack.c.b16 %v4399, %v4397
        %v4640 = vpack.c.b16 %v4402, %v4400
        %v4641 = vpack.c.b16 %v4403, %v4401
        %v4642 = vpack.c.b16 %v4406, %v4404
        %v4643 = vpack.c.b16 %v4407, %v4405
        %v4644 = vpack.c.b16 %v4410, %v4408
        %v4645 = vpack.c.b16 %v4411, %v4409
        %v4646 = vpack.c.b16 %v4414, %v4412
        %v4647 = vpack.c.b16 %v4415, %v4413
        %v4648 = vpack.c.b16 %v4418, %v4416
        %v4649 = vpack.c.b16 %v4419, %v4417
        %v4650 = vpack.c.b16 %v4422, %v4420
        %v4651 = vpack.c.b16 %v4423, %v4421
        %v4652 = vpack.c.b16 %v4426, %v4424
        %v4653 = vpack.c.b16 %v4427, %v4425
        %v4654 = vpack.c.b16 %v4430, %v4428
        %v4655 = vpack.c.b16 %v4431, %v4429
        %v4656 = vpack.c.b16 %v4434, %v4432
        %v4657 = vpack.c.b16 %v4435, %v4433
        %v4658 = vpack.c.b16 %v4438, %v4436
        %v4659 = vpack.c.b16 %v4439, %v4437
        %v4660 = vpack.c.b16 %v4442, %v4440
        %v4661 = vpack.c.b16 %v4443, %v4441
        %v4662 = vpack.c.b16 %v4446, %v4444
        %v4663 = vpack.c.b16 %v4447, %v4445
        %v4664 = vpack.c.b16 %v4450, %v4448
        %v4665 = vpack.c.b16 %v4451, %v4449
        %v4666 = vpack.c.b16 %v4454, %v4452
        %v4667 = vpack.c.b16 %v4455, %v4453
        %v4668 = vpack.c.b16 %v4458, %v4456
        %v4669 = vpack.c.b16 %v4459, %v4457
        %v4670 = vpack.c.b16 %v4462, %v4460
        %v4671 = vpack.c.b16 %v4463, %v4461
        %v4672 = vpack.c.b16 %v4466, %v4464
        %v4673 = vpack.c.b16 %v4467, %v4465
        %v4674 = vpack.c.b16 %v4470, %v4468
        %v4675 = vpack.c.b16 %v4471, %v4469
        %v4676 = vpack.c.b16 %v4474, %v4472
        %v4677 = vpack.c.b16 %v4475, %v4473
        %v4678 = vpack.c.b16 %v4478, %v4476
        %v4679 = vpack.c.b16 %v4479, %v4477
        %v4680 = vpack.c.b16 %v4482, %v4480
        %v4681 = vpack.c.b16 %v4483, %v4481
        %v4682 = vpack.c.b16 %v4486, %v4484
        %v4683 = vpack.c.b16 %v4487, %v4485
        %v4684 = vpack.c.b16 %v4490, %v4488
        %v4685 = vpack.c.b16 %v4491, %v4489
        %v4686 = vpack.c.b16 %v4494, %v4492
        %v4687 = vpack.c.b16 %v4495, %v4493
        %v4688 = vpack.c.b16 %v4498, %v4496
        %v4689 = vpack.c.b16 %v4499, %v4497
        %v4690 = vpack.c.b16 %v4502, %v4500
        %v4691 = vpack.c.b16 %v4503, %v4501
        %v4692 = vpack.c.b16 %v4506, %v4504
        %v4693 = vpack.c.b16 %v4507, %v4505
        %v4694 = vpack.c.b16 %v4510, %v4508
        %v4695 = vpack.c.b16 %v4511, %v4509
        %v4696 = vpack.c.b16 %v4514, %v4512
        %v4697 = vpack.c.b16 %v4515, %v4513
        %v4698 = vpack.c.b16 %v4518, %v4516
        %v4699 = vpack.c.b16 %v4519, %v4517
        %v4700 = vpack.c.b16 %v4522, %v4520
        %v4701 = vpack.c.b16 %v4523, %v4521
        %v4702 = vpack.c.b16 %v4526, %v4524
        %v4703 = vpack.c.b16 %v4527, %v4525
        %v4704 = vpack.c.b16 %v4530, %v4528
        %v4705 = vpack.c.b16 %v4531, %v4529
        %v4706 = vpack.c.b16 %v4534, %v4532
        %v4707 = vpack.c.b16 %v4535, %v4533
        %v4708 = vpack.c.b16 %v4538, %v4536
        %v4709 = vpack.c.b16 %v4539, %v4537
        %v4710 = vpack.c.b16 %v4542, %v4540
        %v4711 = vpack.c.b16 %v4543, %v4541
        %v4712 = vpack.c.b16 %v4546, %v4544
        %v4713 = vpack.c.b16 %v4547, %v4545
        %v4714 = vpack.c.b16 %v4550, %v4548
        %v4715 = vpack.c.b16 %v4551, %v4549
        %v4716 = vpack.c.b16 %v4554, %v4552
        %v4717 = vpack.c.b16 %v4555, %v4553
        %v4718 = vpack.c.b16 %v4558, %v4556
        %v4719 = vpack.c.b16 %v4559, %v4557
        %v4720 = vpack.c.b16 %v4562, %v4560
        %v4721 = vpack.c.b16 %v4563, %v4561
        %v4722 = vpack.c.b16 %v4566, %v4564
        %v4723 = vpack.c.b16 %v4567, %v4565
        %v4724 = vpack.c.b16 %v4570, %v4568
        %v4725 = vpack.c.b16 %v4571, %v4569
        %v4726 = vpack.c.b16 %v4574, %v4572
        %v4727 = vpack.c.b16 %v4575, %v4573
        %v4728 = vpack.c.b16 %v4578, %v4576
        %v4729 = vpack.c.b16 %v4579, %v4577
        %v4730 = vpack.c.b16 %v4582, %v4580
        %v4731 = vpack.c.b16 %v4583, %v4581
        %v4732 = vpack.c.b16 %v4586, %v4584
        %v4733 = vpack.c.b16 %v4587, %v4585
        %v4734 = vpack.c.b16 %v4590, %v4588
        %v4735 = vpack.c.b16 %v4591, %v4589
        %v4736 = vpack.c.b16 %v4594, %v4592
        %v4737 = vpack.c.b16 %v4595, %v4593
        %v4738 = vpack.c.b16 %v4598, %v4596
        %v4739 = vpack.c.b16 %v4599, %v4597
        %v4740 = vpack.c.b16 %v4602, %v4600
        %v4741 = vpack.c.b16 %v4603, %v4601
        %v4742 = vpack.c.b16 %v4606, %v4604
        %v4743 = vpack.c.b16 %v4607, %v4605
        %v4744 = vpack.c.b16 %v4610, %v4608
        %v4745 = vpack.c.b16 %v4611, %v4609
        %v4746 = vpack.c.b16 %v4614, %v4612
        %v4747 = vpack.c.b16 %v4615, %v4613
        %v4748 = vpack.c.b16 %v4618, %v4616
        %v4749 = vpack.c.b16 %v4619, %v4617
        %v4750 = vpack.c.b16 %v4622, %v4620
        %v4751 = vpack.c.b16 %v4623, %v4621
        %4880 = vmatprep.subr.bf16.mxu0 %v4639
        %4881 = vmatpush1.bf16.msra.mxu0 %v4638
        %4882 = vmatprep.subr.bf16.mxu0 %v4637
        %4883 = vmatpush1.bf16.msra.mxu0 %v4636
        %4884 = vmatprep.subr.bf16.mxu0 %v4635
        %4885 = vmatpush1.bf16.msra.mxu0 %v4634
        %4886 = vmatprep.subr.bf16.mxu0 %v4633
        %4887 = vmatpush1.bf16.msra.mxu0 %v4632
        %4888 = vmatprep.subr.bf16.mxu0 %v4631
        %4889 = vmatpush1.bf16.msra.mxu0 %v4630
        %4890 = vmatprep.subr.bf16.mxu0 %v4629
        %4891 = vmatpush1.bf16.msra.mxu0 %v4628
        %4892 = vmatprep.subr.bf16.mxu0 %v4627
        %4893 = vmatpush1.bf16.msra.mxu0 %v4626
        %4894 = vmatprep.subr.bf16.mxu0 %v4625
        %4895 = vmatpush1.bf16.msra.mxu0 %v4624
        %4896 = vmatprep.subr.bf16.mxu0 %v4655
        %4897 = vmatpush2.bf16.msra.mxu0 %v4654
        %4898 = vmatprep.subr.bf16.mxu0 %v4653
        %4899 = vmatpush2.bf16.msra.mxu0 %v4652
        %4900 = vmatprep.subr.bf16.mxu0 %v4651
        %4901 = vmatpush2.bf16.msra.mxu0 %v4650
        %4902 = vmatprep.subr.bf16.mxu0 %v4649
        %4903 = vmatpush2.bf16.msra.mxu0 %v4648
        %4904 = vmatprep.subr.bf16.mxu0 %v4647
        %4905 = vmatpush2.bf16.msra.mxu0 %v4646
        %4906 = vmatprep.subr.bf16.mxu0 %v4645
        %4907 = vmatpush2.bf16.msra.mxu0 %v4644
        %4908 = vmatprep.subr.bf16.mxu0 %v4643
        %4909 = vmatpush2.bf16.msra.mxu0 %v4642
        %4910 = vmatprep.subr.bf16.mxu0 %v4641
        %4911 = vmatpush2.bf16.msra.mxu0 %v4640
        %4912 = vmatprep.mubr.bf16.mxu0 %v4233
        %4913 = vmatmul.mubr.bf16.gmra.mxu0 %v4232
        %v4914 = vpop.f32.mrf.mxu0
        %v4915 = vadd.f32 0.0, %v4914
        %v4916 = vpop.f32.mrf.mxu0
        %v4917 = vadd.f32 0.0, %v4916
        %v4918 = vpop.f32.mrf.mxu0
        %v4919 = vadd.f32 0.0, %v4918
        %v4920 = vpop.f32.mrf.mxu0
        %v4921 = vadd.f32 0.0, %v4920
        %4922 = vdwg.mxu0
        %4923 = vmatprep.subr.bf16.mxu0 %v4671
        %4924 = vmatpush1.bf16.msra.mxu0 %v4670
        %4925 = vmatprep.subr.bf16.mxu0 %v4669
        %4926 = vmatpush1.bf16.msra.mxu0 %v4668
        %4927 = vmatprep.subr.bf16.mxu0 %v4667
        %4928 = vmatpush1.bf16.msra.mxu0 %v4666
        %4929 = vmatprep.subr.bf16.mxu0 %v4665
        %4930 = vmatpush1.bf16.msra.mxu0 %v4664
        %4931 = vmatprep.subr.bf16.mxu0 %v4663
        %4932 = vmatpush1.bf16.msra.mxu0 %v4662
        %4933 = vmatprep.subr.bf16.mxu0 %v4661
        %4934 = vmatpush1.bf16.msra.mxu0 %v4660
        %4935 = vmatprep.subr.bf16.mxu0 %v4659
        %4936 = vmatpush1.bf16.msra.mxu0 %v4658
        %4937 = vmatprep.subr.bf16.mxu0 %v4657
        %4938 = vmatpush1.bf16.msra.mxu0 %v4656
        %4939 = vmatprep.subr.bf16.mxu0 %v4687
        %4940 = vmatpush2.bf16.msra.mxu0 %v4686
        %4941 = vmatprep.subr.bf16.mxu0 %v4685
        %4942 = vmatpush2.bf16.msra.mxu0 %v4684
        %4943 = vmatprep.subr.bf16.mxu0 %v4683
        %4944 = vmatpush2.bf16.msra.mxu0 %v4682
        %4945 = vmatprep.subr.bf16.mxu0 %v4681
        %4946 = vmatpush2.bf16.msra.mxu0 %v4680
        %4947 = vmatprep.subr.bf16.mxu0 %v4679
        %4948 = vmatpush2.bf16.msra.mxu0 %v4678
        %4949 = vmatprep.subr.bf16.mxu0 %v4677
        %4950 = vmatpush2.bf16.msra.mxu0 %v4676
        %4951 = vmatprep.subr.bf16.mxu0 %v4675
        %4952 = vmatpush2.bf16.msra.mxu0 %v4674
        %4953 = vmatprep.subr.bf16.mxu0 %v4673
        %4954 = vmatpush2.bf16.msra.mxu0 %v4672
        %4955 = vmatprep.mubr.bf16.mxu0 %v4235
        %4956 = vmatmul.mubr.bf16.gmra.mxu0 %v4234
        %v4957 = vpop.f32.mrf.mxu0
        %v4958 = vadd.f32 %v4915, %v4957
        %v4959 = vpop.f32.mrf.mxu0
        %v4960 = vadd.f32 %v4917, %v4959
        %v4961 = vpop.f32.mrf.mxu0
        %v4962 = vadd.f32 %v4919, %v4961
        %v4963 = vpop.f32.mrf.mxu0
        %v4964 = vadd.f32 %v4921, %v4963
        %4965 = vdwg.mxu0
        %4966 = vmatprep.subr.bf16.mxu0 %v4703
        %4967 = vmatpush1.bf16.msra.mxu0 %v4702
        %4968 = vmatprep.subr.bf16.mxu0 %v4701
        %4969 = vmatpush1.bf16.msra.mxu0 %v4700
        %4970 = vmatprep.subr.bf16.mxu0 %v4699
        %4971 = vmatpush1.bf16.msra.mxu0 %v4698
        %4972 = vmatprep.subr.bf16.mxu0 %v4697
        %4973 = vmatpush1.bf16.msra.mxu0 %v4696
        %4974 = vmatprep.subr.bf16.mxu0 %v4695
        %4975 = vmatpush1.bf16.msra.mxu0 %v4694
        %4976 = vmatprep.subr.bf16.mxu0 %v4693
        %4977 = vmatpush1.bf16.msra.mxu0 %v4692
        %4978 = vmatprep.subr.bf16.mxu0 %v4691
        %4979 = vmatpush1.bf16.msra.mxu0 %v4690
        %4980 = vmatprep.subr.bf16.mxu0 %v4689
        %4981 = vmatpush1.bf16.msra.mxu0 %v4688
        %4982 = vmatprep.subr.bf16.mxu0 %v4719
        %4983 = vmatpush2.bf16.msra.mxu0 %v4718
        %4984 = vmatprep.subr.bf16.mxu0 %v4717
        %4985 = vmatpush2.bf16.msra.mxu0 %v4716
        %4986 = vmatprep.subr.bf16.mxu0 %v4715
        %4987 = vmatpush2.bf16.msra.mxu0 %v4714
        %4988 = vmatprep.subr.bf16.mxu0 %v4713
        %4989 = vmatpush2.bf16.msra.mxu0 %v4712
        %4990 = vmatprep.subr.bf16.mxu0 %v4711
        %4991 = vmatpush2.bf16.msra.mxu0 %v4710
        %4992 = vmatprep.subr.bf16.mxu0 %v4709
        %4993 = vmatpush2.bf16.msra.mxu0 %v4708
        %4994 = vmatprep.subr.bf16.mxu0 %v4707
        %4995 = vmatpush2.bf16.msra.mxu0 %v4706
        %4996 = vmatprep.subr.bf16.mxu0 %v4705
        %4997 = vmatpush2.bf16.msra.mxu0 %v4704
        %4998 = vmatprep.mubr.bf16.mxu0 %v4237
        %4999 = vmatmul.mubr.bf16.gmra.mxu0 %v4236
        %v5000 = vpop.f32.mrf.mxu0
        %v5001 = vadd.f32 %v4958, %v5000
        %v5002 = vpop.f32.mrf.mxu0
        %v5003 = vadd.f32 %v4960, %v5002
        %v5004 = vpop.f32.mrf.mxu0
        %v5005 = vadd.f32 %v4962, %v5004
        %v5006 = vpop.f32.mrf.mxu0
        %v5007 = vadd.f32 %v4964, %v5006
        %5008 = vdwg.mxu0
        %5009 = vmatprep.subr.bf16.mxu0 %v4735
        %5010 = vmatpush1.bf16.msra.mxu0 %v4734
        %5011 = vmatprep.subr.bf16.mxu0 %v4733
        %5012 = vmatpush1.bf16.msra.mxu0 %v4732
        %5013 = vmatprep.subr.bf16.mxu0 %v4731
        %5014 = vmatpush1.bf16.msra.mxu0 %v4730
        %5015 = vmatprep.subr.bf16.mxu0 %v4729
        %5016 = vmatpush1.bf16.msra.mxu0 %v4728
        %5017 = vmatprep.subr.bf16.mxu0 %v4727
        %5018 = vmatpush1.bf16.msra.mxu0 %v4726
        %5019 = vmatprep.subr.bf16.mxu0 %v4725
        %5020 = vmatpush1.bf16.msra.mxu0 %v4724
        %5021 = vmatprep.subr.bf16.mxu0 %v4723
        %5022 = vmatpush1.bf16.msra.mxu0 %v4722
        %5023 = vmatprep.subr.bf16.mxu0 %v4721
        %5024 = vmatpush1.bf16.msra.mxu0 %v4720
        %5025 = vmatprep.subr.bf16.mxu0 %v4751
        %5026 = vmatpush2.bf16.msra.mxu0 %v4750
        %5027 = vmatprep.subr.bf16.mxu0 %v4749
        %5028 = vmatpush2.bf16.msra.mxu0 %v4748
        %5029 = vmatprep.subr.bf16.mxu0 %v4747
        %5030 = vmatpush2.bf16.msra.mxu0 %v4746
        %5031 = vmatprep.subr.bf16.mxu0 %v4745
        %5032 = vmatpush2.bf16.msra.mxu0 %v4744
        %5033 = vmatprep.subr.bf16.mxu0 %v4743
        %5034 = vmatpush2.bf16.msra.mxu0 %v4742
        %5035 = vmatprep.subr.bf16.mxu0 %v4741
        %5036 = vmatpush2.bf16.msra.mxu0 %v4740
        %5037 = vmatprep.subr.bf16.mxu0 %v4739
        %5038 = vmatpush2.bf16.msra.mxu0 %v4738
        %5039 = vmatprep.subr.bf16.mxu0 %v4737
        %5040 = vmatpush2.bf16.msra.mxu0 %v4736
        %5041 = vmatprep.mubr.bf16.mxu0 %v4239
        %5042 = vmatmul.mubr.bf16.gmra.mxu0 %v4238
        %v5043 = vpop.f32.mrf.mxu0
        %v5044 = vadd.f32 %v5001, %v5043
        %v5045 = vpop.f32.mrf.mxu0
        %v5046 = vadd.f32 %v5003, %v5045
        %v5047 = vpop.f32.mrf.mxu0
        %v5048 = vadd.f32 %v5005, %v5047
        %v5049 = vpop.f32.mrf.mxu0
        %v5050 = vadd.f32 %v5007, %v5049
        %5051 = vdwg.mxu0
        %v5052 = vadd.f32 %v3163, %v5044
        %v5053 = vadd.f32 %v3164, %v5046
        %v5054 = vadd.f32 %v3165, %v5048
        %v5055 = vadd.f32 %v3166, %v5050
        %v5057 = vlaneseq
        %v5058 = vshrl.u32 %v5057, 7
        %v5059 = vsub.s32 0, %v5058
        %v5060 = vrot.slane %v1620, %v5059
        %v5061 = vlaneseq
        %v5062 = vshrl.u32 %v5061, 7
        %v5063 = vsub.s32 1, %v5062
        %v5064 = vrot.slane %v1620, %v5063
        %v5067 = vadd.f32 %v5052, %v5060
        %v5068 = vadd.f32 %v5053, %v5064
        %v5069 = vadd.f32 %v5054, %v5060
        %v5070 = vadd.f32 %v5055, %v5064
        %5071 = vst [vmem:[#allocation2] sm:$0xff] %v5067
        %5072 = vst [vmem:[#allocation2 + $0x8] sm:$0xff] %v5068
        %5073 = vst [vmem:[#allocation2 + $0x10] sm:$0x3] %v5069
        %5074 = vst [vmem:[#allocation2 + $0x18] sm:$0x3] %v5070
        %p5075 = scmp.eq.s32.totalorder %s40, 1
        // Predicated region
        $region129: #{vit_forward.1} parent=103 // pred_check
          %p5076 = pneg %p5075
        $region130: #{vit_forward.1} parent=103 // pred_check_branch
          %5078 = sbr.rel (%p5076) target = $region132
        $region131: #{vit_forward.1} parent=103 // pred_region
          %v5079 = vld [vmem:[#allocation2] ss:$8 sm:$0x3]
          %v5080 = vld [vmem:[%s17] sm:$0x3]
          %v5081 = vld [vmem:[%s18] sm:$0x3]
          %v5083 = vlaneseq
          %v5084 = vshrl.u32 %v5083, 7
          %v5085 = vsub.s32 0, %v5084
          %v5086 = vrot.slane %v5079, %v5085
          %v5087 = vlaneseq
          %v5088 = vshrl.u32 %v5087, 7
          %v5089 = vsub.s32 1, %v5088
          %v5090 = vrot.slane %v5079, %v5089
          %vm5093 = vcmask 1040384
          %v5094 = vsel %vm5093, %v5086, 0.0
          %v5095 = vsel %vm5093, %v5090, 0.0
          %v5096 = vadd.f32 %v5094, %v5095
          %5097 = vadd.xlane.f32.xlu0 %v5096
          %v5098 = vpop.xlane.xlu0 %5097
          %v5099 = vmul.f32 %v5098, %v1634
          %v5101 = vlaneseq
          %v5102 = vshrl.u32 %v5101, 7
          %v5103 = vsub.s32 0, %v5102
          %v5104 = vrot.slane %v5099, %v5103
          %v5106 = vsub.f32 %v5079, %v5104
          %v5107 = vmul.f32 %v5106, %v5106
          %v5109 = vlaneseq
          %v5110 = vshrl.u32 %v5109, 7
          %v5111 = vsub.s32 0, %v5110
          %v5112 = vrot.slane %v5107, %v5111
          %v5113 = vlaneseq
          %v5114 = vshrl.u32 %v5113, 7
          %v5115 = vsub.s32 1, %v5114
          %v5116 = vrot.slane %v5107, %v5115
          %v5119 = vsel %vm5093, %v5112, 0.0
          %v5120 = vsel %vm5093, %v5116, 0.0
          %v5121 = vadd.f32 %v5119, %v5120
          %5122 = vadd.xlane.f32.xlu0 %v5121
          %v5123 = vpop.xlane.xlu0 %5122
          %v5124 = vmul.f32 %v5123, %v1634
          %v5125 = vadd.f32 %v5124, 1e-06
          %v5126 = vrsqrt.pop %v5125
          %v5128 = vlaneseq
          %v5129 = vshrl.u32 %v5128, 7
          %v5130 = vsub.s32 0, %v5129
          %v5131 = vrot.slane %v5126, %v5130
          %v5133 = vmul.f32 %v5106, %v5131
          %v5134 = vmul.f32 %v5133, %v5080
          %v5135 = vadd.f32 %v5134, %v5081
          %v5137 = vlaneseq
          %v5138 = vshrl.u32 %v5137, 7
          %v5139 = vsub.s32 0, %v5138
          %v5140 = vrot.slane %v5135, %v5139
          %v5141 = vlaneseq
          %v5142 = vshrl.u32 %v5141, 7
          %v5143 = vsub.s32 1, %v5142
          %v5144 = vrot.slane %v5135, %v5143
          %v5147 = vpack.c.bf16 %v5140, %v5140
          %v5148 = vpack.c.bf16 %v5144, %v5144
          %v5149 = vld [vmem:[#allocation11] sm:$0xf]
          %v5150 = vld [vmem:[#allocation11 + $0x4] sm:$0xf]
          %v5151 = vld [vmem:[#allocation11 + $0x8] sm:$0xf]
          %v5152 = vld [vmem:[#allocation11 + $0xc] sm:$0xf]
          %v5153 = vld [vmem:[#allocation11 + $0x10] sm:$0xf]
          %v5154 = vld [vmem:[#allocation11 + $0x14] sm:$0xf]
          %v5155 = vld [vmem:[#allocation11 + $0x18] sm:$0xf]
          %v5156 = vld [vmem:[#allocation11 + $0x1c] sm:$0xf]
          %v5157 = vld [vmem:[#allocation11 + $0x20] sm:$0xf]
          %v5158 = vld [vmem:[#allocation11 + $0x24] sm:$0xf]
          %v5159 = vld [vmem:[#allocation11 + $0x28] sm:$0xf]
          %v5160 = vld [vmem:[#allocation11 + $0x2c] sm:$0xf]
          %v5161 = vld [vmem:[#allocation11 + $0x30] sm:$0xf]
          %v5162 = vld [vmem:[#allocation11 + $0x34] sm:$0xf]
          %v5163 = vld [vmem:[#allocation11 + $0x38] sm:$0xf]
          %v5164 = vld [vmem:[#allocation11 + $0x3c] sm:$0xf]
          %v5165 = vld [vmem:[#allocation11 + $0x40] sm:$0xf]
          %v5166 = vld [vmem:[#allocation11 + $0x44] sm:$0xf]
          %v5167 = vld [vmem:[#allocation11 + $0x48] sm:$0xf]
          %v5168 = vld [vmem:[#allocation11 + $0x4c] sm:$0xf]
          %v5169 = vld [vmem:[#allocation11 + $0x50] sm:$0xf]
          %v5170 = vld [vmem:[#allocation11 + $0x54] sm:$0xf]
          %v5171 = vld [vmem:[#allocation11 + $0x58] sm:$0xf]
          %v5172 = vld [vmem:[#allocation11 + $0x5c] sm:$0xf]
          %v5173 = vld [vmem:[#allocation11 + $0x60] sm:$0xf]
          %v5174 = vld [vmem:[#allocation11 + $0x64] sm:$0xf]
          %v5175 = vld [vmem:[#allocation11 + $0x68] sm:$0xf]
          %v5176 = vld [vmem:[#allocation11 + $0x6c] sm:$0xf]
          %v5177 = vld [vmem:[#allocation11 + $0x70] sm:$0xf]
          %v5178 = vld [vmem:[#allocation11 + $0x74] sm:$0xf]
          %v5179 = vld [vmem:[#allocation11 + $0x78] sm:$0xf]
          %v5180 = vld [vmem:[#allocation11 + $0x7c] sm:$0xf]
          %v5181 = vld [vmem:[%s20] sm:$0x1]
          %v5214 = vunpack.c.l.b16 %v5149
          %v5215 = vunpack.c.l.b16 %v5150
          %v5216 = vunpack.c.l.b16 %v5151
          %v5217 = vunpack.c.l.b16 %v5152
          %v5218 = vunpack.c.l.b16 %v5153
          %v5219 = vunpack.c.l.b16 %v5154
          %v5220 = vunpack.c.l.b16 %v5155
          %v5221 = vunpack.c.l.b16 %v5156
          %v5222 = vunpack.c.l.b16 %v5157
          %v5223 = vunpack.c.l.b16 %v5158
          %v5224 = vunpack.c.l.b16 %v5159
          %v5225 = vunpack.c.l.b16 %v5160
          %v5226 = vunpack.c.l.b16 %v5161
          %v5227 = vunpack.c.l.b16 %v5162
          %v5228 = vunpack.c.l.b16 %v5163
          %v5229 = vunpack.c.l.b16 %v5164
          %v5230 = vunpack.c.l.b16 %v5165
          %v5231 = vunpack.c.l.b16 %v5166
          %v5232 = vunpack.c.l.b16 %v5167
          %v5233 = vunpack.c.l.b16 %v5168
          %v5234 = vunpack.c.l.b16 %v5169
          %v5235 = vunpack.c.l.b16 %v5170
          %v5236 = vunpack.c.l.b16 %v5171
          %v5237 = vunpack.c.l.b16 %v5172
          %v5238 = vunpack.c.l.b16 %v5173
          %v5239 = vunpack.c.l.b16 %v5174
          %v5240 = vunpack.c.l.b16 %v5175
          %v5241 = vunpack.c.l.b16 %v5176
          %v5242 = vunpack.c.l.b16 %v5177
          %v5243 = vunpack.c.l.b16 %v5178
          %v5244 = vunpack.c.l.b16 %v5179
          %v5245 = vunpack.c.l.b16 %v5180
          %v5246 = vpack.c.b16 %v5215, %v5214
          %v5247 = vpack.c.b16 %v5217, %v5216
          %v5248 = vpack.c.b16 %v5219, %v5218
          %v5249 = vpack.c.b16 %v5221, %v5220
          %v5250 = vpack.c.b16 %v5223, %v5222
          %v5251 = vpack.c.b16 %v5225, %v5224
          %v5252 = vpack.c.b16 %v5227, %v5226
          %v5253 = vpack.c.b16 %v5229, %v5228
          %v5254 = vpack.c.b16 %v5231, %v5230
          %v5255 = vpack.c.b16 %v5233, %v5232
          %v5256 = vpack.c.b16 %v5235, %v5234
          %v5257 = vpack.c.b16 %v5237, %v5236
          %v5258 = vpack.c.b16 %v5239, %v5238
          %v5259 = vpack.c.b16 %v5241, %v5240
          %v5260 = vpack.c.b16 %v5243, %v5242
          %v5261 = vpack.c.b16 %v5245, %v5244
          %5278 = vmatprep.subr.bf16.mxu0 0
          %5279 = vmatpush1.bf16.msra.mxu0 %v5253
          %5280 = vmatprep.subr.bf16.mxu0 0
          %5281 = vmatpush1.bf16.msra.mxu0 %v5252
          %5282 = vmatprep.subr.bf16.mxu0 0
          %5283 = vmatpush1.bf16.msra.mxu0 %v5251
          %5284 = vmatprep.subr.bf16.mxu0 0
          %5285 = vmatpush1.bf16.msra.mxu0 %v5250
          %5286 = vmatprep.subr.bf16.mxu0 0
          %5287 = vmatpush1.bf16.msra.mxu0 %v5249
          %5288 = vmatprep.subr.bf16.mxu0 0
          %5289 = vmatpush1.bf16.msra.mxu0 %v5248
          %5290 = vmatprep.subr.bf16.mxu0 0
          %5291 = vmatpush1.bf16.msra.mxu0 %v5247
          %5292 = vmatprep.subr.bf16.mxu0 0
          %5293 = vmatpush1.bf16.msra.mxu0 %v5246
          %5294 = vmatprep.subr.bf16.mxu0 0
          %5295 = vmatpush2.bf16.msra.mxu0 %v5261
          %5296 = vmatprep.subr.bf16.mxu0 0
          %5297 = vmatpush2.bf16.msra.mxu0 %v5260
          %5298 = vmatprep.subr.bf16.mxu0 0
          %5299 = vmatpush2.bf16.msra.mxu0 %v5259
          %5300 = vmatprep.subr.bf16.mxu0 0
          %5301 = vmatpush2.bf16.msra.mxu0 %v5258
          %5302 = vmatprep.subr.bf16.mxu0 0
          %5303 = vmatpush2.bf16.msra.mxu0 %v5257
          %5304 = vmatprep.subr.bf16.mxu0 0
          %5305 = vmatpush2.bf16.msra.mxu0 %v5256
          %5306 = vmatprep.subr.bf16.mxu0 0
          %5307 = vmatpush2.bf16.msra.mxu0 %v5255
          %5308 = vmatprep.subr.bf16.mxu0 0
          %5309 = vmatpush2.bf16.msra.mxu0 %v5254
          %5310 = vmatprep.mubr.bf16.mxu0 %v5148
          %5311 = vmatmul.mubr.bf16.gmra.mxu0 %v5147
          %v5312 = vpop.f32.mrf.mxu0
          %v5313 = vadd.f32 %v5181, %v5312
          %v5314 = vpop.f32.mrf.mxu0
          %v5315 = vpop.f32.mrf.mxu0
          %v5316 = vpop.f32.mrf.mxu0
          %5317 = vdwg.mxu0
          %5318 = vst [vmem:[#allocation12] sm:$0x1] %v5313
          %s5319 = scalar_lea.vmem [#allocation2], 5
          %v5320 = vld [vmem:[%s5319] ss:$8 sm:$0x3]
          %v5321 = vld [vmem:[%s17] sm:$0x3]
          %v5322 = vld [vmem:[%s18] sm:$0x3]
          %v5324 = vlaneseq
          %v5325 = vshrl.u32 %v5324, 7
          %v5326 = vsub.s32 0, %v5325
          %v5327 = vrot.slane %v5320, %v5326
          %v5328 = vlaneseq
          %v5329 = vshrl.u32 %v5328, 7
          %v5330 = vsub.s32 1, %v5329
          %v5331 = vrot.slane %v5320, %v5330
          %v5334 = vsel %vm5093, %v5327, 0.0
          %v5335 = vsel %vm5093, %v5331, 0.0
          %v5336 = vadd.f32 %v5334, %v5335
          %5337 = vadd.xlane.f32.xlu0 %v5336
          %v5338 = vpop.xlane.xlu0 %5337
          %v5339 = vmul.f32 %v5338, %v1634
          %v5341 = vlaneseq
          %v5342 = vshrl.u32 %v5341, 7
          %v5343 = vsub.s32 0, %v5342
          %v5344 = vrot.slane %v5339, %v5343
          %v5346 = vsub.f32 %v5320, %v5344
          %v5347 = vmul.f32 %v5346, %v5346
          %v5349 = vlaneseq
          %v5350 = vshrl.u32 %v5349, 7
          %v5351 = vsub.s32 0, %v5350
          %v5352 = vrot.slane %v5347, %v5351
          %v5353 = vlaneseq
          %v5354 = vshrl.u32 %v5353, 7
          %v5355 = vsub.s32 1, %v5354
          %v5356 = vrot.slane %v5347, %v5355
          %v5359 = vsel %vm5093, %v5352, 0.0
          %v5360 = vsel %vm5093, %v5356, 0.0
          %v5361 = vadd.f32 %v5359, %v5360
          %5362 = vadd.xlane.f32.xlu0 %v5361
          %v5363 = vpop.xlane.xlu0 %5362
          %v5364 = vmul.f32 %v5363, %v1634
          %v5365 = vadd.f32 %v5364, 1e-06
          %v5366 = vrsqrt.pop %v5365
          %v5368 = vlaneseq
          %v5369 = vshrl.u32 %v5368, 7
          %v5370 = vsub.s32 0, %v5369
          %v5371 = vrot.slane %v5366, %v5370
          %v5373 = vmul.f32 %v5346, %v5371
          %v5374 = vmul.f32 %v5373, %v5321
          %v5375 = vadd.f32 %v5374, %v5322
          %v5377 = vlaneseq
          %v5378 = vshrl.u32 %v5377, 7
          %v5379 = vsub.s32 0, %v5378
          %v5380 = vrot.slane %v5375, %v5379
          %v5381 = vlaneseq
          %v5382 = vshrl.u32 %v5381, 7
          %v5383 = vsub.s32 1, %v5382
          %v5384 = vrot.slane %v5375, %v5383
          %v5387 = vpack.c.bf16 %v5380, %v5380
          %v5388 = vpack.c.bf16 %v5384, %v5384
          %v5389 = vld [vmem:[#allocation11] sm:$0xf]
          %v5390 = vld [vmem:[#allocation11 + $0x4] sm:$0xf]
          %v5391 = vld [vmem:[#allocation11 + $0x8] sm:$0xf]
          %v5392 = vld [vmem:[#allocation11 + $0xc] sm:$0xf]
          %v5393 = vld [vmem:[#allocation11 + $0x10] sm:$0xf]
          %v5394 = vld [vmem:[#allocation11 + $0x14] sm:$0xf]
          %v5395 = vld [vmem:[#allocation11 + $0x18] sm:$0xf]
          %v5396 = vld [vmem:[#allocation11 + $0x1c] sm:$0xf]
          %v5397 = vld [vmem:[#allocation11 + $0x20] sm:$0xf]
          %v5398 = vld [vmem:[#allocation11 + $0x24] sm:$0xf]
          %v5399 = vld [vmem:[#allocation11 + $0x28] sm:$0xf]
          %v5400 = vld [vmem:[#allocation11 + $0x2c] sm:$0xf]
          %v5401 = vld [vmem:[#allocation11 + $0x30] sm:$0xf]
          %v5402 = vld [vmem:[#allocation11 + $0x34] sm:$0xf]
          %v5403 = vld [vmem:[#allocation11 + $0x38] sm:$0xf]
          %v5404 = vld [vmem:[#allocation11 + $0x3c] sm:$0xf]
          %v5405 = vld [vmem:[#allocation11 + $0x40] sm:$0xf]
          %v5406 = vld [vmem:[#allocation11 + $0x44] sm:$0xf]
          %v5407 = vld [vmem:[#allocation11 + $0x48] sm:$0xf]
          %v5408 = vld [vmem:[#allocation11 + $0x4c] sm:$0xf]
          %v5409 = vld [vmem:[#allocation11 + $0x50] sm:$0xf]
          %v5410 = vld [vmem:[#allocation11 + $0x54] sm:$0xf]
          %v5411 = vld [vmem:[#allocation11 + $0x58] sm:$0xf]
          %v5412 = vld [vmem:[#allocation11 + $0x5c] sm:$0xf]
          %v5413 = vld [vmem:[#allocation11 + $0x60] sm:$0xf]
          %v5414 = vld [vmem:[#allocation11 + $0x64] sm:$0xf]
          %v5415 = vld [vmem:[#allocation11 + $0x68] sm:$0xf]
          %v5416 = vld [vmem:[#allocation11 + $0x6c] sm:$0xf]
          %v5417 = vld [vmem:[#allocation11 + $0x70] sm:$0xf]
          %v5418 = vld [vmem:[#allocation11 + $0x74] sm:$0xf]
          %v5419 = vld [vmem:[#allocation11 + $0x78] sm:$0xf]
          %v5420 = vld [vmem:[#allocation11 + $0x7c] sm:$0xf]
          %v5421 = vld [vmem:[%s20] sm:$0x1]
          %v5454 = vunpack.c.l.b16 %v5389
          %v5455 = vunpack.c.l.b16 %v5390
          %v5456 = vunpack.c.l.b16 %v5391
          %v5457 = vunpack.c.l.b16 %v5392
          %v5458 = vunpack.c.l.b16 %v5393
          %v5459 = vunpack.c.l.b16 %v5394
          %v5460 = vunpack.c.l.b16 %v5395
          %v5461 = vunpack.c.l.b16 %v5396
          %v5462 = vunpack.c.l.b16 %v5397
          %v5463 = vunpack.c.l.b16 %v5398
          %v5464 = vunpack.c.l.b16 %v5399
          %v5465 = vunpack.c.l.b16 %v5400
          %v5466 = vunpack.c.l.b16 %v5401
          %v5467 = vunpack.c.l.b16 %v5402
          %v5468 = vunpack.c.l.b16 %v5403
          %v5469 = vunpack.c.l.b16 %v5404
          %v5470 = vunpack.c.l.b16 %v5405
          %v5471 = vunpack.c.l.b16 %v5406
          %v5472 = vunpack.c.l.b16 %v5407
          %v5473 = vunpack.c.l.b16 %v5408
          %v5474 = vunpack.c.l.b16 %v5409
          %v5475 = vunpack.c.l.b16 %v5410
          %v5476 = vunpack.c.l.b16 %v5411
          %v5477 = vunpack.c.l.b16 %v5412
          %v5478 = vunpack.c.l.b16 %v5413
          %v5479 = vunpack.c.l.b16 %v5414
          %v5480 = vunpack.c.l.b16 %v5415
          %v5481 = vunpack.c.l.b16 %v5416
          %v5482 = vunpack.c.l.b16 %v5417
          %v5483 = vunpack.c.l.b16 %v5418
          %v5484 = vunpack.c.l.b16 %v5419
          %v5485 = vunpack.c.l.b16 %v5420
          %v5486 = vpack.c.b16 %v5455, %v5454
          %v5487 = vpack.c.b16 %v5457, %v5456
          %v5488 = vpack.c.b16 %v5459, %v5458
          %v5489 = vpack.c.b16 %v5461, %v5460
          %v5490 = vpack.c.b16 %v5463, %v5462
          %v5491 = vpack.c.b16 %v5465, %v5464
          %v5492 = vpack.c.b16 %v5467, %v5466
          %v5493 = vpack.c.b16 %v5469, %v5468
          %v5494 = vpack.c.b16 %v5471, %v5470
          %v5495 = vpack.c.b16 %v5473, %v5472
          %v5496 = vpack.c.b16 %v5475, %v5474
          %v5497 = vpack.c.b16 %v5477, %v5476
          %v5498 = vpack.c.b16 %v5479, %v5478
          %v5499 = vpack.c.b16 %v5481, %v5480
          %v5500 = vpack.c.b16 %v5483, %v5482
          %v5501 = vpack.c.b16 %v5485, %v5484
          %5518 = vmatprep.subr.bf16.mxu0 0
          %5519 = vmatpush1.bf16.msra.mxu0 %v5493
          %5520 = vmatprep.subr.bf16.mxu0 0
          %5521 = vmatpush1.bf16.msra.mxu0 %v5492
          %5522 = vmatprep.subr.bf16.mxu0 0
          %5523 = vmatpush1.bf16.msra.mxu0 %v5491
          %5524 = vmatprep.subr.bf16.mxu0 0
          %5525 = vmatpush1.bf16.msra.mxu0 %v5490
          %5526 = vmatprep.subr.bf16.mxu0 0
          %5527 = vmatpush1.bf16.msra.mxu0 %v5489
          %5528 = vmatprep.subr.bf16.mxu0 0
          %5529 = vmatpush1.bf16.msra.mxu0 %v5488
          %5530 = vmatprep.subr.bf16.mxu0 0
          %5531 = vmatpush1.bf16.msra.mxu0 %v5487
          %5532 = vmatprep.subr.bf16.mxu0 0
          %5533 = vmatpush1.bf16.msra.mxu0 %v5486
          %5534 = vmatprep.subr.bf16.mxu0 0
          %5535 = vmatpush2.bf16.msra.mxu0 %v5501
          %5536 = vmatprep.subr.bf16.mxu0 0
          %5537 = vmatpush2.bf16.msra.mxu0 %v5500
          %5538 = vmatprep.subr.bf16.mxu0 0
          %5539 = vmatpush2.bf16.msra.mxu0 %v5499
          %5540 = vmatprep.subr.bf16.mxu0 0
          %5541 = vmatpush2.bf16.msra.mxu0 %v5498
          %5542 = vmatprep.subr.bf16.mxu0 0
          %5543 = vmatpush2.bf16.msra.mxu0 %v5497
          %5544 = vmatprep.subr.bf16.mxu0 0
          %5545 = vmatpush2.bf16.msra.mxu0 %v5496
          %5546 = vmatprep.subr.bf16.mxu0 0
          %5547 = vmatpush2.bf16.msra.mxu0 %v5495
          %5548 = vmatprep.subr.bf16.mxu0 0
          %5549 = vmatpush2.bf16.msra.mxu0 %v5494
          %5550 = vmatprep.mubr.bf16.mxu0 %v5388
          %5551 = vmatmul.mubr.bf16.gmra.mxu0 %v5387
          %v5552 = vpop.f32.mrf.mxu0
          %v5553 = vadd.f32 %v5421, %v5552
          %v5554 = vpop.f32.mrf.mxu0
          %v5555 = vpop.f32.mrf.mxu0
          %v5556 = vpop.f32.mrf.mxu0
          %5557 = vdwg.mxu0
          %5558 = vst [vmem:[#allocation12 + $0x1] sm:$0x1] %v5553
        $region132: #{vit_forward.1} parent=103 // pred_fallthru
          _
        // Predicated region
        $region133: #{vit_forward.1} parent=103 // pred_check
          %p5559 = pneg %p554
        $region134: #{vit_forward.1} parent=103 // pred_check_branch
          %5561 = sbr.rel (%p5559) target = $region136
        $region135: #{vit_forward.1} parent=103 // pred_region
          %s5563 = ssub.s32 32, 32
          %5564 = vsyncadd [#allocation5], %s5563
          %s5566 = sshll.u32 [#allocation12], 4
          %s5567 = int_to_ptr.vmem [resolvable:$true] %s5566
          %5569 = dma.vmem_to_hbm [thread:$0]  %s5567, 32, %s21, [#allocation5]
        $region136: #{vit_forward.1} parent=103 // pred_fallthru
          _
        // Predicated region
        $region137: #{vit_forward.1} parent=103 // pred_check
          %p5570 = pneg %p554
        $region138: #{vit_forward.1} parent=103 // pred_check_branch
          %5572 = sbr.rel (%p5570) target = $region140
        $region139: #{vit_forward.1} parent=103 // pred_region
          %5573 = dma.done [#allocation5], 32
        $region140: #{vit_forward.1} parent=103 // pred_fallthru
          _
      $region104: #{vit_forward.1} parent=5 // pred_fallthru
        _
      %p5574 = scmp.le.s32.totalorder 2, %s35
      // Predicated region
      $region141: #{vit_forward.1} parent=5 // pred_check
        %p5575 = pneg %p5574
      $region142: #{vit_forward.1} parent=5 // pred_check_branch
        %5577 = sbr.rel (%p5575) target = $region144
      $region143: #{vit_forward.1} parent=5 // pred_region
        %s5578 = ssub.s32 %s35, 2
      $region144: #{vit_forward.1} parent=5 // pred_fallthru
        _
    $region6: #{vit_forward.1} parent=1 // loop_footer
      %s39 = sadd.s32 1, %s35
    $region7: #{vit_forward.1} parent=1 // loop_footer_branch
      %34 = sbr.rel target = $region3
    $region8: #{vit_forward.1} parent=1 // loop_exit
      _
    %5579 = vsyncpa [#allocation4], 1
    %s5580 = scalar_lea.sflag [#allocation4], 1
    %5581 = vsyncpa %s5580, 1
    %5582 = vsyncpa [#allocation7], 1
    %s5583 = scalar_lea.sflag [#allocation7], 1
    %5584 = vsyncpa %s5583, 1
    %5585 = vsyncpa [#allocation10], 1
    %s5586 = scalar_lea.sflag [#allocation10], 1
    %5587 = vsyncpa %s5586, 1
    %5588 = vsyncpa [#allocation5], 1
    %s5589 = scalar_lea.sflag [#allocation5], 1
    %5590 = vsyncpa %s5589, 1

</llo_original>
